<compile_context>
chip_gen: v7x
topology: tpu7x:2x2x1
jax: 0.10.0
libtpu: 0.0.40
codegen_flags: <defaults>
</compile_context>

<pallas_src>
import jax
import jax.numpy as jnp
from jax import lax
from jax.experimental import pallas as pl
from jax.experimental.pallas import tpu as pltpu
import numpy as np


def encoder_kernel(x_ref, wwh_ref, wwc_ref, wb_ref, wf_ref, b_ref,
                   uw_ref, ub_ref, vw_ref, vb_ref,
                   h_out_ref, alpha_out_ref):
    """One batch-block of the input-attention LSTM encoder.

    VMEM refs : x (bt, T, N), wwh/wwc (T, H), wb (1, T), wf (N+H, 4H), b (1, 4H)
    SMEM refs : uw (T, T), ub (1, T), vw (1, T), vb (1, 1)
    Outputs   : h_out (bt, T, H), alpha_out (bt, N)  (last timestep's alpha)
    """
    bt, T, N = x_ref.shape
    H = wwh_ref.shape[1]
    f32 = jnp.float32

    wwh = wwh_ref[...]                                  # (T, H)  W_e | h half
    wwc = wwc_ref[...]                                  # (T, H)  W_e | c half
    wf = wf_ref[...]                                    # (N+H, 4H) fused LSTM W
    vb = vb_ref[0, 0]                                   # scalar (SMEM)

    # Loop-invariant broadcasts, hoisted (JAX does not CSE broadcast_in_dim).
    wb_b = jnp.broadcast_to(wb_ref[...], (bt, T))       # (bt, T)
    bias_b = jnp.broadcast_to(b_ref[...], (bt, 4 * H))  # (bt, 4H)

    # Per-timestep input slices, lane-dense in the stock axis N.  Loaded once.
    x_t = [x_ref[:, pl.ds(t, 1), :][:, 0, :] for t in range(T)]   # T x (bt, N)

    # U_e(x_k) does not depend on the timestep -> hoist out of the time loop.
    #   u_s[s][b, n] = sum_t uw[s, t] * x[b, t, n] + ub[s]
    # Built as scalar(SMEM) x vector FMAs so every intermediate stays a
    # lane-dense (bt, N) tile (no padded (., N, T) tensor, no transposes).
    u_s = []
    for s in range(T):
        acc = jnp.zeros((bt, N), f32)
        for t in range(T):
            acc = acc + uw_ref[s, t] * x_t[t]
        u_s.append(acc + ub_ref[0, s])

    # Recurrent state lives in vregs (loop carry), not VMEM scratch.
    h = jnp.zeros((bt, H), f32)
    c = jnp.zeros((bt, H), f32)

    # Statically unrolled time loop (T is small): cross-iteration visibility
    # for the scheduler over the serial recurrence.
    for t in range(T):
        # ---- input attention over stocks ---------------------------------
        # W_e([h, c]) with split weights: two 2D dots, no per-step concat.
        w_term = (lax.dot_general(h, wwh,
                                  dimension_numbers=(((1,), (1,)), ((), ())),
                                  preferred_element_type=f32)
                  + lax.dot_general(c, wwc,
                                    dimension_numbers=(((1,), (1,)), ((), ())),
                                    preferred_element_type=f32)
                  + wb_b)                               # (bt, T)

        # e[b, n] = vb + sum_s vw[s] * tanh(w_term[b, s] + u_s[s][b, n])
        e = jnp.zeros((bt, N), f32)
        for s in range(T):
            e = e + vw_ref[0, s] * jnp.tanh(w_term[:, s:s + 1] + u_s[s])
        e = e + vb                                      # (bt, N)

        # softmax over the (lane-dense) stock axis
        e_max = jnp.max(e, axis=1, keepdims=True)
        p = jnp.exp(e - e_max)
        alpha = p / jnp.sum(p, axis=1, keepdims=True)   # (bt, N)

        x_tilde = alpha * x_t[t]                        # (bt, N)

        # ---- fused LSTM gate matmul: [x_tilde | h] @ [W_ih | W_hh]^T ------
        xh = jnp.concatenate([x_tilde, h], axis=1)      # (bt, N + H)
        gates = jnp.dot(xh, wf, preferred_element_type=f32) + bias_b

        i_g = jax.nn.sigmoid(gates[:, 0:H])
        f_g = jax.nn.sigmoid(gates[:, H:2 * H])
        g_g = jnp.tanh(gates[:, 2 * H:3 * H])
        o_g = jax.nn.sigmoid(gates[:, 3 * H:4 * H])

        c = f_g * c + i_g * g_g
        h = o_g * jnp.tanh(c)

        # Write directly in the final (B, T, H) layout (no wrapper transpose).
        h_out_ref[:, t, :] = h

        if t == T - 1:              # only the last timestep's alpha is kept
            alpha_out_ref[...] = alpha


def encoder_forward(x, params, *, block_b=None):
    B, T, N = x.shape
    H = params["whh"].shape[1]

    # Batch tile: whole batch when small / not 8-divisible, else 8-row tiles so
    # the grid's parallel axis can shard across TensorCores (v7x megacore) and
    # bound the VMEM footprint at large batch.
    if block_b is None:
        block_b = B if (B <= 8 or B % 8 != 0) else 8
    assert B % block_b == 0
    nb = B // block_b

    # One-time parameter re-arrangement (layout plumbing, outside the kernel).
    wwh = params["ww"][:, :H]                                  # (T, H)
    wwc = params["ww"][:, H:]                                  # (T, H)
    wb = params["wb"]                                          # (1, T)
    w_fused = jnp.concatenate([params["wih"], params["whh"]], axis=1).T  # (N+H, 4H)
    bias = params["b"]                                         # (1, 4H)
    uw = params["uw"]                                          # (T, T)  -> SMEM
    ub = params["ub"]                                          # (1, T)  -> SMEM
    vw = params["vw"]                                          # (1, T)  -> SMEM
    vb = params["vb"]                                          # (1, 1)  -> SMEM

    # VMEM budget: double-buffered block inputs/outputs, resident weights, and
    # the hoisted U_e slices; clamped to a range safe on v5e/v6e/v7x.
    est = 4 * (2 * block_b * T * N + 2 * block_b * T * H + 2 * block_b * N
               + 2 * (2 * T * H + T + (N + H) * 4 * H + 4 * H)
               + block_b * T * N + 16 * block_b * 4 * H)
    vmem_limit = int(min(48 * 1024 * 1024, max(16 * 1024 * 1024, 4 * est)))

    smem = pltpu.MemorySpace.SMEM
    fn = pl.pallas_call(
        encoder_kernel,
        grid=(nb,),
        out_shape=(jax.ShapeDtypeStruct((B, T, H), jnp.float32),
                   jax.ShapeDtypeStruct((B, N), jnp.float32)),
        in_specs=[
            pl.BlockSpec((block_b, T, N), lambda b: (b, 0, 0)),    # x
            pl.BlockSpec((T, H), lambda b: (0, 0)),                # W_e (h half)
            pl.BlockSpec((T, H), lambda b: (0, 0)),                # W_e (c half)
            pl.BlockSpec((1, T), lambda b: (0, 0)),                # W_e bias
            pl.BlockSpec((N + H, 4 * H), lambda b: (0, 0)),        # fused LSTM W
            pl.BlockSpec((1, 4 * H), lambda b: (0, 0)),            # LSTM bias
            pl.BlockSpec(memory_space=smem),                       # U_e weight
            pl.BlockSpec(memory_space=smem),                       # U_e bias
            pl.BlockSpec(memory_space=smem),                       # v_e weight
            pl.BlockSpec(memory_space=smem),                       # v_e bias
        ],
        out_specs=(pl.BlockSpec((block_b, T, H), lambda b: (b, 0, 0)),
                   pl.BlockSpec((block_b, N), lambda b: (b, 0))),
        compiler_params=pltpu.CompilerParams(
            dimension_semantics=("parallel",),
            vmem_limit_bytes=vmem_limit),
    )
    h_enc, alpha = fn(x, wwh, wwc, wb, w_fused, bias, uw, ub, vw, vb)
    return h_enc, alpha[:, None, :]                 # (B, T, H), (B, 1, N)


def reference_forward(x, params):
    """Plain-JAX port of the PyTorch forward, for a sanity check."""
    B, T, N = x.shape
    H = params["whh"].shape[1]
    h = jnp.zeros((B, H), jnp.float32)
    c = jnp.zeros((B, H), jnp.float32)
    hs_out = []
    alpha = None
    for t in range(T):
        hs = jnp.concatenate([h, c], axis=1)
        w_term = hs @ params["ww"].T + params["wb"][0]
        es = []
        for k in range(N):
            x_k = x[:, :, k]
            u_term = x_k @ params["uw"].T + params["ub"][0]
            re1 = jnp.tanh(w_term + u_term)
            es.append(re1 @ params["vw"][0] + params["vb"][0, 0])
        e = jnp.stack(es, axis=1)
        alpha = jax.nn.softmax(e, axis=1)
        x_tilde = alpha * x[:, t, :]
        gates = x_tilde @ params["wih"].T + h @ params["whh"].T + params["b"][0]
        i_g = jax.nn.sigmoid(gates[:, :H])
        f_g = jax.nn.sigmoid(gates[:, H:2 * H])
        g_g = jnp.tanh(gates[:, 2 * H:3 * H])
        o_g = jax.nn.sigmoid(gates[:, 3 * H:])
        c = f_g * c + i_g * g_g
        h = o_g * jnp.tanh(c)
        hs_out.append(h)
    return jnp.stack(hs_out, axis=1), alpha[:, None, :]


def init_params(key, hidden_dim, stock_num, seq_len):
    H, N, T = hidden_dim, stock_num, seq_len
    ks = jax.random.split(key, 9)
    u = lambda k, shape, scale: jax.random.uniform(
        k, shape, jnp.float32, -scale, scale)
    params = {
        "uw": u(ks[0], (T, T), 1.0 / np.sqrt(T)),          # U_e.weight
        "ub": u(ks[1], (1, T), 1.0 / np.sqrt(T)),          # U_e.bias
        "ww": u(ks[2], (T, 2 * H), 1.0 / np.sqrt(2 * H)),  # W_e.weight
        "wb": u(ks[3], (1, T), 1.0 / np.sqrt(2 * H)),      # W_e.bias
        "vw": u(ks[4], (1, T), 1.0 / np.sqrt(T)),          # v_e.weight
        "vb": u(ks[5], (1, 1), 1.0 / np.sqrt(T)),          # v_e.bias
        "wih": u(ks[6], (4 * H, N), 1.0 / np.sqrt(H)),     # LSTM weight_ih_l0
        "whh": u(ks[7], (4 * H, H), 1.0 / np.sqrt(H)),     # LSTM weight_hh_l0
    }
    b_ih = u(ks[8], (4 * H,), 1.0 / np.sqrt(H))
    b_hh = jnp.zeros((4 * H,), jnp.float32)
    params["b"] = (b_ih + b_hh)[None, :]                   # bias_ih + bias_hh
    return params


if __name__ == "__main__":
    B, T, N, H = 2, 8, 4, 32   # batch, seq_len, stock_num, hidden_dim_encoder

    key = jax.random.PRNGKey(0)
    kx, kp = jax.random.split(key)
    x = jax.random.normal(kx, (B, T, N), jnp.float32)
    params = init_params(kp, H, N, T)

    h_enc, alpha = encoder_forward(x, params)
    h_enc = jax.block_until_ready(h_enc)
    alpha = jax.block_until_ready(alpha)

    assert h_enc.shape == (B, T, H), h_enc.shape
    assert alpha.shape == (B, 1, N), alpha.shape

    # Non-fatal numerical sanity check against the plain-JAX reference.
    h_ref, a_ref = reference_forward(x, params)
    if not (np.allclose(np.asarray(h_enc), np.asarray(h_ref), atol=1e-4, rtol=1e-3)
            and np.allclose(np.asarray(alpha), np.asarray(a_ref), atol=1e-4, rtol=1e-3)):
        import sys
        print("WARNING: kernel output differs from JAX reference beyond tolerance",
              file=sys.stderr)

    print("KERNEL_OK")
</pallas_src>

<mosaic_0001>
module attributes {stable_mosaic.version = 11 : i64} {
  func.func @encoder_kernel(%arg0: i32, %arg1: memref<2x8x4xf32, #tpu.memory_space<vmem>>, %arg2: memref<8x32xf32, #tpu.memory_space<vmem>>, %arg3: memref<8x32xf32, #tpu.memory_space<vmem>>, %arg4: memref<1x8xf32, #tpu.memory_space<vmem>>, %arg5: memref<36x128xf32, #tpu.memory_space<vmem>>, %arg6: memref<1x128xf32, #tpu.memory_space<vmem>>, %arg7: memref<8x8xf32, #tpu.memory_space<smem>>, %arg8: memref<1x8xf32, #tpu.memory_space<smem>>, %arg9: memref<1x8xf32, #tpu.memory_space<smem>>, %arg10: memref<1x1xf32, #tpu.memory_space<smem>>, %arg11: memref<2x8x32xf32, #tpu.memory_space<vmem>>, %arg12: memref<2x4xf32, #tpu.memory_space<vmem>>) attributes {dimension_semantics = [#tpu.dimension_semantics<parallel>], iteration_bounds = array<i64: 1>, scalar_prefetch = 0 : i64, scratch_operands = 0 : i64, tpu.core_type = #tpu.core_type<tc>, window_params = [{transform_indices = @transform_0, window_bounds = array<i64: 2, 8, 4>}, {pipeline_mode = #tpu.pipeline_mode<synchronous>, transform_indices = @transform_1, window_bounds = array<i64: 8, 32>}, {pipeline_mode = #tpu.pipeline_mode<synchronous>, transform_indices = @transform_2, window_bounds = array<i64: 8, 32>}, {pipeline_mode = #tpu.pipeline_mode<synchronous>, transform_indices = @transform_3, window_bounds = array<i64: 1, 8>}, {pipeline_mode = #tpu.pipeline_mode<synchronous>, transform_indices = @transform_4, window_bounds = array<i64: 36, 128>}, {pipeline_mode = #tpu.pipeline_mode<synchronous>, transform_indices = @transform_5, window_bounds = array<i64: 1, 128>}, {transform_indices = @transform_6, window_bounds = array<i64: 8, 8>}, {transform_indices = @transform_7, window_bounds = array<i64: 1, 8>}, {transform_indices = @transform_8, window_bounds = array<i64: 1, 8>}, {transform_indices = @transform_9, window_bounds = array<i64: 1, 1>}, {transform_indices = @transform_10, window_bounds = array<i64: 2, 8, 32>}, {transform_indices = @transform_11, window_bounds = array<i64: 2, 4>}]} {
    %c0 = arith.constant 0 : index
    %c0_0 = arith.constant 0 : index
    %0 = vector.load %arg2[%c0, %c0_0] : memref<8x32xf32, #tpu.memory_space<vmem>>, vector<8x32xf32>
    %c0_1 = arith.constant 0 : index
    %c0_2 = arith.constant 0 : index
    %1 = vector.load %arg3[%c0_1, %c0_2] : memref<8x32xf32, #tpu.memory_space<vmem>>, vector<8x32xf32>
    %c0_3 = arith.constant 0 : index
    %c0_4 = arith.constant 0 : index
    %2 = vector.load %arg5[%c0_3, %c0_4] : memref<36x128xf32, #tpu.memory_space<vmem>>, vector<36x128xf32>
    %c0_5 = arith.constant 0 : index
    %c0_6 = arith.constant 0 : index
    %3 = memref.load %arg10[%c0_5, %c0_6] : memref<1x1xf32, #tpu.memory_space<smem>>
    %c0_7 = arith.constant 0 : index
    %c0_8 = arith.constant 0 : index
    %4 = vector.load %arg4[%c0_7, %c0_8] : memref<1x8xf32, #tpu.memory_space<vmem>>, vector<1x8xf32>
    %5 = vector.shape_cast %4 : vector<1x8xf32> to vector<1x8xf32>
    %6 = vector.broadcast %5 : vector<1x8xf32> to vector<2x8xf32>
    %c0_9 = arith.constant 0 : index
    %c0_10 = arith.constant 0 : index
    %7 = vector.load %arg6[%c0_9, %c0_10] : memref<1x128xf32, #tpu.memory_space<vmem>>, vector<1x128xf32>
    %8 = vector.shape_cast %7 : vector<1x128xf32> to vector<1x128xf32>
    %9 = vector.broadcast %8 : vector<1x128xf32> to vector<2x128xf32>
    %c0_11 = arith.constant 0 : index
    %c0_12 = arith.constant 0 : index
    %c0_13 = arith.constant 0 : index
    %10 = vector.load %arg1[%c0_11, %c0_12, %c0_13] : memref<2x8x4xf32, #tpu.memory_space<vmem>>, vector<2x1x4xf32>
    %11 = vector.shape_cast %10 : vector<2x1x4xf32> to vector<2x4xf32>
    %c0_14 = arith.constant 0 : index
    %c1 = arith.constant 1 : index
    %c0_15 = arith.constant 0 : index
    %12 = vector.load %arg1[%c0_14, %c1, %c0_15] : memref<2x8x4xf32, #tpu.memory_space<vmem>>, vector<2x1x4xf32>
    %13 = vector.shape_cast %12 : vector<2x1x4xf32> to vector<2x4xf32>
    %c0_16 = arith.constant 0 : index
    %c2 = arith.constant 2 : index
    %c0_17 = arith.constant 0 : index
    %14 = vector.load %arg1[%c0_16, %c2, %c0_17] : memref<2x8x4xf32, #tpu.memory_space<vmem>>, vector<2x1x4xf32>
    %15 = vector.shape_cast %14 : vector<2x1x4xf32> to vector<2x4xf32>
    %c0_18 = arith.constant 0 : index
    %c3 = arith.constant 3 : index
    %c0_19 = arith.constant 0 : index
    %16 = vector.load %arg1[%c0_18, %c3, %c0_19] : memref<2x8x4xf32, #tpu.memory_space<vmem>>, vector<2x1x4xf32>
    %17 = vector.shape_cast %16 : vector<2x1x4xf32> to vector<2x4xf32>
    %c0_20 = arith.constant 0 : index
    %c4 = arith.constant 4 : index
    %c0_21 = arith.constant 0 : index
    %18 = vector.load %arg1[%c0_20, %c4, %c0_21] : memref<2x8x4xf32, #tpu.memory_space<vmem>>, vector<2x1x4xf32>
    %19 = vector.shape_cast %18 : vector<2x1x4xf32> to vector<2x4xf32>
    %c0_22 = arith.constant 0 : index
    %c5 = arith.constant 5 : index
    %c0_23 = arith.constant 0 : index
    %20 = vector.load %arg1[%c0_22, %c5, %c0_23] : memref<2x8x4xf32, #tpu.memory_space<vmem>>, vector<2x1x4xf32>
    %21 = vector.shape_cast %20 : vector<2x1x4xf32> to vector<2x4xf32>
    %c0_24 = arith.constant 0 : index
    %c6 = arith.constant 6 : index
    %c0_25 = arith.constant 0 : index
    %22 = vector.load %arg1[%c0_24, %c6, %c0_25] : memref<2x8x4xf32, #tpu.memory_space<vmem>>, vector<2x1x4xf32>
    %23 = vector.shape_cast %22 : vector<2x1x4xf32> to vector<2x4xf32>
    %c0_26 = arith.constant 0 : index
    %c7 = arith.constant 7 : index
    %c0_27 = arith.constant 0 : index
    %24 = vector.load %arg1[%c0_26, %c7, %c0_27] : memref<2x8x4xf32, #tpu.memory_space<vmem>>, vector<2x1x4xf32>
    %25 = vector.shape_cast %24 : vector<2x1x4xf32> to vector<2x4xf32>
    %cst = arith.constant 0.000000e+00 : f32
    %26 = vector.broadcast %cst : f32 to vector<2x4xf32>
    %c0_28 = arith.constant 0 : index
    %c0_29 = arith.constant 0 : index
    %27 = memref.load %arg7[%c0_28, %c0_29] : memref<8x8xf32, #tpu.memory_space<smem>>
    %28 = vector.broadcast %27 : f32 to vector<2x4xf32>
    %29 = arith.mulf %28, %11 : vector<2x4xf32>
    %30 = arith.addf %26, %29 : vector<2x4xf32>
    %c0_30 = arith.constant 0 : index
    %c1_31 = arith.constant 1 : index
    %31 = memref.load %arg7[%c0_30, %c1_31] : memref<8x8xf32, #tpu.memory_space<smem>>
    %32 = vector.broadcast %31 : f32 to vector<2x4xf32>
    %33 = arith.mulf %32, %13 : vector<2x4xf32>
    %34 = arith.addf %30, %33 : vector<2x4xf32>
    %c0_32 = arith.constant 0 : index
    %c2_33 = arith.constant 2 : index
    %35 = memref.load %arg7[%c0_32, %c2_33] : memref<8x8xf32, #tpu.memory_space<smem>>
    %36 = vector.broadcast %35 : f32 to vector<2x4xf32>
    %37 = arith.mulf %36, %15 : vector<2x4xf32>
    %38 = arith.addf %34, %37 : vector<2x4xf32>
    %c0_34 = arith.constant 0 : index
    %c3_35 = arith.constant 3 : index
    %39 = memref.load %arg7[%c0_34, %c3_35] : memref<8x8xf32, #tpu.memory_space<smem>>
    %40 = vector.broadcast %39 : f32 to vector<2x4xf32>
    %41 = arith.mulf %40, %17 : vector<2x4xf32>
    %42 = arith.addf %38, %41 : vector<2x4xf32>
    %c0_36 = arith.constant 0 : index
    %c4_37 = arith.constant 4 : index
    %43 = memref.load %arg7[%c0_36, %c4_37] : memref<8x8xf32, #tpu.memory_space<smem>>
    %44 = vector.broadcast %43 : f32 to vector<2x4xf32>
    %45 = arith.mulf %44, %19 : vector<2x4xf32>
    %46 = arith.addf %42, %45 : vector<2x4xf32>
    %c0_38 = arith.constant 0 : index
    %c5_39 = arith.constant 5 : index
    %47 = memref.load %arg7[%c0_38, %c5_39] : memref<8x8xf32, #tpu.memory_space<smem>>
    %48 = vector.broadcast %47 : f32 to vector<2x4xf32>
    %49 = arith.mulf %48, %21 : vector<2x4xf32>
    %50 = arith.addf %46, %49 : vector<2x4xf32>
    %c0_40 = arith.constant 0 : index
    %c6_41 = arith.constant 6 : index
    %51 = memref.load %arg7[%c0_40, %c6_41] : memref<8x8xf32, #tpu.memory_space<smem>>
    %52 = vector.broadcast %51 : f32 to vector<2x4xf32>
    %53 = arith.mulf %52, %23 : vector<2x4xf32>
    %54 = arith.addf %50, %53 : vector<2x4xf32>
    %c0_42 = arith.constant 0 : index
    %c7_43 = arith.constant 7 : index
    %55 = memref.load %arg7[%c0_42, %c7_43] : memref<8x8xf32, #tpu.memory_space<smem>>
    %56 = vector.broadcast %55 : f32 to vector<2x4xf32>
    %57 = arith.mulf %56, %25 : vector<2x4xf32>
    %58 = arith.addf %54, %57 : vector<2x4xf32>
    %c0_44 = arith.constant 0 : index
    %c0_45 = arith.constant 0 : index
    %59 = memref.load %arg8[%c0_44, %c0_45] : memref<1x8xf32, #tpu.memory_space<smem>>
    %60 = vector.broadcast %59 : f32 to vector<2x4xf32>
    %61 = arith.addf %58, %60 : vector<2x4xf32>
    %cst_46 = arith.constant 0.000000e+00 : f32
    %62 = vector.broadcast %cst_46 : f32 to vector<2x4xf32>
    %c1_47 = arith.constant 1 : index
    %c0_48 = arith.constant 0 : index
    %63 = memref.load %arg7[%c1_47, %c0_48] : memref<8x8xf32, #tpu.memory_space<smem>>
    %64 = vector.broadcast %63 : f32 to vector<2x4xf32>
    %65 = arith.mulf %64, %11 : vector<2x4xf32>
    %66 = arith.addf %62, %65 : vector<2x4xf32>
    %c1_49 = arith.constant 1 : index
    %c1_50 = arith.constant 1 : index
    %67 = memref.load %arg7[%c1_49, %c1_50] : memref<8x8xf32, #tpu.memory_space<smem>>
    %68 = vector.broadcast %67 : f32 to vector<2x4xf32>
    %69 = arith.mulf %68, %13 : vector<2x4xf32>
    %70 = arith.addf %66, %69 : vector<2x4xf32>
    %c1_51 = arith.constant 1 : index
    %c2_52 = arith.constant 2 : index
    %71 = memref.load %arg7[%c1_51, %c2_52] : memref<8x8xf32, #tpu.memory_space<smem>>
    %72 = vector.broadcast %71 : f32 to vector<2x4xf32>
    %73 = arith.mulf %72, %15 : vector<2x4xf32>
    %74 = arith.addf %70, %73 : vector<2x4xf32>
    %c1_53 = arith.constant 1 : index
    %c3_54 = arith.constant 3 : index
    %75 = memref.load %arg7[%c1_53, %c3_54] : memref<8x8xf32, #tpu.memory_space<smem>>
    %76 = vector.broadcast %75 : f32 to vector<2x4xf32>
    %77 = arith.mulf %76, %17 : vector<2x4xf32>
    %78 = arith.addf %74, %77 : vector<2x4xf32>
    %c1_55 = arith.constant 1 : index
    %c4_56 = arith.constant 4 : index
    %79 = memref.load %arg7[%c1_55, %c4_56] : memref<8x8xf32, #tpu.memory_space<smem>>
    %80 = vector.broadcast %79 : f32 to vector<2x4xf32>
    %81 = arith.mulf %80, %19 : vector<2x4xf32>
    %82 = arith.addf %78, %81 : vector<2x4xf32>
    %c1_57 = arith.constant 1 : index
    %c5_58 = arith.constant 5 : index
    %83 = memref.load %arg7[%c1_57, %c5_58] : memref<8x8xf32, #tpu.memory_space<smem>>
    %84 = vector.broadcast %83 : f32 to vector<2x4xf32>
    %85 = arith.mulf %84, %21 : vector<2x4xf32>
    %86 = arith.addf %82, %85 : vector<2x4xf32>
    %c1_59 = arith.constant 1 : index
    %c6_60 = arith.constant 6 : index
    %87 = memref.load %arg7[%c1_59, %c6_60] : memref<8x8xf32, #tpu.memory_space<smem>>
    %88 = vector.broadcast %87 : f32 to vector<2x4xf32>
    %89 = arith.mulf %88, %23 : vector<2x4xf32>
    %90 = arith.addf %86, %89 : vector<2x4xf32>
    %c1_61 = arith.constant 1 : index
    %c7_62 = arith.constant 7 : index
    %91 = memref.load %arg7[%c1_61, %c7_62] : memref<8x8xf32, #tpu.memory_space<smem>>
    %92 = vector.broadcast %91 : f32 to vector<2x4xf32>
    %93 = arith.mulf %92, %25 : vector<2x4xf32>
    %94 = arith.addf %90, %93 : vector<2x4xf32>
    %c0_63 = arith.constant 0 : index
    %c1_64 = arith.constant 1 : index
    %95 = memref.load %arg8[%c0_63, %c1_64] : memref<1x8xf32, #tpu.memory_space<smem>>
    %96 = vector.broadcast %95 : f32 to vector<2x4xf32>
    %97 = arith.addf %94, %96 : vector<2x4xf32>
    %cst_65 = arith.constant 0.000000e+00 : f32
    %98 = vector.broadcast %cst_65 : f32 to vector<2x4xf32>
    %c2_66 = arith.constant 2 : index
    %c0_67 = arith.constant 0 : index
    %99 = memref.load %arg7[%c2_66, %c0_67] : memref<8x8xf32, #tpu.memory_space<smem>>
    %100 = vector.broadcast %99 : f32 to vector<2x4xf32>
    %101 = arith.mulf %100, %11 : vector<2x4xf32>
    %102 = arith.addf %98, %101 : vector<2x4xf32>
    %c2_68 = arith.constant 2 : index
    %c1_69 = arith.constant 1 : index
    %103 = memref.load %arg7[%c2_68, %c1_69] : memref<8x8xf32, #tpu.memory_space<smem>>
    %104 = vector.broadcast %103 : f32 to vector<2x4xf32>
    %105 = arith.mulf %104, %13 : vector<2x4xf32>
    %106 = arith.addf %102, %105 : vector<2x4xf32>
    %c2_70 = arith.constant 2 : index
    %c2_71 = arith.constant 2 : index
    %107 = memref.load %arg7[%c2_70, %c2_71] : memref<8x8xf32, #tpu.memory_space<smem>>
    %108 = vector.broadcast %107 : f32 to vector<2x4xf32>
    %109 = arith.mulf %108, %15 : vector<2x4xf32>
    %110 = arith.addf %106, %109 : vector<2x4xf32>
    %c2_72 = arith.constant 2 : index
    %c3_73 = arith.constant 3 : index
    %111 = memref.load %arg7[%c2_72, %c3_73] : memref<8x8xf32, #tpu.memory_space<smem>>
    %112 = vector.broadcast %111 : f32 to vector<2x4xf32>
    %113 = arith.mulf %112, %17 : vector<2x4xf32>
    %114 = arith.addf %110, %113 : vector<2x4xf32>
    %c2_74 = arith.constant 2 : index
    %c4_75 = arith.constant 4 : index
    %115 = memref.load %arg7[%c2_74, %c4_75] : memref<8x8xf32, #tpu.memory_space<smem>>
    %116 = vector.broadcast %115 : f32 to vector<2x4xf32>
    %117 = arith.mulf %116, %19 : vector<2x4xf32>
    %118 = arith.addf %114, %117 : vector<2x4xf32>
    %c2_76 = arith.constant 2 : index
    %c5_77 = arith.constant 5 : index
    %119 = memref.load %arg7[%c2_76, %c5_77] : memref<8x8xf32, #tpu.memory_space<smem>>
    %120 = vector.broadcast %119 : f32 to vector<2x4xf32>
    %121 = arith.mulf %120, %21 : vector<2x4xf32>
    %122 = arith.addf %118, %121 : vector<2x4xf32>
    %c2_78 = arith.constant 2 : index
    %c6_79 = arith.constant 6 : index
    %123 = memref.load %arg7[%c2_78, %c6_79] : memref<8x8xf32, #tpu.memory_space<smem>>
    %124 = vector.broadcast %123 : f32 to vector<2x4xf32>
    %125 = arith.mulf %124, %23 : vector<2x4xf32>
    %126 = arith.addf %122, %125 : vector<2x4xf32>
    %c2_80 = arith.constant 2 : index
    %c7_81 = arith.constant 7 : index
    %127 = memref.load %arg7[%c2_80, %c7_81] : memref<8x8xf32, #tpu.memory_space<smem>>
    %128 = vector.broadcast %127 : f32 to vector<2x4xf32>
    %129 = arith.mulf %128, %25 : vector<2x4xf32>
    %130 = arith.addf %126, %129 : vector<2x4xf32>
    %c0_82 = arith.constant 0 : index
    %c2_83 = arith.constant 2 : index
    %131 = memref.load %arg8[%c0_82, %c2_83] : memref<1x8xf32, #tpu.memory_space<smem>>
    %132 = vector.broadcast %131 : f32 to vector<2x4xf32>
    %133 = arith.addf %130, %132 : vector<2x4xf32>
    %cst_84 = arith.constant 0.000000e+00 : f32
    %134 = vector.broadcast %cst_84 : f32 to vector<2x4xf32>
    %c3_85 = arith.constant 3 : index
    %c0_86 = arith.constant 0 : index
    %135 = memref.load %arg7[%c3_85, %c0_86] : memref<8x8xf32, #tpu.memory_space<smem>>
    %136 = vector.broadcast %135 : f32 to vector<2x4xf32>
    %137 = arith.mulf %136, %11 : vector<2x4xf32>
    %138 = arith.addf %134, %137 : vector<2x4xf32>
    %c3_87 = arith.constant 3 : index
    %c1_88 = arith.constant 1 : index
    %139 = memref.load %arg7[%c3_87, %c1_88] : memref<8x8xf32, #tpu.memory_space<smem>>
    %140 = vector.broadcast %139 : f32 to vector<2x4xf32>
    %141 = arith.mulf %140, %13 : vector<2x4xf32>
    %142 = arith.addf %138, %141 : vector<2x4xf32>
    %c3_89 = arith.constant 3 : index
    %c2_90 = arith.constant 2 : index
    %143 = memref.load %arg7[%c3_89, %c2_90] : memref<8x8xf32, #tpu.memory_space<smem>>
    %144 = vector.broadcast %143 : f32 to vector<2x4xf32>
    %145 = arith.mulf %144, %15 : vector<2x4xf32>
    %146 = arith.addf %142, %145 : vector<2x4xf32>
    %c3_91 = arith.constant 3 : index
    %c3_92 = arith.constant 3 : index
    %147 = memref.load %arg7[%c3_91, %c3_92] : memref<8x8xf32, #tpu.memory_space<smem>>
    %148 = vector.broadcast %147 : f32 to vector<2x4xf32>
    %149 = arith.mulf %148, %17 : vector<2x4xf32>
    %150 = arith.addf %146, %149 : vector<2x4xf32>
    %c3_93 = arith.constant 3 : index
    %c4_94 = arith.constant 4 : index
    %151 = memref.load %arg7[%c3_93, %c4_94] : memref<8x8xf32, #tpu.memory_space<smem>>
    %152 = vector.broadcast %151 : f32 to vector<2x4xf32>
    %153 = arith.mulf %152, %19 : vector<2x4xf32>
    %154 = arith.addf %150, %153 : vector<2x4xf32>
    %c3_95 = arith.constant 3 : index
    %c5_96 = arith.constant 5 : index
    %155 = memref.load %arg7[%c3_95, %c5_96] : memref<8x8xf32, #tpu.memory_space<smem>>
    %156 = vector.broadcast %155 : f32 to vector<2x4xf32>
    %157 = arith.mulf %156, %21 : vector<2x4xf32>
    %158 = arith.addf %154, %157 : vector<2x4xf32>
    %c3_97 = arith.constant 3 : index
    %c6_98 = arith.constant 6 : index
    %159 = memref.load %arg7[%c3_97, %c6_98] : memref<8x8xf32, #tpu.memory_space<smem>>
    %160 = vector.broadcast %159 : f32 to vector<2x4xf32>
    %161 = arith.mulf %160, %23 : vector<2x4xf32>
    %162 = arith.addf %158, %161 : vector<2x4xf32>
    %c3_99 = arith.constant 3 : index
    %c7_100 = arith.constant 7 : index
    %163 = memref.load %arg7[%c3_99, %c7_100] : memref<8x8xf32, #tpu.memory_space<smem>>
    %164 = vector.broadcast %163 : f32 to vector<2x4xf32>
    %165 = arith.mulf %164, %25 : vector<2x4xf32>
    %166 = arith.addf %162, %165 : vector<2x4xf32>
    %c0_101 = arith.constant 0 : index
    %c3_102 = arith.constant 3 : index
    %167 = memref.load %arg8[%c0_101, %c3_102] : memref<1x8xf32, #tpu.memory_space<smem>>
    %168 = vector.broadcast %167 : f32 to vector<2x4xf32>
    %169 = arith.addf %166, %168 : vector<2x4xf32>
    %cst_103 = arith.constant 0.000000e+00 : f32
    %170 = vector.broadcast %cst_103 : f32 to vector<2x4xf32>
    %c4_104 = arith.constant 4 : index
    %c0_105 = arith.constant 0 : index
    %171 = memref.load %arg7[%c4_104, %c0_105] : memref<8x8xf32, #tpu.memory_space<smem>>
    %172 = vector.broadcast %171 : f32 to vector<2x4xf32>
    %173 = arith.mulf %172, %11 : vector<2x4xf32>
    %174 = arith.addf %170, %173 : vector<2x4xf32>
    %c4_106 = arith.constant 4 : index
    %c1_107 = arith.constant 1 : index
    %175 = memref.load %arg7[%c4_106, %c1_107] : memref<8x8xf32, #tpu.memory_space<smem>>
    %176 = vector.broadcast %175 : f32 to vector<2x4xf32>
    %177 = arith.mulf %176, %13 : vector<2x4xf32>
    %178 = arith.addf %174, %177 : vector<2x4xf32>
    %c4_108 = arith.constant 4 : index
    %c2_109 = arith.constant 2 : index
    %179 = memref.load %arg7[%c4_108, %c2_109] : memref<8x8xf32, #tpu.memory_space<smem>>
    %180 = vector.broadcast %179 : f32 to vector<2x4xf32>
    %181 = arith.mulf %180, %15 : vector<2x4xf32>
    %182 = arith.addf %178, %181 : vector<2x4xf32>
    %c4_110 = arith.constant 4 : index
    %c3_111 = arith.constant 3 : index
    %183 = memref.load %arg7[%c4_110, %c3_111] : memref<8x8xf32, #tpu.memory_space<smem>>
    %184 = vector.broadcast %183 : f32 to vector<2x4xf32>
    %185 = arith.mulf %184, %17 : vector<2x4xf32>
    %186 = arith.addf %182, %185 : vector<2x4xf32>
    %c4_112 = arith.constant 4 : index
    %c4_113 = arith.constant 4 : index
    %187 = memref.load %arg7[%c4_112, %c4_113] : memref<8x8xf32, #tpu.memory_space<smem>>
    %188 = vector.broadcast %187 : f32 to vector<2x4xf32>
    %189 = arith.mulf %188, %19 : vector<2x4xf32>
    %190 = arith.addf %186, %189 : vector<2x4xf32>
    %c4_114 = arith.constant 4 : index
    %c5_115 = arith.constant 5 : index
    %191 = memref.load %arg7[%c4_114, %c5_115] : memref<8x8xf32, #tpu.memory_space<smem>>
    %192 = vector.broadcast %191 : f32 to vector<2x4xf32>
    %193 = arith.mulf %192, %21 : vector<2x4xf32>
    %194 = arith.addf %190, %193 : vector<2x4xf32>
    %c4_116 = arith.constant 4 : index
    %c6_117 = arith.constant 6 : index
    %195 = memref.load %arg7[%c4_116, %c6_117] : memref<8x8xf32, #tpu.memory_space<smem>>
    %196 = vector.broadcast %195 : f32 to vector<2x4xf32>
    %197 = arith.mulf %196, %23 : vector<2x4xf32>
    %198 = arith.addf %194, %197 : vector<2x4xf32>
    %c4_118 = arith.constant 4 : index
    %c7_119 = arith.constant 7 : index
    %199 = memref.load %arg7[%c4_118, %c7_119] : memref<8x8xf32, #tpu.memory_space<smem>>
    %200 = vector.broadcast %199 : f32 to vector<2x4xf32>
    %201 = arith.mulf %200, %25 : vector<2x4xf32>
    %202 = arith.addf %198, %201 : vector<2x4xf32>
    %c0_120 = arith.constant 0 : index
    %c4_121 = arith.constant 4 : index
    %203 = memref.load %arg8[%c0_120, %c4_121] : memref<1x8xf32, #tpu.memory_space<smem>>
    %204 = vector.broadcast %203 : f32 to vector<2x4xf32>
    %205 = arith.addf %202, %204 : vector<2x4xf32>
    %cst_122 = arith.constant 0.000000e+00 : f32
    %206 = vector.broadcast %cst_122 : f32 to vector<2x4xf32>
    %c5_123 = arith.constant 5 : index
    %c0_124 = arith.constant 0 : index
    %207 = memref.load %arg7[%c5_123, %c0_124] : memref<8x8xf32, #tpu.memory_space<smem>>
    %208 = vector.broadcast %207 : f32 to vector<2x4xf32>
    %209 = arith.mulf %208, %11 : vector<2x4xf32>
    %210 = arith.addf %206, %209 : vector<2x4xf32>
    %c5_125 = arith.constant 5 : index
    %c1_126 = arith.constant 1 : index
    %211 = memref.load %arg7[%c5_125, %c1_126] : memref<8x8xf32, #tpu.memory_space<smem>>
    %212 = vector.broadcast %211 : f32 to vector<2x4xf32>
    %213 = arith.mulf %212, %13 : vector<2x4xf32>
    %214 = arith.addf %210, %213 : vector<2x4xf32>
    %c5_127 = arith.constant 5 : index
    %c2_128 = arith.constant 2 : index
    %215 = memref.load %arg7[%c5_127, %c2_128] : memref<8x8xf32, #tpu.memory_space<smem>>
    %216 = vector.broadcast %215 : f32 to vector<2x4xf32>
    %217 = arith.mulf %216, %15 : vector<2x4xf32>
    %218 = arith.addf %214, %217 : vector<2x4xf32>
    %c5_129 = arith.constant 5 : index
    %c3_130 = arith.constant 3 : index
    %219 = memref.load %arg7[%c5_129, %c3_130] : memref<8x8xf32, #tpu.memory_space<smem>>
    %220 = vector.broadcast %219 : f32 to vector<2x4xf32>
    %221 = arith.mulf %220, %17 : vector<2x4xf32>
    %222 = arith.addf %218, %221 : vector<2x4xf32>
    %c5_131 = arith.constant 5 : index
    %c4_132 = arith.constant 4 : index
    %223 = memref.load %arg7[%c5_131, %c4_132] : memref<8x8xf32, #tpu.memory_space<smem>>
    %224 = vector.broadcast %223 : f32 to vector<2x4xf32>
    %225 = arith.mulf %224, %19 : vector<2x4xf32>
    %226 = arith.addf %222, %225 : vector<2x4xf32>
    %c5_133 = arith.constant 5 : index
    %c5_134 = arith.constant 5 : index
    %227 = memref.load %arg7[%c5_133, %c5_134] : memref<8x8xf32, #tpu.memory_space<smem>>
    %228 = vector.broadcast %227 : f32 to vector<2x4xf32>
    %229 = arith.mulf %228, %21 : vector<2x4xf32>
    %230 = arith.addf %226, %229 : vector<2x4xf32>
    %c5_135 = arith.constant 5 : index
    %c6_136 = arith.constant 6 : index
    %231 = memref.load %arg7[%c5_135, %c6_136] : memref<8x8xf32, #tpu.memory_space<smem>>
    %232 = vector.broadcast %231 : f32 to vector<2x4xf32>
    %233 = arith.mulf %232, %23 : vector<2x4xf32>
    %234 = arith.addf %230, %233 : vector<2x4xf32>
    %c5_137 = arith.constant 5 : index
    %c7_138 = arith.constant 7 : index
    %235 = memref.load %arg7[%c5_137, %c7_138] : memref<8x8xf32, #tpu.memory_space<smem>>
    %236 = vector.broadcast %235 : f32 to vector<2x4xf32>
    %237 = arith.mulf %236, %25 : vector<2x4xf32>
    %238 = arith.addf %234, %237 : vector<2x4xf32>
    %c0_139 = arith.constant 0 : index
    %c5_140 = arith.constant 5 : index
    %239 = memref.load %arg8[%c0_139, %c5_140] : memref<1x8xf32, #tpu.memory_space<smem>>
    %240 = vector.broadcast %239 : f32 to vector<2x4xf32>
    %241 = arith.addf %238, %240 : vector<2x4xf32>
    %cst_141 = arith.constant 0.000000e+00 : f32
    %242 = vector.broadcast %cst_141 : f32 to vector<2x4xf32>
    %c6_142 = arith.constant 6 : index
    %c0_143 = arith.constant 0 : index
    %243 = memref.load %arg7[%c6_142, %c0_143] : memref<8x8xf32, #tpu.memory_space<smem>>
    %244 = vector.broadcast %243 : f32 to vector<2x4xf32>
    %245 = arith.mulf %244, %11 : vector<2x4xf32>
    %246 = arith.addf %242, %245 : vector<2x4xf32>
    %c6_144 = arith.constant 6 : index
    %c1_145 = arith.constant 1 : index
    %247 = memref.load %arg7[%c6_144, %c1_145] : memref<8x8xf32, #tpu.memory_space<smem>>
    %248 = vector.broadcast %247 : f32 to vector<2x4xf32>
    %249 = arith.mulf %248, %13 : vector<2x4xf32>
    %250 = arith.addf %246, %249 : vector<2x4xf32>
    %c6_146 = arith.constant 6 : index
    %c2_147 = arith.constant 2 : index
    %251 = memref.load %arg7[%c6_146, %c2_147] : memref<8x8xf32, #tpu.memory_space<smem>>
    %252 = vector.broadcast %251 : f32 to vector<2x4xf32>
    %253 = arith.mulf %252, %15 : vector<2x4xf32>
    %254 = arith.addf %250, %253 : vector<2x4xf32>
    %c6_148 = arith.constant 6 : index
    %c3_149 = arith.constant 3 : index
    %255 = memref.load %arg7[%c6_148, %c3_149] : memref<8x8xf32, #tpu.memory_space<smem>>
    %256 = vector.broadcast %255 : f32 to vector<2x4xf32>
    %257 = arith.mulf %256, %17 : vector<2x4xf32>
    %258 = arith.addf %254, %257 : vector<2x4xf32>
    %c6_150 = arith.constant 6 : index
    %c4_151 = arith.constant 4 : index
    %259 = memref.load %arg7[%c6_150, %c4_151] : memref<8x8xf32, #tpu.memory_space<smem>>
    %260 = vector.broadcast %259 : f32 to vector<2x4xf32>
    %261 = arith.mulf %260, %19 : vector<2x4xf32>
    %262 = arith.addf %258, %261 : vector<2x4xf32>
    %c6_152 = arith.constant 6 : index
    %c5_153 = arith.constant 5 : index
    %263 = memref.load %arg7[%c6_152, %c5_153] : memref<8x8xf32, #tpu.memory_space<smem>>
    %264 = vector.broadcast %263 : f32 to vector<2x4xf32>
    %265 = arith.mulf %264, %21 : vector<2x4xf32>
    %266 = arith.addf %262, %265 : vector<2x4xf32>
    %c6_154 = arith.constant 6 : index
    %c6_155 = arith.constant 6 : index
    %267 = memref.load %arg7[%c6_154, %c6_155] : memref<8x8xf32, #tpu.memory_space<smem>>
    %268 = vector.broadcast %267 : f32 to vector<2x4xf32>
    %269 = arith.mulf %268, %23 : vector<2x4xf32>
    %270 = arith.addf %266, %269 : vector<2x4xf32>
    %c6_156 = arith.constant 6 : index
    %c7_157 = arith.constant 7 : index
    %271 = memref.load %arg7[%c6_156, %c7_157] : memref<8x8xf32, #tpu.memory_space<smem>>
    %272 = vector.broadcast %271 : f32 to vector<2x4xf32>
    %273 = arith.mulf %272, %25 : vector<2x4xf32>
    %274 = arith.addf %270, %273 : vector<2x4xf32>
    %c0_158 = arith.constant 0 : index
    %c6_159 = arith.constant 6 : index
    %275 = memref.load %arg8[%c0_158, %c6_159] : memref<1x8xf32, #tpu.memory_space<smem>>
    %276 = vector.broadcast %275 : f32 to vector<2x4xf32>
    %277 = arith.addf %274, %276 : vector<2x4xf32>
    %cst_160 = arith.constant 0.000000e+00 : f32
    %278 = vector.broadcast %cst_160 : f32 to vector<2x4xf32>
    %c7_161 = arith.constant 7 : index
    %c0_162 = arith.constant 0 : index
    %279 = memref.load %arg7[%c7_161, %c0_162] : memref<8x8xf32, #tpu.memory_space<smem>>
    %280 = vector.broadcast %279 : f32 to vector<2x4xf32>
    %281 = arith.mulf %280, %11 : vector<2x4xf32>
    %282 = arith.addf %278, %281 : vector<2x4xf32>
    %c7_163 = arith.constant 7 : index
    %c1_164 = arith.constant 1 : index
    %283 = memref.load %arg7[%c7_163, %c1_164] : memref<8x8xf32, #tpu.memory_space<smem>>
    %284 = vector.broadcast %283 : f32 to vector<2x4xf32>
    %285 = arith.mulf %284, %13 : vector<2x4xf32>
    %286 = arith.addf %282, %285 : vector<2x4xf32>
    %c7_165 = arith.constant 7 : index
    %c2_166 = arith.constant 2 : index
    %287 = memref.load %arg7[%c7_165, %c2_166] : memref<8x8xf32, #tpu.memory_space<smem>>
    %288 = vector.broadcast %287 : f32 to vector<2x4xf32>
    %289 = arith.mulf %288, %15 : vector<2x4xf32>
    %290 = arith.addf %286, %289 : vector<2x4xf32>
    %c7_167 = arith.constant 7 : index
    %c3_168 = arith.constant 3 : index
    %291 = memref.load %arg7[%c7_167, %c3_168] : memref<8x8xf32, #tpu.memory_space<smem>>
    %292 = vector.broadcast %291 : f32 to vector<2x4xf32>
    %293 = arith.mulf %292, %17 : vector<2x4xf32>
    %294 = arith.addf %290, %293 : vector<2x4xf32>
    %c7_169 = arith.constant 7 : index
    %c4_170 = arith.constant 4 : index
    %295 = memref.load %arg7[%c7_169, %c4_170] : memref<8x8xf32, #tpu.memory_space<smem>>
    %296 = vector.broadcast %295 : f32 to vector<2x4xf32>
    %297 = arith.mulf %296, %19 : vector<2x4xf32>
    %298 = arith.addf %294, %297 : vector<2x4xf32>
    %c7_171 = arith.constant 7 : index
    %c5_172 = arith.constant 5 : index
    %299 = memref.load %arg7[%c7_171, %c5_172] : memref<8x8xf32, #tpu.memory_space<smem>>
    %300 = vector.broadcast %299 : f32 to vector<2x4xf32>
    %301 = arith.mulf %300, %21 : vector<2x4xf32>
    %302 = arith.addf %298, %301 : vector<2x4xf32>
    %c7_173 = arith.constant 7 : index
    %c6_174 = arith.constant 6 : index
    %303 = memref.load %arg7[%c7_173, %c6_174] : memref<8x8xf32, #tpu.memory_space<smem>>
    %304 = vector.broadcast %303 : f32 to vector<2x4xf32>
    %305 = arith.mulf %304, %23 : vector<2x4xf32>
    %306 = arith.addf %302, %305 : vector<2x4xf32>
    %c7_175 = arith.constant 7 : index
    %c7_176 = arith.constant 7 : index
    %307 = memref.load %arg7[%c7_175, %c7_176] : memref<8x8xf32, #tpu.memory_space<smem>>
    %308 = vector.broadcast %307 : f32 to vector<2x4xf32>
    %309 = arith.mulf %308, %25 : vector<2x4xf32>
    %310 = arith.addf %306, %309 : vector<2x4xf32>
    %c0_177 = arith.constant 0 : index
    %c7_178 = arith.constant 7 : index
    %311 = memref.load %arg8[%c0_177, %c7_178] : memref<1x8xf32, #tpu.memory_space<smem>>
    %312 = vector.broadcast %311 : f32 to vector<2x4xf32>
    %313 = arith.addf %310, %312 : vector<2x4xf32>
    %cst_179 = arith.constant 0.000000e+00 : f32
    %314 = vector.broadcast %cst_179 : f32 to vector<2x32xf32>
    %cst_180 = arith.constant 0.000000e+00 : f32
    %315 = vector.broadcast %cst_180 : f32 to vector<2x32xf32>
    %cst_181 = arith.constant dense<0.000000e+00> : vector<2x8xf32>
    %316 = tpu.matmul %314, %0, %cst_181 {dimension_numbers = #tpu.dot_dimension_numbers<[1], [1], [0], [0], [0, 0, 1, 0], [], []>} : vector<2x32xf32>, vector<8x32xf32>, vector<2x8xf32> -> vector<2x8xf32>
    %cst_182 = arith.constant dense<0.000000e+00> : vector<2x8xf32>
    %317 = tpu.matmul %315, %1, %cst_182 {dimension_numbers = #tpu.dot_dimension_numbers<[1], [1], [0], [0], [0, 0, 1, 0], [], []>} : vector<2x32xf32>, vector<8x32xf32>, vector<2x8xf32> -> vector<2x8xf32>
    %318 = arith.addf %316, %317 : vector<2x8xf32>
    %319 = arith.addf %318, %6 : vector<2x8xf32>
    %cst_183 = arith.constant 0.000000e+00 : f32
    %320 = vector.broadcast %cst_183 : f32 to vector<2x4xf32>
    %c0_184 = arith.constant 0 : index
    %c0_185 = arith.constant 0 : index
    %321 = memref.load %arg9[%c0_184, %c0_185] : memref<1x8xf32, #tpu.memory_space<smem>>
    %322 = vector.extract_strided_slice %319 {offsets = [0, 0], sizes = [2, 1], strides = [1, 1]} : vector<2x8xf32> to vector<2x1xf32>
    %323 = vector.broadcast %322 : vector<2x1xf32> to vector<2x4xf32>
    %324 = arith.addf %323, %61 : vector<2x4xf32>
    %325 = math.tanh %324 : vector<2x4xf32>
    %326 = vector.broadcast %321 : f32 to vector<2x4xf32>
    %327 = arith.mulf %326, %325 : vector<2x4xf32>
    %328 = arith.addf %320, %327 : vector<2x4xf32>
    %c0_186 = arith.constant 0 : index
    %c1_187 = arith.constant 1 : index
    %329 = memref.load %arg9[%c0_186, %c1_187] : memref<1x8xf32, #tpu.memory_space<smem>>
    %330 = vector.extract_strided_slice %319 {offsets = [0, 1], sizes = [2, 1], strides = [1, 1]} : vector<2x8xf32> to vector<2x1xf32>
    %331 = vector.broadcast %330 : vector<2x1xf32> to vector<2x4xf32>
    %332 = arith.addf %331, %97 : vector<2x4xf32>
    %333 = math.tanh %332 : vector<2x4xf32>
    %334 = vector.broadcast %329 : f32 to vector<2x4xf32>
    %335 = arith.mulf %334, %333 : vector<2x4xf32>
    %336 = arith.addf %328, %335 : vector<2x4xf32>
    %c0_188 = arith.constant 0 : index
    %c2_189 = arith.constant 2 : index
    %337 = memref.load %arg9[%c0_188, %c2_189] : memref<1x8xf32, #tpu.memory_space<smem>>
    %338 = vector.extract_strided_slice %319 {offsets = [0, 2], sizes = [2, 1], strides = [1, 1]} : vector<2x8xf32> to vector<2x1xf32>
    %339 = vector.broadcast %338 : vector<2x1xf32> to vector<2x4xf32>
    %340 = arith.addf %339, %133 : vector<2x4xf32>
    %341 = math.tanh %340 : vector<2x4xf32>
    %342 = vector.broadcast %337 : f32 to vector<2x4xf32>
    %343 = arith.mulf %342, %341 : vector<2x4xf32>
    %344 = arith.addf %336, %343 : vector<2x4xf32>
    %c0_190 = arith.constant 0 : index
    %c3_191 = arith.constant 3 : index
    %345 = memref.load %arg9[%c0_190, %c3_191] : memref<1x8xf32, #tpu.memory_space<smem>>
    %346 = vector.extract_strided_slice %319 {offsets = [0, 3], sizes = [2, 1], strides = [1, 1]} : vector<2x8xf32> to vector<2x1xf32>
    %347 = vector.broadcast %346 : vector<2x1xf32> to vector<2x4xf32>
    %348 = arith.addf %347, %169 : vector<2x4xf32>
    %349 = math.tanh %348 : vector<2x4xf32>
    %350 = vector.broadcast %345 : f32 to vector<2x4xf32>
    %351 = arith.mulf %350, %349 : vector<2x4xf32>
    %352 = arith.addf %344, %351 : vector<2x4xf32>
    %c0_192 = arith.constant 0 : index
    %c4_193 = arith.constant 4 : index
    %353 = memref.load %arg9[%c0_192, %c4_193] : memref<1x8xf32, #tpu.memory_space<smem>>
    %354 = vector.extract_strided_slice %319 {offsets = [0, 4], sizes = [2, 1], strides = [1, 1]} : vector<2x8xf32> to vector<2x1xf32>
    %355 = vector.broadcast %354 : vector<2x1xf32> to vector<2x4xf32>
    %356 = arith.addf %355, %205 : vector<2x4xf32>
    %357 = math.tanh %356 : vector<2x4xf32>
    %358 = vector.broadcast %353 : f32 to vector<2x4xf32>
    %359 = arith.mulf %358, %357 : vector<2x4xf32>
    %360 = arith.addf %352, %359 : vector<2x4xf32>
    %c0_194 = arith.constant 0 : index
    %c5_195 = arith.constant 5 : index
    %361 = memref.load %arg9[%c0_194, %c5_195] : memref<1x8xf32, #tpu.memory_space<smem>>
    %362 = vector.extract_strided_slice %319 {offsets = [0, 5], sizes = [2, 1], strides = [1, 1]} : vector<2x8xf32> to vector<2x1xf32>
    %363 = vector.broadcast %362 : vector<2x1xf32> to vector<2x4xf32>
    %364 = arith.addf %363, %241 : vector<2x4xf32>
    %365 = math.tanh %364 : vector<2x4xf32>
    %366 = vector.broadcast %361 : f32 to vector<2x4xf32>
    %367 = arith.mulf %366, %365 : vector<2x4xf32>
    %368 = arith.addf %360, %367 : vector<2x4xf32>
    %c0_196 = arith.constant 0 : index
    %c6_197 = arith.constant 6 : index
    %369 = memref.load %arg9[%c0_196, %c6_197] : memref<1x8xf32, #tpu.memory_space<smem>>
    %370 = vector.extract_strided_slice %319 {offsets = [0, 6], sizes = [2, 1], strides = [1, 1]} : vector<2x8xf32> to vector<2x1xf32>
    %371 = vector.broadcast %370 : vector<2x1xf32> to vector<2x4xf32>
    %372 = arith.addf %371, %277 : vector<2x4xf32>
    %373 = math.tanh %372 : vector<2x4xf32>
    %374 = vector.broadcast %369 : f32 to vector<2x4xf32>
    %375 = arith.mulf %374, %373 : vector<2x4xf32>
    %376 = arith.addf %368, %375 : vector<2x4xf32>
    %c0_198 = arith.constant 0 : index
    %c7_199 = arith.constant 7 : index
    %377 = memref.load %arg9[%c0_198, %c7_199] : memref<1x8xf32, #tpu.memory_space<smem>>
    %378 = vector.extract_strided_slice %319 {offsets = [0, 7], sizes = [2, 1], strides = [1, 1]} : vector<2x8xf32> to vector<2x1xf32>
    %379 = vector.broadcast %378 : vector<2x1xf32> to vector<2x4xf32>
    %380 = arith.addf %379, %313 : vector<2x4xf32>
    %381 = math.tanh %380 : vector<2x4xf32>
    %382 = vector.broadcast %377 : f32 to vector<2x4xf32>
    %383 = arith.mulf %382, %381 : vector<2x4xf32>
    %384 = arith.addf %376, %383 : vector<2x4xf32>
    %385 = vector.broadcast %3 : f32 to vector<2x4xf32>
    %386 = arith.addf %384, %385 : vector<2x4xf32>
    %cst_200 = arith.constant dense<0xFF800000> : vector<2xf32>
    %387 = vector.multi_reduction <maximumf>, %386, %cst_200 [1] : vector<2x4xf32> to vector<2xf32>
    %388 = vector.shape_cast %387 : vector<2xf32> to vector<2x1xf32>
    %389 = vector.broadcast %388 : vector<2x1xf32> to vector<2x4xf32>
    %390 = arith.subf %386, %389 : vector<2x4xf32>
    %391 = math.exp %390 : vector<2x4xf32>
    %cst_201 = arith.constant dense<0.000000e+00> : vector<2xf32>
    %392 = vector.multi_reduction <add>, %391, %cst_201 [1] : vector<2x4xf32> to vector<2xf32>
    %393 = vector.shape_cast %392 : vector<2xf32> to vector<2x1xf32>
    %394 = vector.broadcast %393 : vector<2x1xf32> to vector<2x4xf32>
    %395 = arith.divf %391, %394 : vector<2x4xf32>
    %396 = arith.mulf %395, %11 : vector<2x4xf32>
    %397 = tpu.concatenate %396, %314 in 1 : vector<2x4xf32>, vector<2x32xf32> -> vector<2x36xf32>
    %cst_202 = arith.constant dense<0.000000e+00> : vector<2x128xf32>
    %398 = tpu.matmul %397, %2, %cst_202 {dimension_numbers = #tpu.dot_dimension_numbers<[1], [0], [0], [1], [0, 0, 1, 1], [], []>} : vector<2x36xf32>, vector<36x128xf32>, vector<2x128xf32> -> vector<2x128xf32>
    %399 = arith.addf %398, %9 : vector<2x128xf32>
    %400 = vector.extract_strided_slice %399 {offsets = [0, 0], sizes = [2, 32], strides = [1, 1]} : vector<2x128xf32> to vector<2x32xf32>
    %401 = arith.negf %400 : vector<2x32xf32>
    %402 = math.exp %401 : vector<2x32xf32>
    %cst_203 = arith.constant 1.000000e+00 : f32
    %403 = vector.broadcast %cst_203 : f32 to vector<2x32xf32>
    %404 = arith.addf %403, %402 : vector<2x32xf32>
    %405 = arith.divf %403, %404 : vector<2x32xf32>
    %406 = vector.extract_strided_slice %399 {offsets = [0, 32], sizes = [2, 32], strides = [1, 1]} : vector<2x128xf32> to vector<2x32xf32>
    %407 = arith.negf %406 : vector<2x32xf32>
    %408 = math.exp %407 : vector<2x32xf32>
    %cst_204 = arith.constant 1.000000e+00 : f32
    %409 = vector.broadcast %cst_204 : f32 to vector<2x32xf32>
    %410 = arith.addf %409, %408 : vector<2x32xf32>
    %411 = arith.divf %409, %410 : vector<2x32xf32>
    %412 = vector.extract_strided_slice %399 {offsets = [0, 64], sizes = [2, 32], strides = [1, 1]} : vector<2x128xf32> to vector<2x32xf32>
    %413 = math.tanh %412 : vector<2x32xf32>
    %414 = vector.extract_strided_slice %399 {offsets = [0, 96], sizes = [2, 32], strides = [1, 1]} : vector<2x128xf32> to vector<2x32xf32>
    %415 = arith.negf %414 : vector<2x32xf32>
    %416 = math.exp %415 : vector<2x32xf32>
    %cst_205 = arith.constant 1.000000e+00 : f32
    %417 = vector.broadcast %cst_205 : f32 to vector<2x32xf32>
    %418 = arith.addf %417, %416 : vector<2x32xf32>
    %419 = arith.divf %417, %418 : vector<2x32xf32>
    %420 = arith.mulf %411, %315 : vector<2x32xf32>
    %421 = arith.mulf %405, %413 : vector<2x32xf32>
    %422 = arith.addf %420, %421 : vector<2x32xf32>
    %423 = math.tanh %422 : vector<2x32xf32>
    %424 = arith.mulf %419, %423 : vector<2x32xf32>
    %c0_206 = arith.constant 0 : index
    %c0_207 = arith.constant 0 : index
    %c0_208 = arith.constant 0 : index
    %425 = vector.load %arg11[%c0_206, %c0_207, %c0_208] : memref<2x8x32xf32, #tpu.memory_space<vmem>>, vector<2x1x32xf32>
    %426 = vector.shape_cast %425 : vector<2x1x32xf32> to vector<2x32xf32>
    %427 = vector.shape_cast %424 : vector<2x32xf32> to vector<2x1x32xf32>
    tpu.vector_store %arg11[%c0_206, %c0_207, %c0_208], %427 {strides = array<i32>} : memref<2x8x32xf32, #tpu.memory_space<vmem>>, vector<2x1x32xf32>,
    %cst_209 = arith.constant dense<0.000000e+00> : vector<2x8xf32>
    %428 = tpu.matmul %424, %0, %cst_209 {dimension_numbers = #tpu.dot_dimension_numbers<[1], [1], [0], [0], [0, 0, 1, 0], [], []>} : vector<2x32xf32>, vector<8x32xf32>, vector<2x8xf32> -> vector<2x8xf32>
    %cst_210 = arith.constant dense<0.000000e+00> : vector<2x8xf32>
    %429 = tpu.matmul %422, %1, %cst_210 {dimension_numbers = #tpu.dot_dimension_numbers<[1], [1], [0], [0], [0, 0, 1, 0], [], []>} : vector<2x32xf32>, vector<8x32xf32>, vector<2x8xf32> -> vector<2x8xf32>
    %430 = arith.addf %428, %429 : vector<2x8xf32>
    %431 = arith.addf %430, %6 : vector<2x8xf32>
    %cst_211 = arith.constant 0.000000e+00 : f32
    %432 = vector.broadcast %cst_211 : f32 to vector<2x4xf32>
    %c0_212 = arith.constant 0 : index
    %c0_213 = arith.constant 0 : index
    %433 = memref.load %arg9[%c0_212, %c0_213] : memref<1x8xf32, #tpu.memory_space<smem>>
    %434 = vector.extract_strided_slice %431 {offsets = [0, 0], sizes = [2, 1], strides = [1, 1]} : vector<2x8xf32> to vector<2x1xf32>
    %435 = vector.broadcast %434 : vector<2x1xf32> to vector<2x4xf32>
    %436 = arith.addf %435, %61 : vector<2x4xf32>
    %437 = math.tanh %436 : vector<2x4xf32>
    %438 = vector.broadcast %433 : f32 to vector<2x4xf32>
    %439 = arith.mulf %438, %437 : vector<2x4xf32>
    %440 = arith.addf %432, %439 : vector<2x4xf32>
    %c0_214 = arith.constant 0 : index
    %c1_215 = arith.constant 1 : index
    %441 = memref.load %arg9[%c0_214, %c1_215] : memref<1x8xf32, #tpu.memory_space<smem>>
    %442 = vector.extract_strided_slice %431 {offsets = [0, 1], sizes = [2, 1], strides = [1, 1]} : vector<2x8xf32> to vector<2x1xf32>
    %443 = vector.broadcast %442 : vector<2x1xf32> to vector<2x4xf32>
    %444 = arith.addf %443, %97 : vector<2x4xf32>
    %445 = math.tanh %444 : vector<2x4xf32>
    %446 = vector.broadcast %441 : f32 to vector<2x4xf32>
    %447 = arith.mulf %446, %445 : vector<2x4xf32>
    %448 = arith.addf %440, %447 : vector<2x4xf32>
    %c0_216 = arith.constant 0 : index
    %c2_217 = arith.constant 2 : index
    %449 = memref.load %arg9[%c0_216, %c2_217] : memref<1x8xf32, #tpu.memory_space<smem>>
    %450 = vector.extract_strided_slice %431 {offsets = [0, 2], sizes = [2, 1], strides = [1, 1]} : vector<2x8xf32> to vector<2x1xf32>
    %451 = vector.broadcast %450 : vector<2x1xf32> to vector<2x4xf32>
    %452 = arith.addf %451, %133 : vector<2x4xf32>
    %453 = math.tanh %452 : vector<2x4xf32>
    %454 = vector.broadcast %449 : f32 to vector<2x4xf32>
    %455 = arith.mulf %454, %453 : vector<2x4xf32>
    %456 = arith.addf %448, %455 : vector<2x4xf32>
    %c0_218 = arith.constant 0 : index
    %c3_219 = arith.constant 3 : index
    %457 = memref.load %arg9[%c0_218, %c3_219] : memref<1x8xf32, #tpu.memory_space<smem>>
    %458 = vector.extract_strided_slice %431 {offsets = [0, 3], sizes = [2, 1], strides = [1, 1]} : vector<2x8xf32> to vector<2x1xf32>
    %459 = vector.broadcast %458 : vector<2x1xf32> to vector<2x4xf32>
    %460 = arith.addf %459, %169 : vector<2x4xf32>
    %461 = math.tanh %460 : vector<2x4xf32>
    %462 = vector.broadcast %457 : f32 to vector<2x4xf32>
    %463 = arith.mulf %462, %461 : vector<2x4xf32>
    %464 = arith.addf %456, %463 : vector<2x4xf32>
    %c0_220 = arith.constant 0 : index
    %c4_221 = arith.constant 4 : index
    %465 = memref.load %arg9[%c0_220, %c4_221] : memref<1x8xf32, #tpu.memory_space<smem>>
    %466 = vector.extract_strided_slice %431 {offsets = [0, 4], sizes = [2, 1], strides = [1, 1]} : vector<2x8xf32> to vector<2x1xf32>
    %467 = vector.broadcast %466 : vector<2x1xf32> to vector<2x4xf32>
    %468 = arith.addf %467, %205 : vector<2x4xf32>
    %469 = math.tanh %468 : vector<2x4xf32>
    %470 = vector.broadcast %465 : f32 to vector<2x4xf32>
    %471 = arith.mulf %470, %469 : vector<2x4xf32>
    %472 = arith.addf %464, %471 : vector<2x4xf32>
    %c0_222 = arith.constant 0 : index
    %c5_223 = arith.constant 5 : index
    %473 = memref.load %arg9[%c0_222, %c5_223] : memref<1x8xf32, #tpu.memory_space<smem>>
    %474 = vector.extract_strided_slice %431 {offsets = [0, 5], sizes = [2, 1], strides = [1, 1]} : vector<2x8xf32> to vector<2x1xf32>
    %475 = vector.broadcast %474 : vector<2x1xf32> to vector<2x4xf32>
    %476 = arith.addf %475, %241 : vector<2x4xf32>
    %477 = math.tanh %476 : vector<2x4xf32>
    %478 = vector.broadcast %473 : f32 to vector<2x4xf32>
    %479 = arith.mulf %478, %477 : vector<2x4xf32>
    %480 = arith.addf %472, %479 : vector<2x4xf32>
    %c0_224 = arith.constant 0 : index
    %c6_225 = arith.constant 6 : index
    %481 = memref.load %arg9[%c0_224, %c6_225] : memref<1x8xf32, #tpu.memory_space<smem>>
    %482 = vector.extract_strided_slice %431 {offsets = [0, 6], sizes = [2, 1], strides = [1, 1]} : vector<2x8xf32> to vector<2x1xf32>
    %483 = vector.broadcast %482 : vector<2x1xf32> to vector<2x4xf32>
    %484 = arith.addf %483, %277 : vector<2x4xf32>
    %485 = math.tanh %484 : vector<2x4xf32>
    %486 = vector.broadcast %481 : f32 to vector<2x4xf32>
    %487 = arith.mulf %486, %485 : vector<2x4xf32>
    %488 = arith.addf %480, %487 : vector<2x4xf32>
    %c0_226 = arith.constant 0 : index
    %c7_227 = arith.constant 7 : index
    %489 = memref.load %arg9[%c0_226, %c7_227] : memref<1x8xf32, #tpu.memory_space<smem>>
    %490 = vector.extract_strided_slice %431 {offsets = [0, 7], sizes = [2, 1], strides = [1, 1]} : vector<2x8xf32> to vector<2x1xf32>
    %491 = vector.broadcast %490 : vector<2x1xf32> to vector<2x4xf32>
    %492 = arith.addf %491, %313 : vector<2x4xf32>
    %493 = math.tanh %492 : vector<2x4xf32>
    %494 = vector.broadcast %489 : f32 to vector<2x4xf32>
    %495 = arith.mulf %494, %493 : vector<2x4xf32>
    %496 = arith.addf %488, %495 : vector<2x4xf32>
    %497 = vector.broadcast %3 : f32 to vector<2x4xf32>
    %498 = arith.addf %496, %497 : vector<2x4xf32>
    %cst_228 = arith.constant dense<0xFF800000> : vector<2xf32>
    %499 = vector.multi_reduction <maximumf>, %498, %cst_228 [1] : vector<2x4xf32> to vector<2xf32>
    %500 = vector.shape_cast %499 : vector<2xf32> to vector<2x1xf32>
    %501 = vector.broadcast %500 : vector<2x1xf32> to vector<2x4xf32>
    %502 = arith.subf %498, %501 : vector<2x4xf32>
    %503 = math.exp %502 : vector<2x4xf32>
    %cst_229 = arith.constant dense<0.000000e+00> : vector<2xf32>
    %504 = vector.multi_reduction <add>, %503, %cst_229 [1] : vector<2x4xf32> to vector<2xf32>
    %505 = vector.shape_cast %504 : vector<2xf32> to vector<2x1xf32>
    %506 = vector.broadcast %505 : vector<2x1xf32> to vector<2x4xf32>
    %507 = arith.divf %503, %506 : vector<2x4xf32>
    %508 = arith.mulf %507, %13 : vector<2x4xf32>
    %509 = tpu.concatenate %508, %424 in 1 : vector<2x4xf32>, vector<2x32xf32> -> vector<2x36xf32>
    %cst_230 = arith.constant dense<0.000000e+00> : vector<2x128xf32>
    %510 = tpu.matmul %509, %2, %cst_230 {dimension_numbers = #tpu.dot_dimension_numbers<[1], [0], [0], [1], [0, 0, 1, 1], [], []>} : vector<2x36xf32>, vector<36x128xf32>, vector<2x128xf32> -> vector<2x128xf32>
    %511 = arith.addf %510, %9 : vector<2x128xf32>
    %512 = vector.extract_strided_slice %511 {offsets = [0, 0], sizes = [2, 32], strides = [1, 1]} : vector<2x128xf32> to vector<2x32xf32>
    %513 = arith.negf %512 : vector<2x32xf32>
    %514 = math.exp %513 : vector<2x32xf32>
    %cst_231 = arith.constant 1.000000e+00 : f32
    %515 = vector.broadcast %cst_231 : f32 to vector<2x32xf32>
    %516 = arith.addf %515, %514 : vector<2x32xf32>
    %517 = arith.divf %515, %516 : vector<2x32xf32>
    %518 = vector.extract_strided_slice %511 {offsets = [0, 32], sizes = [2, 32], strides = [1, 1]} : vector<2x128xf32> to vector<2x32xf32>
    %519 = arith.negf %518 : vector<2x32xf32>
    %520 = math.exp %519 : vector<2x32xf32>
    %cst_232 = arith.constant 1.000000e+00 : f32
    %521 = vector.broadcast %cst_232 : f32 to vector<2x32xf32>
    %522 = arith.addf %521, %520 : vector<2x32xf32>
    %523 = arith.divf %521, %522 : vector<2x32xf32>
    %524 = vector.extract_strided_slice %511 {offsets = [0, 64], sizes = [2, 32], strides = [1, 1]} : vector<2x128xf32> to vector<2x32xf32>
    %525 = math.tanh %524 : vector<2x32xf32>
    %526 = vector.extract_strided_slice %511 {offsets = [0, 96], sizes = [2, 32], strides = [1, 1]} : vector<2x128xf32> to vector<2x32xf32>
    %527 = arith.negf %526 : vector<2x32xf32>
    %528 = math.exp %527 : vector<2x32xf32>
    %cst_233 = arith.constant 1.000000e+00 : f32
    %529 = vector.broadcast %cst_233 : f32 to vector<2x32xf32>
    %530 = arith.addf %529, %528 : vector<2x32xf32>
    %531 = arith.divf %529, %530 : vector<2x32xf32>
    %532 = arith.mulf %523, %422 : vector<2x32xf32>
    %533 = arith.mulf %517, %525 : vector<2x32xf32>
    %534 = arith.addf %532, %533 : vector<2x32xf32>
    %535 = math.tanh %534 : vector<2x32xf32>
    %536 = arith.mulf %531, %535 : vector<2x32xf32>
    %c0_234 = arith.constant 0 : index
    %c1_235 = arith.constant 1 : index
    %c0_236 = arith.constant 0 : index
    %537 = vector.load %arg11[%c0_234, %c1_235, %c0_236] : memref<2x8x32xf32, #tpu.memory_space<vmem>>, vector<2x1x32xf32>
    %538 = vector.shape_cast %537 : vector<2x1x32xf32> to vector<2x32xf32>
    %539 = vector.shape_cast %536 : vector<2x32xf32> to vector<2x1x32xf32>
    tpu.vector_store %arg11[%c0_234, %c1_235, %c0_236], %539 {strides = array<i32>} : memref<2x8x32xf32, #tpu.memory_space<vmem>>, vector<2x1x32xf32>,
    %cst_237 = arith.constant dense<0.000000e+00> : vector<2x8xf32>
    %540 = tpu.matmul %536, %0, %cst_237 {dimension_numbers = #tpu.dot_dimension_numbers<[1], [1], [0], [0], [0, 0, 1, 0], [], []>} : vector<2x32xf32>, vector<8x32xf32>, vector<2x8xf32> -> vector<2x8xf32>
    %cst_238 = arith.constant dense<0.000000e+00> : vector<2x8xf32>
    %541 = tpu.matmul %534, %1, %cst_238 {dimension_numbers = #tpu.dot_dimension_numbers<[1], [1], [0], [0], [0, 0, 1, 0], [], []>} : vector<2x32xf32>, vector<8x32xf32>, vector<2x8xf32> -> vector<2x8xf32>
    %542 = arith.addf %540, %541 : vector<2x8xf32>
    %543 = arith.addf %542, %6 : vector<2x8xf32>
    %cst_239 = arith.constant 0.000000e+00 : f32
    %544 = vector.broadcast %cst_239 : f32 to vector<2x4xf32>
    %c0_240 = arith.constant 0 : index
    %c0_241 = arith.constant 0 : index
    %545 = memref.load %arg9[%c0_240, %c0_241] : memref<1x8xf32, #tpu.memory_space<smem>>
    %546 = vector.extract_strided_slice %543 {offsets = [0, 0], sizes = [2, 1], strides = [1, 1]} : vector<2x8xf32> to vector<2x1xf32>
    %547 = vector.broadcast %546 : vector<2x1xf32> to vector<2x4xf32>
    %548 = arith.addf %547, %61 : vector<2x4xf32>
    %549 = math.tanh %548 : vector<2x4xf32>
    %550 = vector.broadcast %545 : f32 to vector<2x4xf32>
    %551 = arith.mulf %550, %549 : vector<2x4xf32>
    %552 = arith.addf %544, %551 : vector<2x4xf32>
    %c0_242 = arith.constant 0 : index
    %c1_243 = arith.constant 1 : index
    %553 = memref.load %arg9[%c0_242, %c1_243] : memref<1x8xf32, #tpu.memory_space<smem>>
    %554 = vector.extract_strided_slice %543 {offsets = [0, 1], sizes = [2, 1], strides = [1, 1]} : vector<2x8xf32> to vector<2x1xf32>
    %555 = vector.broadcast %554 : vector<2x1xf32> to vector<2x4xf32>
    %556 = arith.addf %555, %97 : vector<2x4xf32>
    %557 = math.tanh %556 : vector<2x4xf32>
    %558 = vector.broadcast %553 : f32 to vector<2x4xf32>
    %559 = arith.mulf %558, %557 : vector<2x4xf32>
    %560 = arith.addf %552, %559 : vector<2x4xf32>
    %c0_244 = arith.constant 0 : index
    %c2_245 = arith.constant 2 : index
    %561 = memref.load %arg9[%c0_244, %c2_245] : memref<1x8xf32, #tpu.memory_space<smem>>
    %562 = vector.extract_strided_slice %543 {offsets = [0, 2], sizes = [2, 1], strides = [1, 1]} : vector<2x8xf32> to vector<2x1xf32>
    %563 = vector.broadcast %562 : vector<2x1xf32> to vector<2x4xf32>
    %564 = arith.addf %563, %133 : vector<2x4xf32>
    %565 = math.tanh %564 : vector<2x4xf32>
    %566 = vector.broadcast %561 : f32 to vector<2x4xf32>
    %567 = arith.mulf %566, %565 : vector<2x4xf32>
    %568 = arith.addf %560, %567 : vector<2x4xf32>
    %c0_246 = arith.constant 0 : index
    %c3_247 = arith.constant 3 : index
    %569 = memref.load %arg9[%c0_246, %c3_247] : memref<1x8xf32, #tpu.memory_space<smem>>
    %570 = vector.extract_strided_slice %543 {offsets = [0, 3], sizes = [2, 1], strides = [1, 1]} : vector<2x8xf32> to vector<2x1xf32>
    %571 = vector.broadcast %570 : vector<2x1xf32> to vector<2x4xf32>
    %572 = arith.addf %571, %169 : vector<2x4xf32>
    %573 = math.tanh %572 : vector<2x4xf32>
    %574 = vector.broadcast %569 : f32 to vector<2x4xf32>
    %575 = arith.mulf %574, %573 : vector<2x4xf32>
    %576 = arith.addf %568, %575 : vector<2x4xf32>
    %c0_248 = arith.constant 0 : index
    %c4_249 = arith.constant 4 : index
    %577 = memref.load %arg9[%c0_248, %c4_249] : memref<1x8xf32, #tpu.memory_space<smem>>
    %578 = vector.extract_strided_slice %543 {offsets = [0, 4], sizes = [2, 1], strides = [1, 1]} : vector<2x8xf32> to vector<2x1xf32>
    %579 = vector.broadcast %578 : vector<2x1xf32> to vector<2x4xf32>
    %580 = arith.addf %579, %205 : vector<2x4xf32>
    %581 = math.tanh %580 : vector<2x4xf32>
    %582 = vector.broadcast %577 : f32 to vector<2x4xf32>
    %583 = arith.mulf %582, %581 : vector<2x4xf32>
    %584 = arith.addf %576, %583 : vector<2x4xf32>
    %c0_250 = arith.constant 0 : index
    %c5_251 = arith.constant 5 : index
    %585 = memref.load %arg9[%c0_250, %c5_251] : memref<1x8xf32, #tpu.memory_space<smem>>
    %586 = vector.extract_strided_slice %543 {offsets = [0, 5], sizes = [2, 1], strides = [1, 1]} : vector<2x8xf32> to vector<2x1xf32>
    %587 = vector.broadcast %586 : vector<2x1xf32> to vector<2x4xf32>
    %588 = arith.addf %587, %241 : vector<2x4xf32>
    %589 = math.tanh %588 : vector<2x4xf32>
    %590 = vector.broadcast %585 : f32 to vector<2x4xf32>
    %591 = arith.mulf %590, %589 : vector<2x4xf32>
    %592 = arith.addf %584, %591 : vector<2x4xf32>
    %c0_252 = arith.constant 0 : index
    %c6_253 = arith.constant 6 : index
    %593 = memref.load %arg9[%c0_252, %c6_253] : memref<1x8xf32, #tpu.memory_space<smem>>
    %594 = vector.extract_strided_slice %543 {offsets = [0, 6], sizes = [2, 1], strides = [1, 1]} : vector<2x8xf32> to vector<2x1xf32>
    %595 = vector.broadcast %594 : vector<2x1xf32> to vector<2x4xf32>
    %596 = arith.addf %595, %277 : vector<2x4xf32>
    %597 = math.tanh %596 : vector<2x4xf32>
    %598 = vector.broadcast %593 : f32 to vector<2x4xf32>
    %599 = arith.mulf %598, %597 : vector<2x4xf32>
    %600 = arith.addf %592, %599 : vector<2x4xf32>
    %c0_254 = arith.constant 0 : index
    %c7_255 = arith.constant 7 : index
    %601 = memref.load %arg9[%c0_254, %c7_255] : memref<1x8xf32, #tpu.memory_space<smem>>
    %602 = vector.extract_strided_slice %543 {offsets = [0, 7], sizes = [2, 1], strides = [1, 1]} : vector<2x8xf32> to vector<2x1xf32>
    %603 = vector.broadcast %602 : vector<2x1xf32> to vector<2x4xf32>
    %604 = arith.addf %603, %313 : vector<2x4xf32>
    %605 = math.tanh %604 : vector<2x4xf32>
    %606 = vector.broadcast %601 : f32 to vector<2x4xf32>
    %607 = arith.mulf %606, %605 : vector<2x4xf32>
    %608 = arith.addf %600, %607 : vector<2x4xf32>
    %609 = vector.broadcast %3 : f32 to vector<2x4xf32>
    %610 = arith.addf %608, %609 : vector<2x4xf32>
    %cst_256 = arith.constant dense<0xFF800000> : vector<2xf32>
    %611 = vector.multi_reduction <maximumf>, %610, %cst_256 [1] : vector<2x4xf32> to vector<2xf32>
    %612 = vector.shape_cast %611 : vector<2xf32> to vector<2x1xf32>
    %613 = vector.broadcast %612 : vector<2x1xf32> to vector<2x4xf32>
    %614 = arith.subf %610, %613 : vector<2x4xf32>
    %615 = math.exp %614 : vector<2x4xf32>
    %cst_257 = arith.constant dense<0.000000e+00> : vector<2xf32>
    %616 = vector.multi_reduction <add>, %615, %cst_257 [1] : vector<2x4xf32> to vector<2xf32>
    %617 = vector.shape_cast %616 : vector<2xf32> to vector<2x1xf32>
    %618 = vector.broadcast %617 : vector<2x1xf32> to vector<2x4xf32>
    %619 = arith.divf %615, %618 : vector<2x4xf32>
    %620 = arith.mulf %619, %15 : vector<2x4xf32>
    %621 = tpu.concatenate %620, %536 in 1 : vector<2x4xf32>, vector<2x32xf32> -> vector<2x36xf32>
    %cst_258 = arith.constant dense<0.000000e+00> : vector<2x128xf32>
    %622 = tpu.matmul %621, %2, %cst_258 {dimension_numbers = #tpu.dot_dimension_numbers<[1], [0], [0], [1], [0, 0, 1, 1], [], []>} : vector<2x36xf32>, vector<36x128xf32>, vector<2x128xf32> -> vector<2x128xf32>
    %623 = arith.addf %622, %9 : vector<2x128xf32>
    %624 = vector.extract_strided_slice %623 {offsets = [0, 0], sizes = [2, 32], strides = [1, 1]} : vector<2x128xf32> to vector<2x32xf32>
    %625 = arith.negf %624 : vector<2x32xf32>
    %626 = math.exp %625 : vector<2x32xf32>
    %cst_259 = arith.constant 1.000000e+00 : f32
    %627 = vector.broadcast %cst_259 : f32 to vector<2x32xf32>
    %628 = arith.addf %627, %626 : vector<2x32xf32>
    %629 = arith.divf %627, %628 : vector<2x32xf32>
    %630 = vector.extract_strided_slice %623 {offsets = [0, 32], sizes = [2, 32], strides = [1, 1]} : vector<2x128xf32> to vector<2x32xf32>
    %631 = arith.negf %630 : vector<2x32xf32>
    %632 = math.exp %631 : vector<2x32xf32>
    %cst_260 = arith.constant 1.000000e+00 : f32
    %633 = vector.broadcast %cst_260 : f32 to vector<2x32xf32>
    %634 = arith.addf %633, %632 : vector<2x32xf32>
    %635 = arith.divf %633, %634 : vector<2x32xf32>
    %636 = vector.extract_strided_slice %623 {offsets = [0, 64], sizes = [2, 32], strides = [1, 1]} : vector<2x128xf32> to vector<2x32xf32>
    %637 = math.tanh %636 : vector<2x32xf32>
    %638 = vector.extract_strided_slice %623 {offsets = [0, 96], sizes = [2, 32], strides = [1, 1]} : vector<2x128xf32> to vector<2x32xf32>
    %639 = arith.negf %638 : vector<2x32xf32>
    %640 = math.exp %639 : vector<2x32xf32>
    %cst_261 = arith.constant 1.000000e+00 : f32
    %641 = vector.broadcast %cst_261 : f32 to vector<2x32xf32>
    %642 = arith.addf %641, %640 : vector<2x32xf32>
    %643 = arith.divf %641, %642 : vector<2x32xf32>
    %644 = arith.mulf %635, %534 : vector<2x32xf32>
    %645 = arith.mulf %629, %637 : vector<2x32xf32>
    %646 = arith.addf %644, %645 : vector<2x32xf32>
    %647 = math.tanh %646 : vector<2x32xf32>
    %648 = arith.mulf %643, %647 : vector<2x32xf32>
    %c0_262 = arith.constant 0 : index
    %c2_263 = arith.constant 2 : index
    %c0_264 = arith.constant 0 : index
    %649 = vector.load %arg11[%c0_262, %c2_263, %c0_264] : memref<2x8x32xf32, #tpu.memory_space<vmem>>, vector<2x1x32xf32>
    %650 = vector.shape_cast %649 : vector<2x1x32xf32> to vector<2x32xf32>
    %651 = vector.shape_cast %648 : vector<2x32xf32> to vector<2x1x32xf32>
    tpu.vector_store %arg11[%c0_262, %c2_263, %c0_264], %651 {strides = array<i32>} : memref<2x8x32xf32, #tpu.memory_space<vmem>>, vector<2x1x32xf32>,
    %cst_265 = arith.constant dense<0.000000e+00> : vector<2x8xf32>
    %652 = tpu.matmul %648, %0, %cst_265 {dimension_numbers = #tpu.dot_dimension_numbers<[1], [1], [0], [0], [0, 0, 1, 0], [], []>} : vector<2x32xf32>, vector<8x32xf32>, vector<2x8xf32> -> vector<2x8xf32>
    %cst_266 = arith.constant dense<0.000000e+00> : vector<2x8xf32>
    %653 = tpu.matmul %646, %1, %cst_266 {dimension_numbers = #tpu.dot_dimension_numbers<[1], [1], [0], [0], [0, 0, 1, 0], [], []>} : vector<2x32xf32>, vector<8x32xf32>, vector<2x8xf32> -> vector<2x8xf32>
    %654 = arith.addf %652, %653 : vector<2x8xf32>
    %655 = arith.addf %654, %6 : vector<2x8xf32>
    %cst_267 = arith.constant 0.000000e+00 : f32
    %656 = vector.broadcast %cst_267 : f32 to vector<2x4xf32>
    %c0_268 = arith.constant 0 : index
    %c0_269 = arith.constant 0 : index
    %657 = memref.load %arg9[%c0_268, %c0_269] : memref<1x8xf32, #tpu.memory_space<smem>>
    %658 = vector.extract_strided_slice %655 {offsets = [0, 0], sizes = [2, 1], strides = [1, 1]} : vector<2x8xf32> to vector<2x1xf32>
    %659 = vector.broadcast %658 : vector<2x1xf32> to vector<2x4xf32>
    %660 = arith.addf %659, %61 : vector<2x4xf32>
    %661 = math.tanh %660 : vector<2x4xf32>
    %662 = vector.broadcast %657 : f32 to vector<2x4xf32>
    %663 = arith.mulf %662, %661 : vector<2x4xf32>
    %664 = arith.addf %656, %663 : vector<2x4xf32>
    %c0_270 = arith.constant 0 : index
    %c1_271 = arith.constant 1 : index
    %665 = memref.load %arg9[%c0_270, %c1_271] : memref<1x8xf32, #tpu.memory_space<smem>>
    %666 = vector.extract_strided_slice %655 {offsets = [0, 1], sizes = [2, 1], strides = [1, 1]} : vector<2x8xf32> to vector<2x1xf32>
    %667 = vector.broadcast %666 : vector<2x1xf32> to vector<2x4xf32>
    %668 = arith.addf %667, %97 : vector<2x4xf32>
    %669 = math.tanh %668 : vector<2x4xf32>
    %670 = vector.broadcast %665 : f32 to vector<2x4xf32>
    %671 = arith.mulf %670, %669 : vector<2x4xf32>
    %672 = arith.addf %664, %671 : vector<2x4xf32>
    %c0_272 = arith.constant 0 : index
    %c2_273 = arith.constant 2 : index
    %673 = memref.load %arg9[%c0_272, %c2_273] : memref<1x8xf32, #tpu.memory_space<smem>>
    %674 = vector.extract_strided_slice %655 {offsets = [0, 2], sizes = [2, 1], strides = [1, 1]} : vector<2x8xf32> to vector<2x1xf32>
    %675 = vector.broadcast %674 : vector<2x1xf32> to vector<2x4xf32>
    %676 = arith.addf %675, %133 : vector<2x4xf32>
    %677 = math.tanh %676 : vector<2x4xf32>
    %678 = vector.broadcast %673 : f32 to vector<2x4xf32>
    %679 = arith.mulf %678, %677 : vector<2x4xf32>
    %680 = arith.addf %672, %679 : vector<2x4xf32>
    %c0_274 = arith.constant 0 : index
    %c3_275 = arith.constant 3 : index
    %681 = memref.load %arg9[%c0_274, %c3_275] : memref<1x8xf32, #tpu.memory_space<smem>>
    %682 = vector.extract_strided_slice %655 {offsets = [0, 3], sizes = [2, 1], strides = [1, 1]} : vector<2x8xf32> to vector<2x1xf32>
    %683 = vector.broadcast %682 : vector<2x1xf32> to vector<2x4xf32>
    %684 = arith.addf %683, %169 : vector<2x4xf32>
    %685 = math.tanh %684 : vector<2x4xf32>
    %686 = vector.broadcast %681 : f32 to vector<2x4xf32>
    %687 = arith.mulf %686, %685 : vector<2x4xf32>
    %688 = arith.addf %680, %687 : vector<2x4xf32>
    %c0_276 = arith.constant 0 : index
    %c4_277 = arith.constant 4 : index
    %689 = memref.load %arg9[%c0_276, %c4_277] : memref<1x8xf32, #tpu.memory_space<smem>>
    %690 = vector.extract_strided_slice %655 {offsets = [0, 4], sizes = [2, 1], strides = [1, 1]} : vector<2x8xf32> to vector<2x1xf32>
    %691 = vector.broadcast %690 : vector<2x1xf32> to vector<2x4xf32>
    %692 = arith.addf %691, %205 : vector<2x4xf32>
    %693 = math.tanh %692 : vector<2x4xf32>
    %694 = vector.broadcast %689 : f32 to vector<2x4xf32>
    %695 = arith.mulf %694, %693 : vector<2x4xf32>
    %696 = arith.addf %688, %695 : vector<2x4xf32>
    %c0_278 = arith.constant 0 : index
    %c5_279 = arith.constant 5 : index
    %697 = memref.load %arg9[%c0_278, %c5_279] : memref<1x8xf32, #tpu.memory_space<smem>>
    %698 = vector.extract_strided_slice %655 {offsets = [0, 5], sizes = [2, 1], strides = [1, 1]} : vector<2x8xf32> to vector<2x1xf32>
    %699 = vector.broadcast %698 : vector<2x1xf32> to vector<2x4xf32>
    %700 = arith.addf %699, %241 : vector<2x4xf32>
    %701 = math.tanh %700 : vector<2x4xf32>
    %702 = vector.broadcast %697 : f32 to vector<2x4xf32>
    %703 = arith.mulf %702, %701 : vector<2x4xf32>
    %704 = arith.addf %696, %703 : vector<2x4xf32>
    %c0_280 = arith.constant 0 : index
    %c6_281 = arith.constant 6 : index
    %705 = memref.load %arg9[%c0_280, %c6_281] : memref<1x8xf32, #tpu.memory_space<smem>>
    %706 = vector.extract_strided_slice %655 {offsets = [0, 6], sizes = [2, 1], strides = [1, 1]} : vector<2x8xf32> to vector<2x1xf32>
    %707 = vector.broadcast %706 : vector<2x1xf32> to vector<2x4xf32>
    %708 = arith.addf %707, %277 : vector<2x4xf32>
    %709 = math.tanh %708 : vector<2x4xf32>
    %710 = vector.broadcast %705 : f32 to vector<2x4xf32>
    %711 = arith.mulf %710, %709 : vector<2x4xf32>
    %712 = arith.addf %704, %711 : vector<2x4xf32>
    %c0_282 = arith.constant 0 : index
    %c7_283 = arith.constant 7 : index
    %713 = memref.load %arg9[%c0_282, %c7_283] : memref<1x8xf32, #tpu.memory_space<smem>>
    %714 = vector.extract_strided_slice %655 {offsets = [0, 7], sizes = [2, 1], strides = [1, 1]} : vector<2x8xf32> to vector<2x1xf32>
    %715 = vector.broadcast %714 : vector<2x1xf32> to vector<2x4xf32>
    %716 = arith.addf %715, %313 : vector<2x4xf32>
    %717 = math.tanh %716 : vector<2x4xf32>
    %718 = vector.broadcast %713 : f32 to vector<2x4xf32>
    %719 = arith.mulf %718, %717 : vector<2x4xf32>
    %720 = arith.addf %712, %719 : vector<2x4xf32>
    %721 = vector.broadcast %3 : f32 to vector<2x4xf32>
    %722 = arith.addf %720, %721 : vector<2x4xf32>
    %cst_284 = arith.constant dense<0xFF800000> : vector<2xf32>
    %723 = vector.multi_reduction <maximumf>, %722, %cst_284 [1] : vector<2x4xf32> to vector<2xf32>
    %724 = vector.shape_cast %723 : vector<2xf32> to vector<2x1xf32>
    %725 = vector.broadcast %724 : vector<2x1xf32> to vector<2x4xf32>
    %726 = arith.subf %722, %725 : vector<2x4xf32>
    %727 = math.exp %726 : vector<2x4xf32>
    %cst_285 = arith.constant dense<0.000000e+00> : vector<2xf32>
    %728 = vector.multi_reduction <add>, %727, %cst_285 [1] : vector<2x4xf32> to vector<2xf32>
    %729 = vector.shape_cast %728 : vector<2xf32> to vector<2x1xf32>
    %730 = vector.broadcast %729 : vector<2x1xf32> to vector<2x4xf32>
    %731 = arith.divf %727, %730 : vector<2x4xf32>
    %732 = arith.mulf %731, %17 : vector<2x4xf32>
    %733 = tpu.concatenate %732, %648 in 1 : vector<2x4xf32>, vector<2x32xf32> -> vector<2x36xf32>
    %cst_286 = arith.constant dense<0.000000e+00> : vector<2x128xf32>
    %734 = tpu.matmul %733, %2, %cst_286 {dimension_numbers = #tpu.dot_dimension_numbers<[1], [0], [0], [1], [0, 0, 1, 1], [], []>} : vector<2x36xf32>, vector<36x128xf32>, vector<2x128xf32> -> vector<2x128xf32>
    %735 = arith.addf %734, %9 : vector<2x128xf32>
    %736 = vector.extract_strided_slice %735 {offsets = [0, 0], sizes = [2, 32], strides = [1, 1]} : vector<2x128xf32> to vector<2x32xf32>
    %737 = arith.negf %736 : vector<2x32xf32>
    %738 = math.exp %737 : vector<2x32xf32>
    %cst_287 = arith.constant 1.000000e+00 : f32
    %739 = vector.broadcast %cst_287 : f32 to vector<2x32xf32>
    %740 = arith.addf %739, %738 : vector<2x32xf32>
    %741 = arith.divf %739, %740 : vector<2x32xf32>
    %742 = vector.extract_strided_slice %735 {offsets = [0, 32], sizes = [2, 32], strides = [1, 1]} : vector<2x128xf32> to vector<2x32xf32>
    %743 = arith.negf %742 : vector<2x32xf32>
    %744 = math.exp %743 : vector<2x32xf32>
    %cst_288 = arith.constant 1.000000e+00 : f32
    %745 = vector.broadcast %cst_288 : f32 to vector<2x32xf32>
    %746 = arith.addf %745, %744 : vector<2x32xf32>
    %747 = arith.divf %745, %746 : vector<2x32xf32>
    %748 = vector.extract_strided_slice %735 {offsets = [0, 64], sizes = [2, 32], strides = [1, 1]} : vector<2x128xf32> to vector<2x32xf32>
    %749 = math.tanh %748 : vector<2x32xf32>
    %750 = vector.extract_strided_slice %735 {offsets = [0, 96], sizes = [2, 32], strides = [1, 1]} : vector<2x128xf32> to vector<2x32xf32>
    %751 = arith.negf %750 : vector<2x32xf32>
    %752 = math.exp %751 : vector<2x32xf32>
    %cst_289 = arith.constant 1.000000e+00 : f32
    %753 = vector.broadcast %cst_289 : f32 to vector<2x32xf32>
    %754 = arith.addf %753, %752 : vector<2x32xf32>
    %755 = arith.divf %753, %754 : vector<2x32xf32>
    %756 = arith.mulf %747, %646 : vector<2x32xf32>
    %757 = arith.mulf %741, %749 : vector<2x32xf32>
    %758 = arith.addf %756, %757 : vector<2x32xf32>
    %759 = math.tanh %758 : vector<2x32xf32>
    %760 = arith.mulf %755, %759 : vector<2x32xf32>
    %c0_290 = arith.constant 0 : index
    %c3_291 = arith.constant 3 : index
    %c0_292 = arith.constant 0 : index
    %761 = vector.load %arg11[%c0_290, %c3_291, %c0_292] : memref<2x8x32xf32, #tpu.memory_space<vmem>>, vector<2x1x32xf32>
    %762 = vector.shape_cast %761 : vector<2x1x32xf32> to vector<2x32xf32>
    %763 = vector.shape_cast %760 : vector<2x32xf32> to vector<2x1x32xf32>
    tpu.vector_store %arg11[%c0_290, %c3_291, %c0_292], %763 {strides = array<i32>} : memref<2x8x32xf32, #tpu.memory_space<vmem>>, vector<2x1x32xf32>,
    %cst_293 = arith.constant dense<0.000000e+00> : vector<2x8xf32>
    %764 = tpu.matmul %760, %0, %cst_293 {dimension_numbers = #tpu.dot_dimension_numbers<[1], [1], [0], [0], [0, 0, 1, 0], [], []>} : vector<2x32xf32>, vector<8x32xf32>, vector<2x8xf32> -> vector<2x8xf32>
    %cst_294 = arith.constant dense<0.000000e+00> : vector<2x8xf32>
    %765 = tpu.matmul %758, %1, %cst_294 {dimension_numbers = #tpu.dot_dimension_numbers<[1], [1], [0], [0], [0, 0, 1, 0], [], []>} : vector<2x32xf32>, vector<8x32xf32>, vector<2x8xf32> -> vector<2x8xf32>
    %766 = arith.addf %764, %765 : vector<2x8xf32>
    %767 = arith.addf %766, %6 : vector<2x8xf32>
    %cst_295 = arith.constant 0.000000e+00 : f32
    %768 = vector.broadcast %cst_295 : f32 to vector<2x4xf32>
    %c0_296 = arith.constant 0 : index
    %c0_297 = arith.constant 0 : index
    %769 = memref.load %arg9[%c0_296, %c0_297] : memref<1x8xf32, #tpu.memory_space<smem>>
    %770 = vector.extract_strided_slice %767 {offsets = [0, 0], sizes = [2, 1], strides = [1, 1]} : vector<2x8xf32> to vector<2x1xf32>
    %771 = vector.broadcast %770 : vector<2x1xf32> to vector<2x4xf32>
    %772 = arith.addf %771, %61 : vector<2x4xf32>
    %773 = math.tanh %772 : vector<2x4xf32>
    %774 = vector.broadcast %769 : f32 to vector<2x4xf32>
    %775 = arith.mulf %774, %773 : vector<2x4xf32>
    %776 = arith.addf %768, %775 : vector<2x4xf32>
    %c0_298 = arith.constant 0 : index
    %c1_299 = arith.constant 1 : index
    %777 = memref.load %arg9[%c0_298, %c1_299] : memref<1x8xf32, #tpu.memory_space<smem>>
    %778 = vector.extract_strided_slice %767 {offsets = [0, 1], sizes = [2, 1], strides = [1, 1]} : vector<2x8xf32> to vector<2x1xf32>
    %779 = vector.broadcast %778 : vector<2x1xf32> to vector<2x4xf32>
    %780 = arith.addf %779, %97 : vector<2x4xf32>
    %781 = math.tanh %780 : vector<2x4xf32>
    %782 = vector.broadcast %777 : f32 to vector<2x4xf32>
    %783 = arith.mulf %782, %781 : vector<2x4xf32>
    %784 = arith.addf %776, %783 : vector<2x4xf32>
    %c0_300 = arith.constant 0 : index
    %c2_301 = arith.constant 2 : index
    %785 = memref.load %arg9[%c0_300, %c2_301] : memref<1x8xf32, #tpu.memory_space<smem>>
    %786 = vector.extract_strided_slice %767 {offsets = [0, 2], sizes = [2, 1], strides = [1, 1]} : vector<2x8xf32> to vector<2x1xf32>
    %787 = vector.broadcast %786 : vector<2x1xf32> to vector<2x4xf32>
    %788 = arith.addf %787, %133 : vector<2x4xf32>
    %789 = math.tanh %788 : vector<2x4xf32>
    %790 = vector.broadcast %785 : f32 to vector<2x4xf32>
    %791 = arith.mulf %790, %789 : vector<2x4xf32>
    %792 = arith.addf %784, %791 : vector<2x4xf32>
    %c0_302 = arith.constant 0 : index
    %c3_303 = arith.constant 3 : index
    %793 = memref.load %arg9[%c0_302, %c3_303] : memref<1x8xf32, #tpu.memory_space<smem>>
    %794 = vector.extract_strided_slice %767 {offsets = [0, 3], sizes = [2, 1], strides = [1, 1]} : vector<2x8xf32> to vector<2x1xf32>
    %795 = vector.broadcast %794 : vector<2x1xf32> to vector<2x4xf32>
    %796 = arith.addf %795, %169 : vector<2x4xf32>
    %797 = math.tanh %796 : vector<2x4xf32>
    %798 = vector.broadcast %793 : f32 to vector<2x4xf32>
    %799 = arith.mulf %798, %797 : vector<2x4xf32>
    %800 = arith.addf %792, %799 : vector<2x4xf32>
    %c0_304 = arith.constant 0 : index
    %c4_305 = arith.constant 4 : index
    %801 = memref.load %arg9[%c0_304, %c4_305] : memref<1x8xf32, #tpu.memory_space<smem>>
    %802 = vector.extract_strided_slice %767 {offsets = [0, 4], sizes = [2, 1], strides = [1, 1]} : vector<2x8xf32> to vector<2x1xf32>
    %803 = vector.broadcast %802 : vector<2x1xf32> to vector<2x4xf32>
    %804 = arith.addf %803, %205 : vector<2x4xf32>
    %805 = math.tanh %804 : vector<2x4xf32>
    %806 = vector.broadcast %801 : f32 to vector<2x4xf32>
    %807 = arith.mulf %806, %805 : vector<2x4xf32>
    %808 = arith.addf %800, %807 : vector<2x4xf32>
    %c0_306 = arith.constant 0 : index
    %c5_307 = arith.constant 5 : index
    %809 = memref.load %arg9[%c0_306, %c5_307] : memref<1x8xf32, #tpu.memory_space<smem>>
    %810 = vector.extract_strided_slice %767 {offsets = [0, 5], sizes = [2, 1], strides = [1, 1]} : vector<2x8xf32> to vector<2x1xf32>
    %811 = vector.broadcast %810 : vector<2x1xf32> to vector<2x4xf32>
    %812 = arith.addf %811, %241 : vector<2x4xf32>
    %813 = math.tanh %812 : vector<2x4xf32>
    %814 = vector.broadcast %809 : f32 to vector<2x4xf32>
    %815 = arith.mulf %814, %813 : vector<2x4xf32>
    %816 = arith.addf %808, %815 : vector<2x4xf32>
    %c0_308 = arith.constant 0 : index
    %c6_309 = arith.constant 6 : index
    %817 = memref.load %arg9[%c0_308, %c6_309] : memref<1x8xf32, #tpu.memory_space<smem>>
    %818 = vector.extract_strided_slice %767 {offsets = [0, 6], sizes = [2, 1], strides = [1, 1]} : vector<2x8xf32> to vector<2x1xf32>
    %819 = vector.broadcast %818 : vector<2x1xf32> to vector<2x4xf32>
    %820 = arith.addf %819, %277 : vector<2x4xf32>
    %821 = math.tanh %820 : vector<2x4xf32>
    %822 = vector.broadcast %817 : f32 to vector<2x4xf32>
    %823 = arith.mulf %822, %821 : vector<2x4xf32>
    %824 = arith.addf %816, %823 : vector<2x4xf32>
    %c0_310 = arith.constant 0 : index
    %c7_311 = arith.constant 7 : index
    %825 = memref.load %arg9[%c0_310, %c7_311] : memref<1x8xf32, #tpu.memory_space<smem>>
    %826 = vector.extract_strided_slice %767 {offsets = [0, 7], sizes = [2, 1], strides = [1, 1]} : vector<2x8xf32> to vector<2x1xf32>
    %827 = vector.broadcast %826 : vector<2x1xf32> to vector<2x4xf32>
    %828 = arith.addf %827, %313 : vector<2x4xf32>
    %829 = math.tanh %828 : vector<2x4xf32>
    %830 = vector.broadcast %825 : f32 to vector<2x4xf32>
    %831 = arith.mulf %830, %829 : vector<2x4xf32>
    %832 = arith.addf %824, %831 : vector<2x4xf32>
    %833 = vector.broadcast %3 : f32 to vector<2x4xf32>
    %834 = arith.addf %832, %833 : vector<2x4xf32>
    %cst_312 = arith.constant dense<0xFF800000> : vector<2xf32>
    %835 = vector.multi_reduction <maximumf>, %834, %cst_312 [1] : vector<2x4xf32> to vector<2xf32>
    %836 = vector.shape_cast %835 : vector<2xf32> to vector<2x1xf32>
    %837 = vector.broadcast %836 : vector<2x1xf32> to vector<2x4xf32>
    %838 = arith.subf %834, %837 : vector<2x4xf32>
    %839 = math.exp %838 : vector<2x4xf32>
    %cst_313 = arith.constant dense<0.000000e+00> : vector<2xf32>
    %840 = vector.multi_reduction <add>, %839, %cst_313 [1] : vector<2x4xf32> to vector<2xf32>
    %841 = vector.shape_cast %840 : vector<2xf32> to vector<2x1xf32>
    %842 = vector.broadcast %841 : vector<2x1xf32> to vector<2x4xf32>
    %843 = arith.divf %839, %842 : vector<2x4xf32>
    %844 = arith.mulf %843, %19 : vector<2x4xf32>
    %845 = tpu.concatenate %844, %760 in 1 : vector<2x4xf32>, vector<2x32xf32> -> vector<2x36xf32>
    %cst_314 = arith.constant dense<0.000000e+00> : vector<2x128xf32>
    %846 = tpu.matmul %845, %2, %cst_314 {dimension_numbers = #tpu.dot_dimension_numbers<[1], [0], [0], [1], [0, 0, 1, 1], [], []>} : vector<2x36xf32>, vector<36x128xf32>, vector<2x128xf32> -> vector<2x128xf32>
    %847 = arith.addf %846, %9 : vector<2x128xf32>
    %848 = vector.extract_strided_slice %847 {offsets = [0, 0], sizes = [2, 32], strides = [1, 1]} : vector<2x128xf32> to vector<2x32xf32>
    %849 = arith.negf %848 : vector<2x32xf32>
    %850 = math.exp %849 : vector<2x32xf32>
    %cst_315 = arith.constant 1.000000e+00 : f32
    %851 = vector.broadcast %cst_315 : f32 to vector<2x32xf32>
    %852 = arith.addf %851, %850 : vector<2x32xf32>
    %853 = arith.divf %851, %852 : vector<2x32xf32>
    %854 = vector.extract_strided_slice %847 {offsets = [0, 32], sizes = [2, 32], strides = [1, 1]} : vector<2x128xf32> to vector<2x32xf32>
    %855 = arith.negf %854 : vector<2x32xf32>
    %856 = math.exp %855 : vector<2x32xf32>
    %cst_316 = arith.constant 1.000000e+00 : f32
    %857 = vector.broadcast %cst_316 : f32 to vector<2x32xf32>
    %858 = arith.addf %857, %856 : vector<2x32xf32>
    %859 = arith.divf %857, %858 : vector<2x32xf32>
    %860 = vector.extract_strided_slice %847 {offsets = [0, 64], sizes = [2, 32], strides = [1, 1]} : vector<2x128xf32> to vector<2x32xf32>
    %861 = math.tanh %860 : vector<2x32xf32>
    %862 = vector.extract_strided_slice %847 {offsets = [0, 96], sizes = [2, 32], strides = [1, 1]} : vector<2x128xf32> to vector<2x32xf32>
    %863 = arith.negf %862 : vector<2x32xf32>
    %864 = math.exp %863 : vector<2x32xf32>
    %cst_317 = arith.constant 1.000000e+00 : f32
    %865 = vector.broadcast %cst_317 : f32 to vector<2x32xf32>
    %866 = arith.addf %865, %864 : vector<2x32xf32>
    %867 = arith.divf %865, %866 : vector<2x32xf32>
    %868 = arith.mulf %859, %758 : vector<2x32xf32>
    %869 = arith.mulf %853, %861 : vector<2x32xf32>
    %870 = arith.addf %868, %869 : vector<2x32xf32>
    %871 = math.tanh %870 : vector<2x32xf32>
    %872 = arith.mulf %867, %871 : vector<2x32xf32>
    %c0_318 = arith.constant 0 : index
    %c4_319 = arith.constant 4 : index
    %c0_320 = arith.constant 0 : index
    %873 = vector.load %arg11[%c0_318, %c4_319, %c0_320] : memref<2x8x32xf32, #tpu.memory_space<vmem>>, vector<2x1x32xf32>
    %874 = vector.shape_cast %873 : vector<2x1x32xf32> to vector<2x32xf32>
    %875 = vector.shape_cast %872 : vector<2x32xf32> to vector<2x1x32xf32>
    tpu.vector_store %arg11[%c0_318, %c4_319, %c0_320], %875 {strides = array<i32>} : memref<2x8x32xf32, #tpu.memory_space<vmem>>, vector<2x1x32xf32>,
    %cst_321 = arith.constant dense<0.000000e+00> : vector<2x8xf32>
    %876 = tpu.matmul %872, %0, %cst_321 {dimension_numbers = #tpu.dot_dimension_numbers<[1], [1], [0], [0], [0, 0, 1, 0], [], []>} : vector<2x32xf32>, vector<8x32xf32>, vector<2x8xf32> -> vector<2x8xf32>
    %cst_322 = arith.constant dense<0.000000e+00> : vector<2x8xf32>
    %877 = tpu.matmul %870, %1, %cst_322 {dimension_numbers = #tpu.dot_dimension_numbers<[1], [1], [0], [0], [0, 0, 1, 0], [], []>} : vector<2x32xf32>, vector<8x32xf32>, vector<2x8xf32> -> vector<2x8xf32>
    %878 = arith.addf %876, %877 : vector<2x8xf32>
    %879 = arith.addf %878, %6 : vector<2x8xf32>
    %cst_323 = arith.constant 0.000000e+00 : f32
    %880 = vector.broadcast %cst_323 : f32 to vector<2x4xf32>
    %c0_324 = arith.constant 0 : index
    %c0_325 = arith.constant 0 : index
    %881 = memref.load %arg9[%c0_324, %c0_325] : memref<1x8xf32, #tpu.memory_space<smem>>
    %882 = vector.extract_strided_slice %879 {offsets = [0, 0], sizes = [2, 1], strides = [1, 1]} : vector<2x8xf32> to vector<2x1xf32>
    %883 = vector.broadcast %882 : vector<2x1xf32> to vector<2x4xf32>
    %884 = arith.addf %883, %61 : vector<2x4xf32>
    %885 = math.tanh %884 : vector<2x4xf32>
    %886 = vector.broadcast %881 : f32 to vector<2x4xf32>
    %887 = arith.mulf %886, %885 : vector<2x4xf32>
    %888 = arith.addf %880, %887 : vector<2x4xf32>
    %c0_326 = arith.constant 0 : index
    %c1_327 = arith.constant 1 : index
    %889 = memref.load %arg9[%c0_326, %c1_327] : memref<1x8xf32, #tpu.memory_space<smem>>
    %890 = vector.extract_strided_slice %879 {offsets = [0, 1], sizes = [2, 1], strides = [1, 1]} : vector<2x8xf32> to vector<2x1xf32>
    %891 = vector.broadcast %890 : vector<2x1xf32> to vector<2x4xf32>
    %892 = arith.addf %891, %97 : vector<2x4xf32>
    %893 = math.tanh %892 : vector<2x4xf32>
    %894 = vector.broadcast %889 : f32 to vector<2x4xf32>
    %895 = arith.mulf %894, %893 : vector<2x4xf32>
    %896 = arith.addf %888, %895 : vector<2x4xf32>
    %c0_328 = arith.constant 0 : index
    %c2_329 = arith.constant 2 : index
    %897 = memref.load %arg9[%c0_328, %c2_329] : memref<1x8xf32, #tpu.memory_space<smem>>
    %898 = vector.extract_strided_slice %879 {offsets = [0, 2], sizes = [2, 1], strides = [1, 1]} : vector<2x8xf32> to vector<2x1xf32>
    %899 = vector.broadcast %898 : vector<2x1xf32> to vector<2x4xf32>
    %900 = arith.addf %899, %133 : vector<2x4xf32>
    %901 = math.tanh %900 : vector<2x4xf32>
    %902 = vector.broadcast %897 : f32 to vector<2x4xf32>
    %903 = arith.mulf %902, %901 : vector<2x4xf32>
    %904 = arith.addf %896, %903 : vector<2x4xf32>
    %c0_330 = arith.constant 0 : index
    %c3_331 = arith.constant 3 : index
    %905 = memref.load %arg9[%c0_330, %c3_331] : memref<1x8xf32, #tpu.memory_space<smem>>
    %906 = vector.extract_strided_slice %879 {offsets = [0, 3], sizes = [2, 1], strides = [1, 1]} : vector<2x8xf32> to vector<2x1xf32>
    %907 = vector.broadcast %906 : vector<2x1xf32> to vector<2x4xf32>
    %908 = arith.addf %907, %169 : vector<2x4xf32>
    %909 = math.tanh %908 : vector<2x4xf32>
    %910 = vector.broadcast %905 : f32 to vector<2x4xf32>
    %911 = arith.mulf %910, %909 : vector<2x4xf32>
    %912 = arith.addf %904, %911 : vector<2x4xf32>
    %c0_332 = arith.constant 0 : index
    %c4_333 = arith.constant 4 : index
    %913 = memref.load %arg9[%c0_332, %c4_333] : memref<1x8xf32, #tpu.memory_space<smem>>
    %914 = vector.extract_strided_slice %879 {offsets = [0, 4], sizes = [2, 1], strides = [1, 1]} : vector<2x8xf32> to vector<2x1xf32>
    %915 = vector.broadcast %914 : vector<2x1xf32> to vector<2x4xf32>
    %916 = arith.addf %915, %205 : vector<2x4xf32>
    %917 = math.tanh %916 : vector<2x4xf32>
    %918 = vector.broadcast %913 : f32 to vector<2x4xf32>
    %919 = arith.mulf %918, %917 : vector<2x4xf32>
    %920 = arith.addf %912, %919 : vector<2x4xf32>
    %c0_334 = arith.constant 0 : index
    %c5_335 = arith.constant 5 : index
    %921 = memref.load %arg9[%c0_334, %c5_335] : memref<1x8xf32, #tpu.memory_space<smem>>
    %922 = vector.extract_strided_slice %879 {offsets = [0, 5], sizes = [2, 1], strides = [1, 1]} : vector<2x8xf32> to vector<2x1xf32>
    %923 = vector.broadcast %922 : vector<2x1xf32> to vector<2x4xf32>
    %924 = arith.addf %923, %241 : vector<2x4xf32>
    %925 = math.tanh %924 : vector<2x4xf32>
    %926 = vector.broadcast %921 : f32 to vector<2x4xf32>
    %927 = arith.mulf %926, %925 : vector<2x4xf32>
    %928 = arith.addf %920, %927 : vector<2x4xf32>
    %c0_336 = arith.constant 0 : index
    %c6_337 = arith.constant 6 : index
    %929 = memref.load %arg9[%c0_336, %c6_337] : memref<1x8xf32, #tpu.memory_space<smem>>
    %930 = vector.extract_strided_slice %879 {offsets = [0, 6], sizes = [2, 1], strides = [1, 1]} : vector<2x8xf32> to vector<2x1xf32>
    %931 = vector.broadcast %930 : vector<2x1xf32> to vector<2x4xf32>
    %932 = arith.addf %931, %277 : vector<2x4xf32>
    %933 = math.tanh %932 : vector<2x4xf32>
    %934 = vector.broadcast %929 : f32 to vector<2x4xf32>
    %935 = arith.mulf %934, %933 : vector<2x4xf32>
    %936 = arith.addf %928, %935 : vector<2x4xf32>
    %c0_338 = arith.constant 0 : index
    %c7_339 = arith.constant 7 : index
    %937 = memref.load %arg9[%c0_338, %c7_339] : memref<1x8xf32, #tpu.memory_space<smem>>
    %938 = vector.extract_strided_slice %879 {offsets = [0, 7], sizes = [2, 1], strides = [1, 1]} : vector<2x8xf32> to vector<2x1xf32>
    %939 = vector.broadcast %938 : vector<2x1xf32> to vector<2x4xf32>
    %940 = arith.addf %939, %313 : vector<2x4xf32>
    %941 = math.tanh %940 : vector<2x4xf32>
    %942 = vector.broadcast %937 : f32 to vector<2x4xf32>
    %943 = arith.mulf %942, %941 : vector<2x4xf32>
    %944 = arith.addf %936, %943 : vector<2x4xf32>
    %945 = vector.broadcast %3 : f32 to vector<2x4xf32>
    %946 = arith.addf %944, %945 : vector<2x4xf32>
    %cst_340 = arith.constant dense<0xFF800000> : vector<2xf32>
    %947 = vector.multi_reduction <maximumf>, %946, %cst_340 [1] : vector<2x4xf32> to vector<2xf32>
    %948 = vector.shape_cast %947 : vector<2xf32> to vector<2x1xf32>
    %949 = vector.broadcast %948 : vector<2x1xf32> to vector<2x4xf32>
    %950 = arith.subf %946, %949 : vector<2x4xf32>
    %951 = math.exp %950 : vector<2x4xf32>
    %cst_341 = arith.constant dense<0.000000e+00> : vector<2xf32>
    %952 = vector.multi_reduction <add>, %951, %cst_341 [1] : vector<2x4xf32> to vector<2xf32>
    %953 = vector.shape_cast %952 : vector<2xf32> to vector<2x1xf32>
    %954 = vector.broadcast %953 : vector<2x1xf32> to vector<2x4xf32>
    %955 = arith.divf %951, %954 : vector<2x4xf32>
    %956 = arith.mulf %955, %21 : vector<2x4xf32>
    %957 = tpu.concatenate %956, %872 in 1 : vector<2x4xf32>, vector<2x32xf32> -> vector<2x36xf32>
    %cst_342 = arith.constant dense<0.000000e+00> : vector<2x128xf32>
    %958 = tpu.matmul %957, %2, %cst_342 {dimension_numbers = #tpu.dot_dimension_numbers<[1], [0], [0], [1], [0, 0, 1, 1], [], []>} : vector<2x36xf32>, vector<36x128xf32>, vector<2x128xf32> -> vector<2x128xf32>
    %959 = arith.addf %958, %9 : vector<2x128xf32>
    %960 = vector.extract_strided_slice %959 {offsets = [0, 0], sizes = [2, 32], strides = [1, 1]} : vector<2x128xf32> to vector<2x32xf32>
    %961 = arith.negf %960 : vector<2x32xf32>
    %962 = math.exp %961 : vector<2x32xf32>
    %cst_343 = arith.constant 1.000000e+00 : f32
    %963 = vector.broadcast %cst_343 : f32 to vector<2x32xf32>
    %964 = arith.addf %963, %962 : vector<2x32xf32>
    %965 = arith.divf %963, %964 : vector<2x32xf32>
    %966 = vector.extract_strided_slice %959 {offsets = [0, 32], sizes = [2, 32], strides = [1, 1]} : vector<2x128xf32> to vector<2x32xf32>
    %967 = arith.negf %966 : vector<2x32xf32>
    %968 = math.exp %967 : vector<2x32xf32>
    %cst_344 = arith.constant 1.000000e+00 : f32
    %969 = vector.broadcast %cst_344 : f32 to vector<2x32xf32>
    %970 = arith.addf %969, %968 : vector<2x32xf32>
    %971 = arith.divf %969, %970 : vector<2x32xf32>
    %972 = vector.extract_strided_slice %959 {offsets = [0, 64], sizes = [2, 32], strides = [1, 1]} : vector<2x128xf32> to vector<2x32xf32>
    %973 = math.tanh %972 : vector<2x32xf32>
    %974 = vector.extract_strided_slice %959 {offsets = [0, 96], sizes = [2, 32], strides = [1, 1]} : vector<2x128xf32> to vector<2x32xf32>
    %975 = arith.negf %974 : vector<2x32xf32>
    %976 = math.exp %975 : vector<2x32xf32>
    %cst_345 = arith.constant 1.000000e+00 : f32
    %977 = vector.broadcast %cst_345 : f32 to vector<2x32xf32>
    %978 = arith.addf %977, %976 : vector<2x32xf32>
    %979 = arith.divf %977, %978 : vector<2x32xf32>
    %980 = arith.mulf %971, %870 : vector<2x32xf32>
    %981 = arith.mulf %965, %973 : vector<2x32xf32>
    %982 = arith.addf %980, %981 : vector<2x32xf32>
    %983 = math.tanh %982 : vector<2x32xf32>
    %984 = arith.mulf %979, %983 : vector<2x32xf32>
    %c0_346 = arith.constant 0 : index
    %c5_347 = arith.constant 5 : index
    %c0_348 = arith.constant 0 : index
    %985 = vector.load %arg11[%c0_346, %c5_347, %c0_348] : memref<2x8x32xf32, #tpu.memory_space<vmem>>, vector<2x1x32xf32>
    %986 = vector.shape_cast %985 : vector<2x1x32xf32> to vector<2x32xf32>
    %987 = vector.shape_cast %984 : vector<2x32xf32> to vector<2x1x32xf32>
    tpu.vector_store %arg11[%c0_346, %c5_347, %c0_348], %987 {strides = array<i32>} : memref<2x8x32xf32, #tpu.memory_space<vmem>>, vector<2x1x32xf32>,
    %cst_349 = arith.constant dense<0.000000e+00> : vector<2x8xf32>
    %988 = tpu.matmul %984, %0, %cst_349 {dimension_numbers = #tpu.dot_dimension_numbers<[1], [1], [0], [0], [0, 0, 1, 0], [], []>} : vector<2x32xf32>, vector<8x32xf32>, vector<2x8xf32> -> vector<2x8xf32>
    %cst_350 = arith.constant dense<0.000000e+00> : vector<2x8xf32>
    %989 = tpu.matmul %982, %1, %cst_350 {dimension_numbers = #tpu.dot_dimension_numbers<[1], [1], [0], [0], [0, 0, 1, 0], [], []>} : vector<2x32xf32>, vector<8x32xf32>, vector<2x8xf32> -> vector<2x8xf32>
    %990 = arith.addf %988, %989 : vector<2x8xf32>
    %991 = arith.addf %990, %6 : vector<2x8xf32>
    %cst_351 = arith.constant 0.000000e+00 : f32
    %992 = vector.broadcast %cst_351 : f32 to vector<2x4xf32>
    %c0_352 = arith.constant 0 : index
    %c0_353 = arith.constant 0 : index
    %993 = memref.load %arg9[%c0_352, %c0_353] : memref<1x8xf32, #tpu.memory_space<smem>>
    %994 = vector.extract_strided_slice %991 {offsets = [0, 0], sizes = [2, 1], strides = [1, 1]} : vector<2x8xf32> to vector<2x1xf32>
    %995 = vector.broadcast %994 : vector<2x1xf32> to vector<2x4xf32>
    %996 = arith.addf %995, %61 : vector<2x4xf32>
    %997 = math.tanh %996 : vector<2x4xf32>
    %998 = vector.broadcast %993 : f32 to vector<2x4xf32>
    %999 = arith.mulf %998, %997 : vector<2x4xf32>
    %1000 = arith.addf %992, %999 : vector<2x4xf32>
    %c0_354 = arith.constant 0 : index
    %c1_355 = arith.constant 1 : index
    %1001 = memref.load %arg9[%c0_354, %c1_355] : memref<1x8xf32, #tpu.memory_space<smem>>
    %1002 = vector.extract_strided_slice %991 {offsets = [0, 1], sizes = [2, 1], strides = [1, 1]} : vector<2x8xf32> to vector<2x1xf32>
    %1003 = vector.broadcast %1002 : vector<2x1xf32> to vector<2x4xf32>
    %1004 = arith.addf %1003, %97 : vector<2x4xf32>
    %1005 = math.tanh %1004 : vector<2x4xf32>
    %1006 = vector.broadcast %1001 : f32 to vector<2x4xf32>
    %1007 = arith.mulf %1006, %1005 : vector<2x4xf32>
    %1008 = arith.addf %1000, %1007 : vector<2x4xf32>
    %c0_356 = arith.constant 0 : index
    %c2_357 = arith.constant 2 : index
    %1009 = memref.load %arg9[%c0_356, %c2_357] : memref<1x8xf32, #tpu.memory_space<smem>>
    %1010 = vector.extract_strided_slice %991 {offsets = [0, 2], sizes = [2, 1], strides = [1, 1]} : vector<2x8xf32> to vector<2x1xf32>
    %1011 = vector.broadcast %1010 : vector<2x1xf32> to vector<2x4xf32>
    %1012 = arith.addf %1011, %133 : vector<2x4xf32>
    %1013 = math.tanh %1012 : vector<2x4xf32>
    %1014 = vector.broadcast %1009 : f32 to vector<2x4xf32>
    %1015 = arith.mulf %1014, %1013 : vector<2x4xf32>
    %1016 = arith.addf %1008, %1015 : vector<2x4xf32>
    %c0_358 = arith.constant 0 : index
    %c3_359 = arith.constant 3 : index
    %1017 = memref.load %arg9[%c0_358, %c3_359] : memref<1x8xf32, #tpu.memory_space<smem>>
    %1018 = vector.extract_strided_slice %991 {offsets = [0, 3], sizes = [2, 1], strides = [1, 1]} : vector<2x8xf32> to vector<2x1xf32>
    %1019 = vector.broadcast %1018 : vector<2x1xf32> to vector<2x4xf32>
    %1020 = arith.addf %1019, %169 : vector<2x4xf32>
    %1021 = math.tanh %1020 : vector<2x4xf32>
    %1022 = vector.broadcast %1017 : f32 to vector<2x4xf32>
    %1023 = arith.mulf %1022, %1021 : vector<2x4xf32>
    %1024 = arith.addf %1016, %1023 : vector<2x4xf32>
    %c0_360 = arith.constant 0 : index
    %c4_361 = arith.constant 4 : index
    %1025 = memref.load %arg9[%c0_360, %c4_361] : memref<1x8xf32, #tpu.memory_space<smem>>
    %1026 = vector.extract_strided_slice %991 {offsets = [0, 4], sizes = [2, 1], strides = [1, 1]} : vector<2x8xf32> to vector<2x1xf32>
    %1027 = vector.broadcast %1026 : vector<2x1xf32> to vector<2x4xf32>
    %1028 = arith.addf %1027, %205 : vector<2x4xf32>
    %1029 = math.tanh %1028 : vector<2x4xf32>
    %1030 = vector.broadcast %1025 : f32 to vector<2x4xf32>
    %1031 = arith.mulf %1030, %1029 : vector<2x4xf32>
    %1032 = arith.addf %1024, %1031 : vector<2x4xf32>
    %c0_362 = arith.constant 0 : index
    %c5_363 = arith.constant 5 : index
    %1033 = memref.load %arg9[%c0_362, %c5_363] : memref<1x8xf32, #tpu.memory_space<smem>>
    %1034 = vector.extract_strided_slice %991 {offsets = [0, 5], sizes = [2, 1], strides = [1, 1]} : vector<2x8xf32> to vector<2x1xf32>
    %1035 = vector.broadcast %1034 : vector<2x1xf32> to vector<2x4xf32>
    %1036 = arith.addf %1035, %241 : vector<2x4xf32>
    %1037 = math.tanh %1036 : vector<2x4xf32>
    %1038 = vector.broadcast %1033 : f32 to vector<2x4xf32>
    %1039 = arith.mulf %1038, %1037 : vector<2x4xf32>
    %1040 = arith.addf %1032, %1039 : vector<2x4xf32>
    %c0_364 = arith.constant 0 : index
    %c6_365 = arith.constant 6 : index
    %1041 = memref.load %arg9[%c0_364, %c6_365] : memref<1x8xf32, #tpu.memory_space<smem>>
    %1042 = vector.extract_strided_slice %991 {offsets = [0, 6], sizes = [2, 1], strides = [1, 1]} : vector<2x8xf32> to vector<2x1xf32>
    %1043 = vector.broadcast %1042 : vector<2x1xf32> to vector<2x4xf32>
    %1044 = arith.addf %1043, %277 : vector<2x4xf32>
    %1045 = math.tanh %1044 : vector<2x4xf32>
    %1046 = vector.broadcast %1041 : f32 to vector<2x4xf32>
    %1047 = arith.mulf %1046, %1045 : vector<2x4xf32>
    %1048 = arith.addf %1040, %1047 : vector<2x4xf32>
    %c0_366 = arith.constant 0 : index
    %c7_367 = arith.constant 7 : index
    %1049 = memref.load %arg9[%c0_366, %c7_367] : memref<1x8xf32, #tpu.memory_space<smem>>
    %1050 = vector.extract_strided_slice %991 {offsets = [0, 7], sizes = [2, 1], strides = [1, 1]} : vector<2x8xf32> to vector<2x1xf32>
    %1051 = vector.broadcast %1050 : vector<2x1xf32> to vector<2x4xf32>
    %1052 = arith.addf %1051, %313 : vector<2x4xf32>
    %1053 = math.tanh %1052 : vector<2x4xf32>
    %1054 = vector.broadcast %1049 : f32 to vector<2x4xf32>
    %1055 = arith.mulf %1054, %1053 : vector<2x4xf32>
    %1056 = arith.addf %1048, %1055 : vector<2x4xf32>
    %1057 = vector.broadcast %3 : f32 to vector<2x4xf32>
    %1058 = arith.addf %1056, %1057 : vector<2x4xf32>
    %cst_368 = arith.constant dense<0xFF800000> : vector<2xf32>
    %1059 = vector.multi_reduction <maximumf>, %1058, %cst_368 [1] : vector<2x4xf32> to vector<2xf32>
    %1060 = vector.shape_cast %1059 : vector<2xf32> to vector<2x1xf32>
    %1061 = vector.broadcast %1060 : vector<2x1xf32> to vector<2x4xf32>
    %1062 = arith.subf %1058, %1061 : vector<2x4xf32>
    %1063 = math.exp %1062 : vector<2x4xf32>
    %cst_369 = arith.constant dense<0.000000e+00> : vector<2xf32>
    %1064 = vector.multi_reduction <add>, %1063, %cst_369 [1] : vector<2x4xf32> to vector<2xf32>
    %1065 = vector.shape_cast %1064 : vector<2xf32> to vector<2x1xf32>
    %1066 = vector.broadcast %1065 : vector<2x1xf32> to vector<2x4xf32>
    %1067 = arith.divf %1063, %1066 : vector<2x4xf32>
    %1068 = arith.mulf %1067, %23 : vector<2x4xf32>
    %1069 = tpu.concatenate %1068, %984 in 1 : vector<2x4xf32>, vector<2x32xf32> -> vector<2x36xf32>
    %cst_370 = arith.constant dense<0.000000e+00> : vector<2x128xf32>
    %1070 = tpu.matmul %1069, %2, %cst_370 {dimension_numbers = #tpu.dot_dimension_numbers<[1], [0], [0], [1], [0, 0, 1, 1], [], []>} : vector<2x36xf32>, vector<36x128xf32>, vector<2x128xf32> -> vector<2x128xf32>
    %1071 = arith.addf %1070, %9 : vector<2x128xf32>
    %1072 = vector.extract_strided_slice %1071 {offsets = [0, 0], sizes = [2, 32], strides = [1, 1]} : vector<2x128xf32> to vector<2x32xf32>
    %1073 = arith.negf %1072 : vector<2x32xf32>
    %1074 = math.exp %1073 : vector<2x32xf32>
    %cst_371 = arith.constant 1.000000e+00 : f32
    %1075 = vector.broadcast %cst_371 : f32 to vector<2x32xf32>
    %1076 = arith.addf %1075, %1074 : vector<2x32xf32>
    %1077 = arith.divf %1075, %1076 : vector<2x32xf32>
    %1078 = vector.extract_strided_slice %1071 {offsets = [0, 32], sizes = [2, 32], strides = [1, 1]} : vector<2x128xf32> to vector<2x32xf32>
    %1079 = arith.negf %1078 : vector<2x32xf32>
    %1080 = math.exp %1079 : vector<2x32xf32>
    %cst_372 = arith.constant 1.000000e+00 : f32
    %1081 = vector.broadcast %cst_372 : f32 to vector<2x32xf32>
    %1082 = arith.addf %1081, %1080 : vector<2x32xf32>
    %1083 = arith.divf %1081, %1082 : vector<2x32xf32>
    %1084 = vector.extract_strided_slice %1071 {offsets = [0, 64], sizes = [2, 32], strides = [1, 1]} : vector<2x128xf32> to vector<2x32xf32>
    %1085 = math.tanh %1084 : vector<2x32xf32>
    %1086 = vector.extract_strided_slice %1071 {offsets = [0, 96], sizes = [2, 32], strides = [1, 1]} : vector<2x128xf32> to vector<2x32xf32>
    %1087 = arith.negf %1086 : vector<2x32xf32>
    %1088 = math.exp %1087 : vector<2x32xf32>
    %cst_373 = arith.constant 1.000000e+00 : f32
    %1089 = vector.broadcast %cst_373 : f32 to vector<2x32xf32>
    %1090 = arith.addf %1089, %1088 : vector<2x32xf32>
    %1091 = arith.divf %1089, %1090 : vector<2x32xf32>
    %1092 = arith.mulf %1083, %982 : vector<2x32xf32>
    %1093 = arith.mulf %1077, %1085 : vector<2x32xf32>
    %1094 = arith.addf %1092, %1093 : vector<2x32xf32>
    %1095 = math.tanh %1094 : vector<2x32xf32>
    %1096 = arith.mulf %1091, %1095 : vector<2x32xf32>
    %c0_374 = arith.constant 0 : index
    %c6_375 = arith.constant 6 : index
    %c0_376 = arith.constant 0 : index
    %1097 = vector.load %arg11[%c0_374, %c6_375, %c0_376] : memref<2x8x32xf32, #tpu.memory_space<vmem>>, vector<2x1x32xf32>
    %1098 = vector.shape_cast %1097 : vector<2x1x32xf32> to vector<2x32xf32>
    %1099 = vector.shape_cast %1096 : vector<2x32xf32> to vector<2x1x32xf32>
    tpu.vector_store %arg11[%c0_374, %c6_375, %c0_376], %1099 {strides = array<i32>} : memref<2x8x32xf32, #tpu.memory_space<vmem>>, vector<2x1x32xf32>,
    %cst_377 = arith.constant dense<0.000000e+00> : vector<2x8xf32>
    %1100 = tpu.matmul %1096, %0, %cst_377 {dimension_numbers = #tpu.dot_dimension_numbers<[1], [1], [0], [0], [0, 0, 1, 0], [], []>} : vector<2x32xf32>, vector<8x32xf32>, vector<2x8xf32> -> vector<2x8xf32>
    %cst_378 = arith.constant dense<0.000000e+00> : vector<2x8xf32>
    %1101 = tpu.matmul %1094, %1, %cst_378 {dimension_numbers = #tpu.dot_dimension_numbers<[1], [1], [0], [0], [0, 0, 1, 0], [], []>} : vector<2x32xf32>, vector<8x32xf32>, vector<2x8xf32> -> vector<2x8xf32>
    %1102 = arith.addf %1100, %1101 : vector<2x8xf32>
    %1103 = arith.addf %1102, %6 : vector<2x8xf32>
    %cst_379 = arith.constant 0.000000e+00 : f32
    %1104 = vector.broadcast %cst_379 : f32 to vector<2x4xf32>
    %c0_380 = arith.constant 0 : index
    %c0_381 = arith.constant 0 : index
    %1105 = memref.load %arg9[%c0_380, %c0_381] : memref<1x8xf32, #tpu.memory_space<smem>>
    %1106 = vector.extract_strided_slice %1103 {offsets = [0, 0], sizes = [2, 1], strides = [1, 1]} : vector<2x8xf32> to vector<2x1xf32>
    %1107 = vector.broadcast %1106 : vector<2x1xf32> to vector<2x4xf32>
    %1108 = arith.addf %1107, %61 : vector<2x4xf32>
    %1109 = math.tanh %1108 : vector<2x4xf32>
    %1110 = vector.broadcast %1105 : f32 to vector<2x4xf32>
    %1111 = arith.mulf %1110, %1109 : vector<2x4xf32>
    %1112 = arith.addf %1104, %1111 : vector<2x4xf32>
    %c0_382 = arith.constant 0 : index
    %c1_383 = arith.constant 1 : index
    %1113 = memref.load %arg9[%c0_382, %c1_383] : memref<1x8xf32, #tpu.memory_space<smem>>
    %1114 = vector.extract_strided_slice %1103 {offsets = [0, 1], sizes = [2, 1], strides = [1, 1]} : vector<2x8xf32> to vector<2x1xf32>
    %1115 = vector.broadcast %1114 : vector<2x1xf32> to vector<2x4xf32>
    %1116 = arith.addf %1115, %97 : vector<2x4xf32>
    %1117 = math.tanh %1116 : vector<2x4xf32>
    %1118 = vector.broadcast %1113 : f32 to vector<2x4xf32>
    %1119 = arith.mulf %1118, %1117 : vector<2x4xf32>
    %1120 = arith.addf %1112, %1119 : vector<2x4xf32>
    %c0_384 = arith.constant 0 : index
    %c2_385 = arith.constant 2 : index
    %1121 = memref.load %arg9[%c0_384, %c2_385] : memref<1x8xf32, #tpu.memory_space<smem>>
    %1122 = vector.extract_strided_slice %1103 {offsets = [0, 2], sizes = [2, 1], strides = [1, 1]} : vector<2x8xf32> to vector<2x1xf32>
    %1123 = vector.broadcast %1122 : vector<2x1xf32> to vector<2x4xf32>
    %1124 = arith.addf %1123, %133 : vector<2x4xf32>
    %1125 = math.tanh %1124 : vector<2x4xf32>
    %1126 = vector.broadcast %1121 : f32 to vector<2x4xf32>
    %1127 = arith.mulf %1126, %1125 : vector<2x4xf32>
    %1128 = arith.addf %1120, %1127 : vector<2x4xf32>
    %c0_386 = arith.constant 0 : index
    %c3_387 = arith.constant 3 : index
    %1129 = memref.load %arg9[%c0_386, %c3_387] : memref<1x8xf32, #tpu.memory_space<smem>>
    %1130 = vector.extract_strided_slice %1103 {offsets = [0, 3], sizes = [2, 1], strides = [1, 1]} : vector<2x8xf32> to vector<2x1xf32>
    %1131 = vector.broadcast %1130 : vector<2x1xf32> to vector<2x4xf32>
    %1132 = arith.addf %1131, %169 : vector<2x4xf32>
    %1133 = math.tanh %1132 : vector<2x4xf32>
    %1134 = vector.broadcast %1129 : f32 to vector<2x4xf32>
    %1135 = arith.mulf %1134, %1133 : vector<2x4xf32>
    %1136 = arith.addf %1128, %1135 : vector<2x4xf32>
    %c0_388 = arith.constant 0 : index
    %c4_389 = arith.constant 4 : index
    %1137 = memref.load %arg9[%c0_388, %c4_389] : memref<1x8xf32, #tpu.memory_space<smem>>
    %1138 = vector.extract_strided_slice %1103 {offsets = [0, 4], sizes = [2, 1], strides = [1, 1]} : vector<2x8xf32> to vector<2x1xf32>
    %1139 = vector.broadcast %1138 : vector<2x1xf32> to vector<2x4xf32>
    %1140 = arith.addf %1139, %205 : vector<2x4xf32>
    %1141 = math.tanh %1140 : vector<2x4xf32>
    %1142 = vector.broadcast %1137 : f32 to vector<2x4xf32>
    %1143 = arith.mulf %1142, %1141 : vector<2x4xf32>
    %1144 = arith.addf %1136, %1143 : vector<2x4xf32>
    %c0_390 = arith.constant 0 : index
    %c5_391 = arith.constant 5 : index
    %1145 = memref.load %arg9[%c0_390, %c5_391] : memref<1x8xf32, #tpu.memory_space<smem>>
    %1146 = vector.extract_strided_slice %1103 {offsets = [0, 5], sizes = [2, 1], strides = [1, 1]} : vector<2x8xf32> to vector<2x1xf32>
    %1147 = vector.broadcast %1146 : vector<2x1xf32> to vector<2x4xf32>
    %1148 = arith.addf %1147, %241 : vector<2x4xf32>
    %1149 = math.tanh %1148 : vector<2x4xf32>
    %1150 = vector.broadcast %1145 : f32 to vector<2x4xf32>
    %1151 = arith.mulf %1150, %1149 : vector<2x4xf32>
    %1152 = arith.addf %1144, %1151 : vector<2x4xf32>
    %c0_392 = arith.constant 0 : index
    %c6_393 = arith.constant 6 : index
    %1153 = memref.load %arg9[%c0_392, %c6_393] : memref<1x8xf32, #tpu.memory_space<smem>>
    %1154 = vector.extract_strided_slice %1103 {offsets = [0, 6], sizes = [2, 1], strides = [1, 1]} : vector<2x8xf32> to vector<2x1xf32>
    %1155 = vector.broadcast %1154 : vector<2x1xf32> to vector<2x4xf32>
    %1156 = arith.addf %1155, %277 : vector<2x4xf32>
    %1157 = math.tanh %1156 : vector<2x4xf32>
    %1158 = vector.broadcast %1153 : f32 to vector<2x4xf32>
    %1159 = arith.mulf %1158, %1157 : vector<2x4xf32>
    %1160 = arith.addf %1152, %1159 : vector<2x4xf32>
    %c0_394 = arith.constant 0 : index
    %c7_395 = arith.constant 7 : index
    %1161 = memref.load %arg9[%c0_394, %c7_395] : memref<1x8xf32, #tpu.memory_space<smem>>
    %1162 = vector.extract_strided_slice %1103 {offsets = [0, 7], sizes = [2, 1], strides = [1, 1]} : vector<2x8xf32> to vector<2x1xf32>
    %1163 = vector.broadcast %1162 : vector<2x1xf32> to vector<2x4xf32>
    %1164 = arith.addf %1163, %313 : vector<2x4xf32>
    %1165 = math.tanh %1164 : vector<2x4xf32>
    %1166 = vector.broadcast %1161 : f32 to vector<2x4xf32>
    %1167 = arith.mulf %1166, %1165 : vector<2x4xf32>
    %1168 = arith.addf %1160, %1167 : vector<2x4xf32>
    %1169 = vector.broadcast %3 : f32 to vector<2x4xf32>
    %1170 = arith.addf %1168, %1169 : vector<2x4xf32>
    %cst_396 = arith.constant dense<0xFF800000> : vector<2xf32>
    %1171 = vector.multi_reduction <maximumf>, %1170, %cst_396 [1] : vector<2x4xf32> to vector<2xf32>
    %1172 = vector.shape_cast %1171 : vector<2xf32> to vector<2x1xf32>
    %1173 = vector.broadcast %1172 : vector<2x1xf32> to vector<2x4xf32>
    %1174 = arith.subf %1170, %1173 : vector<2x4xf32>
    %1175 = math.exp %1174 : vector<2x4xf32>
    %cst_397 = arith.constant dense<0.000000e+00> : vector<2xf32>
    %1176 = vector.multi_reduction <add>, %1175, %cst_397 [1] : vector<2x4xf32> to vector<2xf32>
    %1177 = vector.shape_cast %1176 : vector<2xf32> to vector<2x1xf32>
    %1178 = vector.broadcast %1177 : vector<2x1xf32> to vector<2x4xf32>
    %1179 = arith.divf %1175, %1178 : vector<2x4xf32>
    %1180 = arith.mulf %1179, %25 : vector<2x4xf32>
    %1181 = tpu.concatenate %1180, %1096 in 1 : vector<2x4xf32>, vector<2x32xf32> -> vector<2x36xf32>
    %cst_398 = arith.constant dense<0.000000e+00> : vector<2x128xf32>
    %1182 = tpu.matmul %1181, %2, %cst_398 {dimension_numbers = #tpu.dot_dimension_numbers<[1], [0], [0], [1], [0, 0, 1, 1], [], []>} : vector<2x36xf32>, vector<36x128xf32>, vector<2x128xf32> -> vector<2x128xf32>
    %1183 = arith.addf %1182, %9 : vector<2x128xf32>
    %1184 = vector.extract_strided_slice %1183 {offsets = [0, 0], sizes = [2, 32], strides = [1, 1]} : vector<2x128xf32> to vector<2x32xf32>
    %1185 = arith.negf %1184 : vector<2x32xf32>
    %1186 = math.exp %1185 : vector<2x32xf32>
    %cst_399 = arith.constant 1.000000e+00 : f32
    %1187 = vector.broadcast %cst_399 : f32 to vector<2x32xf32>
    %1188 = arith.addf %1187, %1186 : vector<2x32xf32>
    %1189 = arith.divf %1187, %1188 : vector<2x32xf32>
    %1190 = vector.extract_strided_slice %1183 {offsets = [0, 32], sizes = [2, 32], strides = [1, 1]} : vector<2x128xf32> to vector<2x32xf32>
    %1191 = arith.negf %1190 : vector<2x32xf32>
    %1192 = math.exp %1191 : vector<2x32xf32>
    %cst_400 = arith.constant 1.000000e+00 : f32
    %1193 = vector.broadcast %cst_400 : f32 to vector<2x32xf32>
    %1194 = arith.addf %1193, %1192 : vector<2x32xf32>
    %1195 = arith.divf %1193, %1194 : vector<2x32xf32>
    %1196 = vector.extract_strided_slice %1183 {offsets = [0, 64], sizes = [2, 32], strides = [1, 1]} : vector<2x128xf32> to vector<2x32xf32>
    %1197 = math.tanh %1196 : vector<2x32xf32>
    %1198 = vector.extract_strided_slice %1183 {offsets = [0, 96], sizes = [2, 32], strides = [1, 1]} : vector<2x128xf32> to vector<2x32xf32>
    %1199 = arith.negf %1198 : vector<2x32xf32>
    %1200 = math.exp %1199 : vector<2x32xf32>
    %cst_401 = arith.constant 1.000000e+00 : f32
    %1201 = vector.broadcast %cst_401 : f32 to vector<2x32xf32>
    %1202 = arith.addf %1201, %1200 : vector<2x32xf32>
    %1203 = arith.divf %1201, %1202 : vector<2x32xf32>
    %1204 = arith.mulf %1195, %1094 : vector<2x32xf32>
    %1205 = arith.mulf %1189, %1197 : vector<2x32xf32>
    %1206 = arith.addf %1204, %1205 : vector<2x32xf32>
    %1207 = math.tanh %1206 : vector<2x32xf32>
    %1208 = arith.mulf %1203, %1207 : vector<2x32xf32>
    %c0_402 = arith.constant 0 : index
    %c7_403 = arith.constant 7 : index
    %c0_404 = arith.constant 0 : index
    %1209 = vector.load %arg11[%c0_402, %c7_403, %c0_404] : memref<2x8x32xf32, #tpu.memory_space<vmem>>, vector<2x1x32xf32>
    %1210 = vector.shape_cast %1209 : vector<2x1x32xf32> to vector<2x32xf32>
    %1211 = vector.shape_cast %1208 : vector<2x32xf32> to vector<2x1x32xf32>
    tpu.vector_store %arg11[%c0_402, %c7_403, %c0_404], %1211 {strides = array<i32>} : memref<2x8x32xf32, #tpu.memory_space<vmem>>, vector<2x1x32xf32>,
    %c0_405 = arith.constant 0 : index
    %c0_406 = arith.constant 0 : index
    %1212 = vector.load %arg12[%c0_405, %c0_406] : memref<2x4xf32, #tpu.memory_space<vmem>>, vector<2x4xf32>
    tpu.vector_store %arg12[%c0_405, %c0_406], %1179 {strides = array<i32>} : memref<2x4xf32, #tpu.memory_space<vmem>>, vector<2x4xf32>,
    return
  }
  func.func @transform_0(%arg0: i32) -> (i32, i32, i32) {
    %c0_i32 = arith.constant 0 : i32
    %c0_i32_0 = arith.constant 0 : i32
    %c0_i32_1 = arith.constant 0 : i32
    return %arg0, %c0_i32, %c0_i32_0 : i32, i32, i32
  }
  func.func @transform_1(%arg0: i32) -> (i32, i32) {
    %c0_i32 = arith.constant 0 : i32
    %c0_i32_0 = arith.constant 0 : i32
    %c0_i32_1 = arith.constant 0 : i32
    return %c0_i32, %c0_i32_0 : i32, i32
  }
  func.func @transform_2(%arg0: i32) -> (i32, i32) {
    %c0_i32 = arith.constant 0 : i32
    %c0_i32_0 = arith.constant 0 : i32
    %c0_i32_1 = arith.constant 0 : i32
    return %c0_i32, %c0_i32_0 : i32, i32
  }
  func.func @transform_3(%arg0: i32) -> (i32, i32) {
    %c0_i32 = arith.constant 0 : i32
    %c0_i32_0 = arith.constant 0 : i32
    %c0_i32_1 = arith.constant 0 : i32
    return %c0_i32, %c0_i32_0 : i32, i32
  }
  func.func @transform_4(%arg0: i32) -> (i32, i32) {
    %c0_i32 = arith.constant 0 : i32
    %c0_i32_0 = arith.constant 0 : i32
    %c0_i32_1 = arith.constant 0 : i32
    return %c0_i32, %c0_i32_0 : i32, i32
  }
  func.func @transform_5(%arg0: i32) -> (i32, i32) {
    %c0_i32 = arith.constant 0 : i32
    %c0_i32_0 = arith.constant 0 : i32
    %c0_i32_1 = arith.constant 0 : i32
    return %c0_i32, %c0_i32_0 : i32, i32
  }
  func.func @transform_6(%arg0: i32) -> (i32, i32) {
    %c0_i32 = arith.constant 0 : i32
    %c0_i32_0 = arith.constant 0 : i32
    %c0_i32_1 = arith.constant 0 : i32
    return %c0_i32, %c0_i32_0 : i32, i32
  }
  func.func @transform_7(%arg0: i32) -> (i32, i32) {
    %c0_i32 = arith.constant 0 : i32
    %c0_i32_0 = arith.constant 0 : i32
    %c0_i32_1 = arith.constant 0 : i32
    return %c0_i32, %c0_i32_0 : i32, i32
  }
  func.func @transform_8(%arg0: i32) -> (i32, i32) {
    %c0_i32 = arith.constant 0 : i32
    %c0_i32_0 = arith.constant 0 : i32
    %c0_i32_1 = arith.constant 0 : i32
    return %c0_i32, %c0_i32_0 : i32, i32
  }
  func.func @transform_9(%arg0: i32) -> (i32, i32) {
    %c0_i32 = arith.constant 0 : i32
    %c0_i32_0 = arith.constant 0 : i32
    %c0_i32_1 = arith.constant 0 : i32
    return %c0_i32, %c0_i32_0 : i32, i32
  }
  func.func @transform_10(%arg0: i32) -> (i32, i32, i32) {
    %c0_i32 = arith.constant 0 : i32
    %c0_i32_0 = arith.constant 0 : i32
    %c0_i32_1 = arith.constant 0 : i32
    return %arg0, %c0_i32, %c0_i32_0 : i32, i32, i32
  }
  func.func @transform_11(%arg0: i32) -> (i32, i32) {
    %c0_i32 = arith.constant 0 : i32
    %c0_i32_0 = arith.constant 0 : i32
    return %arg0, %c0_i32 : i32, i32
  }
}

</mosaic_0001>

<llo_original>
// kernel: tpu_custom_call.1
$region0: #{tpu_custom_call.1}
  #allocation0 [shape = 'u32[]', space=smem, size = 0x4, offset = 0x4, fixed_abs, tag = 'smem constant byte address 0x4 - core index']
  #allocation1 [shape = 'u32[144,128]{1,0:T(1,128)}', space=vmem, size = 0x12000, scoped, tag = 'internal scratch']
  #allocation2 [shape = 'f32[1,1]{1,0:T(1,128)S(6)}', space=smem, size = 0x200, scoped, tag = 'scoped memory for tpu_custom_call.1']
  %s0 = inlined_call_operand.vmem [shape: f32[2,8,4], index: 0, kind: input, shape index: {}]
  %s1 = inlined_call_operand.hbm [shape: f32[8,32], index: 1, kind: input, shape index: {}]
  %s2 = inlined_call_operand.hbm [shape: f32[8,32], index: 2, kind: input, shape index: {}]
  %s3 = inlined_call_operand.vmem [shape: f32[1,8], index: 3, kind: input, shape index: {}]
  %s4 = inlined_call_operand.vmem [shape: f32[36,128], index: 4, kind: input, shape index: {}]
  %s5 = inlined_call_operand.vmem [shape: f32[1,128], index: 5, kind: input, shape index: {}]
  %s6 = inlined_call_operand.vmem [shape: f32[8,8], index: 6, kind: input, shape index: {}]
  %s7 = inlined_call_operand.vmem [shape: f32[1,8], index: 7, kind: input, shape index: {}]
  %s8 = inlined_call_operand.vmem [shape: f32[1,8], index: 8, kind: input, shape index: {}]
  %s9 = inlined_call_operand.<no memory space> [shape: f32[1,1], index: 9, kind: input, shape index: {}]
  %s10 = inlined_call_operand.hbm [shape: f32[2,8,32], index: 10, kind: output, shape index: {0}]
  %s11 = inlined_call_operand.hbm [shape: f32[2,4], index: 11, kind: output, shape index: {1}]
  %12 = xla_tuple %s10, %s11
  %s13 = sld [smem:[#allocation0]]
  $region78: #{tpu_custom_call.1} parent=0
    _
  %s15 = ssub.s32 1, %s13
  %s16 = scalar_select 0, %s15, %s13
  %17 = sst [smem:[#allocation2]] %s9
  $region1: #{tpu_custom_call.1} parent=0
    #allocation3 [shape = 'u8[4096]{0}', space=vmem, size = 0x1000, scoped, tag = 'input window, operand 1, single buffered']
    #allocation4 [shape = 's32[1]{0}', space=sflag, size = 0x4, scoped, tag = 'scoped memory for tpu_custom_call.1']
    #allocation5 [shape = 's32[1]{0}', space=sflag, size = 0x4, scoped, tag = 'scoped memory for tpu_custom_call.1']
    #allocation6 [shape = 's32[1]{0}', space=sflag, size = 0x4, scoped, tag = 'scoped memory for tpu_custom_call.1']
    #allocation7 [shape = 'u8[4096]{0}', space=vmem, size = 0x1000, scoped, tag = 'input window, operand 2, single buffered']
    #allocation8 [shape = 's32[1]{0}', space=sflag, size = 0x4, scoped, tag = 'scoped memory for tpu_custom_call.1']
    #allocation9 [shape = 'u8[4096]{0}', space=smem, size = 0x1000, scoped, tag = 'input window, operand 6, single buffered']
    #allocation10 [shape = 'u8[512]{0}', space=smem, size = 0x200, scoped, tag = 'input window, operand 7, single buffered']
    #allocation11 [shape = 's32[1]{0}', space=sflag, size = 0x4, scoped, tag = 'scoped memory for tpu_custom_call.1']
    #allocation12 [shape = 'u8[512]{0}', space=smem, size = 0x200, scoped, tag = 'input window, operand 8, single buffered']
    #allocation13 [shape = 'u8[8192]{0}', space=vmem, size = 0x2000, scoped, tag = 'output window, operand 0, single buffered']
    #allocation14 [shape = 'u8[1024]{0}', space=vmem, size = 0x400, scoped, tag = 'output window, operand 1, single buffered']
    #allocation15 [shape = 's32[1]{0}', space=sflag, size = 0x4, scoped, tag = 'scoped memory for tpu_custom_call.1']
    %18 = vsyncpa [#allocation4], 0
    %19 = vsyncpa [#allocation8], 0
    %20 = vsyncpa [#allocation6], 0
    %21 = vsyncpa [#allocation11], 0
    %22 = vsyncpa [#allocation5], 0
    %23 = vsyncpa [#allocation15], 0
    // Predicated region
    $region2: #{tpu_custom_call.1} parent=1 // pred_check
      _
    $region3: #{tpu_custom_call.1} parent=1 // pred_check_branch
      %25 = sbr.rel (0) target = $region5
    $region4: #{tpu_custom_call.1} parent=1 // pred_region
      _
    $region5: #{tpu_custom_call.1} parent=1 // pred_fallthru
      _
    // Predicated region
    $region6: #{tpu_custom_call.1} parent=1 // pred_check
      _
    $region7: #{tpu_custom_call.1} parent=1 // pred_check_branch
      %27 = sbr.rel (0) target = $region9
    $region8: #{tpu_custom_call.1} parent=1 // pred_region
      %s29 = ssub.s32 128, 128
      %30 = vsyncadd [#allocation4], %s29
      %s32 = sshll.u32 [#allocation3], 4
      %s33 = int_to_ptr.vmem [resolvable:$true] %s32
      %35 = dma.hbm_to_vmem [thread:$0]  %s1, 128, %s33, [#allocation4]
    $region9: #{tpu_custom_call.1} parent=1 // pred_fallthru
      _
    // Predicated region
    $region10: #{tpu_custom_call.1} parent=1 // pred_check
      _
    $region11: #{tpu_custom_call.1} parent=1 // pred_check_branch
      %37 = sbr.rel (0) target = $region13
    $region12: #{tpu_custom_call.1} parent=1 // pred_region
      %s39 = ssub.s32 128, 128
      %40 = vsyncadd [#allocation8], %s39
      %s42 = sshll.u32 [#allocation7], 4
      %s43 = int_to_ptr.vmem [resolvable:$true] %s42
      %45 = dma.hbm_to_vmem [thread:$0]  %s2, 128, %s43, [#allocation8]
    $region13: #{tpu_custom_call.1} parent=1 // pred_fallthru
      _
    // Predicated region
    $region14: #{tpu_custom_call.1} parent=1 // pred_check
      _
    $region15: #{tpu_custom_call.1} parent=1 // pred_check_branch
      %47 = sbr.rel (0) target = $region17
    $region16: #{tpu_custom_call.1} parent=1 // pred_region
      _
    $region17: #{tpu_custom_call.1} parent=1 // pred_fallthru
      _
    // Predicated region
    $region18: #{tpu_custom_call.1} parent=1 // pred_check
      _
    $region19: #{tpu_custom_call.1} parent=1 // pred_check_branch
      %49 = sbr.rel (0) target = $region21
    $region20: #{tpu_custom_call.1} parent=1 // pred_region
      _
    $region21: #{tpu_custom_call.1} parent=1 // pred_fallthru
      _
    // Predicated region
    $region22: #{tpu_custom_call.1} parent=1 // pred_check
      _
    $region23: #{tpu_custom_call.1} parent=1 // pred_check_branch
      %51 = sbr.rel (0) target = $region25
    $region24: #{tpu_custom_call.1} parent=1 // pred_region
      _
    $region25: #{tpu_custom_call.1} parent=1 // pred_fallthru
      _
    // Predicated region
    $region26: #{tpu_custom_call.1} parent=1 // pred_check
      _
    $region27: #{tpu_custom_call.1} parent=1 // pred_check_branch
      %53 = sbr.rel (0) target = $region29
    $region28: #{tpu_custom_call.1} parent=1 // pred_region
      %s55 = ssub.s32 128, 128
      %56 = vsyncadd [#allocation6], %s55
      %s58 = sshll.u32 %s6, 4
      %s59 = int_to_ptr.vmem [resolvable:$true] %s58
      %61 = dma.vmem_to_smem %s59, 128, [#allocation9], [#allocation6]
    $region29: #{tpu_custom_call.1} parent=1 // pred_fallthru
      _
    // Predicated region
    $region30: #{tpu_custom_call.1} parent=1 // pred_check
      _
    $region31: #{tpu_custom_call.1} parent=1 // pred_check_branch
      %63 = sbr.rel (0) target = $region33
    $region32: #{tpu_custom_call.1} parent=1 // pred_region
      %s65 = ssub.s32 16, 16
      %66 = vsyncadd [#allocation11], %s65
      %s68 = sshll.u32 %s7, 4
      %s69 = int_to_ptr.vmem [resolvable:$true] %s68
      %71 = dma.vmem_to_smem %s69, 16, [#allocation10], [#allocation11]
    $region33: #{tpu_custom_call.1} parent=1 // pred_fallthru
      _
    // Predicated region
    $region34: #{tpu_custom_call.1} parent=1 // pred_check
      _
    $region35: #{tpu_custom_call.1} parent=1 // pred_check_branch
      %73 = sbr.rel (0) target = $region37
    $region36: #{tpu_custom_call.1} parent=1 // pred_region
      %s75 = ssub.s32 16, 16
      %76 = vsyncadd [#allocation11], %s75
      %s78 = sshll.u32 %s8, 4
      %s79 = int_to_ptr.vmem [resolvable:$true] %s78
      %81 = dma.vmem_to_smem %s79, 16, [#allocation12], [#allocation11]
    $region37: #{tpu_custom_call.1} parent=1 // pred_fallthru
      _
    // Predicated region
    $region38: #{tpu_custom_call.1} parent=1 // pred_check
      _
    $region39: #{tpu_custom_call.1} parent=1 // pred_check_branch
      %83 = sbr.rel (0) target = $region41
    $region40: #{tpu_custom_call.1} parent=1 // pred_region
      _
    $region41: #{tpu_custom_call.1} parent=1 // pred_fallthru
      _
    // Predicated region
    $region42: #{tpu_custom_call.1} parent=1 // pred_check
      _
    $region43: #{tpu_custom_call.1} parent=1 // pred_check_branch
      %85 = sbr.rel (0) target = $region45
    $region44: #{tpu_custom_call.1} parent=1 // pred_region
      %86 = dma.done [#allocation4], 128
    $region45: #{tpu_custom_call.1} parent=1 // pred_fallthru
      _
    // Predicated region
    $region46: #{tpu_custom_call.1} parent=1 // pred_check
      _
    $region47: #{tpu_custom_call.1} parent=1 // pred_check_branch
      %88 = sbr.rel (0) target = $region49
    $region48: #{tpu_custom_call.1} parent=1 // pred_region
      %89 = dma.done [#allocation8], 128
    $region49: #{tpu_custom_call.1} parent=1 // pred_fallthru
      _
    // Predicated region
    $region50: #{tpu_custom_call.1} parent=1 // pred_check
      _
    $region51: #{tpu_custom_call.1} parent=1 // pred_check_branch
      %91 = sbr.rel (0) target = $region53
    $region52: #{tpu_custom_call.1} parent=1 // pred_region
      %92 = dma.done [#allocation6], 128
    $region53: #{tpu_custom_call.1} parent=1 // pred_fallthru
      _
    // Predicated region
    $region54: #{tpu_custom_call.1} parent=1 // pred_check
      _
    $region55: #{tpu_custom_call.1} parent=1 // pred_check_branch
      %94 = sbr.rel (0) target = $region57
    $region56: #{tpu_custom_call.1} parent=1 // pred_region
      %95 = dma.done [#allocation11], 16
    $region57: #{tpu_custom_call.1} parent=1 // pred_fallthru
      _
    // Predicated region
    $region58: #{tpu_custom_call.1} parent=1 // pred_check
      _
    $region59: #{tpu_custom_call.1} parent=1 // pred_check_branch
      %97 = sbr.rel (0) target = $region61
    $region60: #{tpu_custom_call.1} parent=1 // pred_region
      %98 = dma.done [#allocation11], 16
    $region61: #{tpu_custom_call.1} parent=1 // pred_fallthru
      _
    %99 = sfence
    %v100 = vld [vmem:[#allocation3] sm:$0xff]
    %v101 = vld [vmem:[#allocation7] sm:$0xff]
    %v102 = vld [vmem:[%s4] sm:$0xff]
    %v103 = vld [vmem:[%s4 + $0x8] sm:$0xff]
    %v104 = vld [vmem:[%s4 + $0x10] sm:$0xff]
    %v105 = vld [vmem:[%s4 + $0x18] sm:$0xff]
    %v106 = vld [vmem:[%s4 + $0x20] sm:$0xf]
    %s107 = sld [smem:[#allocation2]]
    %v108 = vld [vmem:[%s3] sm:$0x1]
    %v110 = vlaneseq
    %v111 = vshrl.u32 %v110, 7
    %v112 = vsub.s32 0, %v111
    %v113 = vrot.slane %v108, %v112
    %v115 = vld [vmem:[%s5] sm:$0x1]
    %v117 = vlaneseq
    %v118 = vshrl.u32 %v117, 7
    %v119 = vsub.s32 0, %v118
    %v120 = vrot.slane %v115, %v119
    %v122 = vld [vmem:[%s0] sm:$0x1]
    %v123 = vld [vmem:[%s0 + $0x8] sm:$0x1]
    %v124 = vld [vmem:[%s0 + $0x1] sm:$0x1]
    %v125 = vld [vmem:[%s0 + $0x9] sm:$0x1]
    %v126 = vld [vmem:[%s0 + $0x2] sm:$0x1]
    %v127 = vld [vmem:[%s0 + $0xa] sm:$0x1]
    %v128 = vld [vmem:[%s0 + $0x3] sm:$0x1]
    %v129 = vld [vmem:[%s0 + $0xb] sm:$0x1]
    %v130 = vld [vmem:[%s0 + $0x4] sm:$0x1]
    %v131 = vld [vmem:[%s0 + $0xc] sm:$0x1]
    %v132 = vld [vmem:[%s0 + $0x5] sm:$0x1]
    %v133 = vld [vmem:[%s0 + $0xd] sm:$0x1]
    %v134 = vld [vmem:[%s0 + $0x6] sm:$0x1]
    %v135 = vld [vmem:[%s0 + $0xe] sm:$0x1]
    %v136 = vld [vmem:[%s0 + $0x7] sm:$0x1]
    %v137 = vld [vmem:[%s0 + $0xf] sm:$0x1]
    %s138 = sld [smem:[#allocation9]]
    %v139 = vstv %s138
    %v140 = vmul.f32 %v139, %v122
    %v141 = vmul.f32 %v139, %v123
    %v142 = vadd.f32 %v140, 0.0
    %v143 = vadd.f32 %v141, 0.0
    %s144 = sld [smem:[#allocation9 + $0x1]]
    %v145 = vstv %s144
    %v146 = vmul.f32 %v145, %v124
    %v147 = vmul.f32 %v145, %v125
    %v148 = vadd.f32 %v142, %v146
    %v149 = vadd.f32 %v143, %v147
    %s150 = sld [smem:[#allocation9 + $0x2]]
    %v151 = vstv %s150
    %v152 = vmul.f32 %v151, %v126
    %v153 = vmul.f32 %v151, %v127
    %v154 = vadd.f32 %v148, %v152
    %v155 = vadd.f32 %v149, %v153
    %s156 = sld [smem:[#allocation9 + $0x3]]
    %v157 = vstv %s156
    %v158 = vmul.f32 %v157, %v128
    %v159 = vmul.f32 %v157, %v129
    %v160 = vadd.f32 %v154, %v158
    %v161 = vadd.f32 %v155, %v159
    %s162 = sld [smem:[#allocation9 + $0x4]]
    %v163 = vstv %s162
    %v164 = vmul.f32 %v163, %v130
    %v165 = vmul.f32 %v163, %v131
    %v166 = vadd.f32 %v160, %v164
    %v167 = vadd.f32 %v161, %v165
    %s168 = sld [smem:[#allocation9 + $0x5]]
    %v169 = vstv %s168
    %v170 = vmul.f32 %v169, %v132
    %v171 = vmul.f32 %v169, %v133
    %v172 = vadd.f32 %v166, %v170
    %v173 = vadd.f32 %v167, %v171
    %s174 = sld [smem:[#allocation9 + $0x6]]
    %v175 = vstv %s174
    %v176 = vmul.f32 %v175, %v134
    %v177 = vmul.f32 %v175, %v135
    %v178 = vadd.f32 %v172, %v176
    %v179 = vadd.f32 %v173, %v177
    %s180 = sld [smem:[#allocation9 + $0x7]]
    %v181 = vstv %s180
    %v182 = vmul.f32 %v181, %v136
    %v183 = vmul.f32 %v181, %v137
    %v184 = vadd.f32 %v178, %v182
    %v185 = vadd.f32 %v179, %v183
    %s186 = sld [smem:[#allocation10]]
    %v187 = vstv %s186
    %v188 = vadd.f32 %v184, %v187
    %v189 = vadd.f32 %v185, %v187
    %s190 = sld [smem:[#allocation9 + $0x80]]
    %v191 = vstv %s190
    %v192 = vmul.f32 %v191, %v122
    %v193 = vmul.f32 %v191, %v123
    %v194 = vadd.f32 %v192, 0.0
    %v195 = vadd.f32 %v193, 0.0
    %s196 = sld [smem:[#allocation9 + $0x81]]
    %v197 = vstv %s196
    %v198 = vmul.f32 %v197, %v124
    %v199 = vmul.f32 %v197, %v125
    %v200 = vadd.f32 %v194, %v198
    %v201 = vadd.f32 %v195, %v199
    %s202 = sld [smem:[#allocation9 + $0x82]]
    %v203 = vstv %s202
    %v204 = vmul.f32 %v203, %v126
    %v205 = vmul.f32 %v203, %v127
    %v206 = vadd.f32 %v200, %v204
    %v207 = vadd.f32 %v201, %v205
    %s208 = sld [smem:[#allocation9 + $0x83]]
    %v209 = vstv %s208
    %v210 = vmul.f32 %v209, %v128
    %v211 = vmul.f32 %v209, %v129
    %v212 = vadd.f32 %v206, %v210
    %v213 = vadd.f32 %v207, %v211
    %s214 = sld [smem:[#allocation9 + $0x84]]
    %v215 = vstv %s214
    %v216 = vmul.f32 %v215, %v130
    %v217 = vmul.f32 %v215, %v131
    %v218 = vadd.f32 %v212, %v216
    %v219 = vadd.f32 %v213, %v217
    %s220 = sld [smem:[#allocation9 + $0x85]]
    %v221 = vstv %s220
    %v222 = vmul.f32 %v221, %v132
    %v223 = vmul.f32 %v221, %v133
    %v224 = vadd.f32 %v218, %v222
    %v225 = vadd.f32 %v219, %v223
    %s226 = sld [smem:[#allocation9 + $0x86]]
    %v227 = vstv %s226
    %v228 = vmul.f32 %v227, %v134
    %v229 = vmul.f32 %v227, %v135
    %v230 = vadd.f32 %v224, %v228
    %v231 = vadd.f32 %v225, %v229
    %s232 = sld [smem:[#allocation9 + $0x87]]
    %v233 = vstv %s232
    %v234 = vmul.f32 %v233, %v136
    %v235 = vmul.f32 %v233, %v137
    %v236 = vadd.f32 %v230, %v234
    %v237 = vadd.f32 %v231, %v235
    %s238 = sld [smem:[#allocation10 + $0x1]]
    %v239 = vstv %s238
    %v240 = vadd.f32 %v236, %v239
    %v241 = vadd.f32 %v237, %v239
    %s242 = sld [smem:[#allocation9 + $0x100]]
    %v243 = vstv %s242
    %v244 = vmul.f32 %v243, %v122
    %v245 = vmul.f32 %v243, %v123
    %v246 = vadd.f32 %v244, 0.0
    %v247 = vadd.f32 %v245, 0.0
    %s248 = sld [smem:[#allocation9 + $0x101]]
    %v249 = vstv %s248
    %v250 = vmul.f32 %v249, %v124
    %v251 = vmul.f32 %v249, %v125
    %v252 = vadd.f32 %v246, %v250
    %v253 = vadd.f32 %v247, %v251
    %s254 = sld [smem:[#allocation9 + $0x102]]
    %v255 = vstv %s254
    %v256 = vmul.f32 %v255, %v126
    %v257 = vmul.f32 %v255, %v127
    %v258 = vadd.f32 %v252, %v256
    %v259 = vadd.f32 %v253, %v257
    %s260 = sld [smem:[#allocation9 + $0x103]]
    %v261 = vstv %s260
    %v262 = vmul.f32 %v261, %v128
    %v263 = vmul.f32 %v261, %v129
    %v264 = vadd.f32 %v258, %v262
    %v265 = vadd.f32 %v259, %v263
    %s266 = sld [smem:[#allocation9 + $0x104]]
    %v267 = vstv %s266
    %v268 = vmul.f32 %v267, %v130
    %v269 = vmul.f32 %v267, %v131
    %v270 = vadd.f32 %v264, %v268
    %v271 = vadd.f32 %v265, %v269
    %s272 = sld [smem:[#allocation9 + $0x105]]
    %v273 = vstv %s272
    %v274 = vmul.f32 %v273, %v132
    %v275 = vmul.f32 %v273, %v133
    %v276 = vadd.f32 %v270, %v274
    %v277 = vadd.f32 %v271, %v275
    %s278 = sld [smem:[#allocation9 + $0x106]]
    %v279 = vstv %s278
    %v280 = vmul.f32 %v279, %v134
    %v281 = vmul.f32 %v279, %v135
    %v282 = vadd.f32 %v276, %v280
    %v283 = vadd.f32 %v277, %v281
    %s284 = sld [smem:[#allocation9 + $0x107]]
    %v285 = vstv %s284
    %v286 = vmul.f32 %v285, %v136
    %v287 = vmul.f32 %v285, %v137
    %v288 = vadd.f32 %v282, %v286
    %v289 = vadd.f32 %v283, %v287
    %s290 = sld [smem:[#allocation10 + $0x2]]
    %v291 = vstv %s290
    %v292 = vadd.f32 %v288, %v291
    %v293 = vadd.f32 %v289, %v291
    %s294 = sld [smem:[#allocation9 + $0x180]]
    %v295 = vstv %s294
    %v296 = vmul.f32 %v295, %v122
    %v297 = vmul.f32 %v295, %v123
    %v298 = vadd.f32 %v296, 0.0
    %v299 = vadd.f32 %v297, 0.0
    %s300 = sld [smem:[#allocation9 + $0x181]]
    %v301 = vstv %s300
    %v302 = vmul.f32 %v301, %v124
    %v303 = vmul.f32 %v301, %v125
    %v304 = vadd.f32 %v298, %v302
    %v305 = vadd.f32 %v299, %v303
    %s306 = sld [smem:[#allocation9 + $0x182]]
    %v307 = vstv %s306
    %v308 = vmul.f32 %v307, %v126
    %v309 = vmul.f32 %v307, %v127
    %v310 = vadd.f32 %v304, %v308
    %v311 = vadd.f32 %v305, %v309
    %s312 = sld [smem:[#allocation9 + $0x183]]
    %v313 = vstv %s312
    %v314 = vmul.f32 %v313, %v128
    %v315 = vmul.f32 %v313, %v129
    %v316 = vadd.f32 %v310, %v314
    %v317 = vadd.f32 %v311, %v315
    %s318 = sld [smem:[#allocation9 + $0x184]]
    %v319 = vstv %s318
    %v320 = vmul.f32 %v319, %v130
    %v321 = vmul.f32 %v319, %v131
    %v322 = vadd.f32 %v316, %v320
    %v323 = vadd.f32 %v317, %v321
    %s324 = sld [smem:[#allocation9 + $0x185]]
    %v325 = vstv %s324
    %v326 = vmul.f32 %v325, %v132
    %v327 = vmul.f32 %v325, %v133
    %v328 = vadd.f32 %v322, %v326
    %v329 = vadd.f32 %v323, %v327
    %s330 = sld [smem:[#allocation9 + $0x186]]
    %v331 = vstv %s330
    %v332 = vmul.f32 %v331, %v134
    %v333 = vmul.f32 %v331, %v135
    %v334 = vadd.f32 %v328, %v332
    %v335 = vadd.f32 %v329, %v333
    %s336 = sld [smem:[#allocation9 + $0x187]]
    %v337 = vstv %s336
    %v338 = vmul.f32 %v337, %v136
    %v339 = vmul.f32 %v337, %v137
    %v340 = vadd.f32 %v334, %v338
    %v341 = vadd.f32 %v335, %v339
    %s342 = sld [smem:[#allocation10 + $0x3]]
    %v343 = vstv %s342
    %v344 = vadd.f32 %v340, %v343
    %v345 = vadd.f32 %v341, %v343
    %s346 = sld [smem:[#allocation9 + $0x200]]
    %v347 = vstv %s346
    %v348 = vmul.f32 %v347, %v122
    %v349 = vmul.f32 %v347, %v123
    %v350 = vadd.f32 %v348, 0.0
    %v351 = vadd.f32 %v349, 0.0
    %s352 = sld [smem:[#allocation9 + $0x201]]
    %v353 = vstv %s352
    %v354 = vmul.f32 %v353, %v124
    %v355 = vmul.f32 %v353, %v125
    %v356 = vadd.f32 %v350, %v354
    %v357 = vadd.f32 %v351, %v355
    %s358 = sld [smem:[#allocation9 + $0x202]]
    %v359 = vstv %s358
    %v360 = vmul.f32 %v359, %v126
    %v361 = vmul.f32 %v359, %v127
    %v362 = vadd.f32 %v356, %v360
    %v363 = vadd.f32 %v357, %v361
    %s364 = sld [smem:[#allocation9 + $0x203]]
    %v365 = vstv %s364
    %v366 = vmul.f32 %v365, %v128
    %v367 = vmul.f32 %v365, %v129
    %v368 = vadd.f32 %v362, %v366
    %v369 = vadd.f32 %v363, %v367
    %s370 = sld [smem:[#allocation9 + $0x204]]
    %v371 = vstv %s370
    %v372 = vmul.f32 %v371, %v130
    %v373 = vmul.f32 %v371, %v131
    %v374 = vadd.f32 %v368, %v372
    %v375 = vadd.f32 %v369, %v373
    %s376 = sld [smem:[#allocation9 + $0x205]]
    %v377 = vstv %s376
    %v378 = vmul.f32 %v377, %v132
    %v379 = vmul.f32 %v377, %v133
    %v380 = vadd.f32 %v374, %v378
    %v381 = vadd.f32 %v375, %v379
    %s382 = sld [smem:[#allocation9 + $0x206]]
    %v383 = vstv %s382
    %v384 = vmul.f32 %v383, %v134
    %v385 = vmul.f32 %v383, %v135
    %v386 = vadd.f32 %v380, %v384
    %v387 = vadd.f32 %v381, %v385
    %s388 = sld [smem:[#allocation9 + $0x207]]
    %v389 = vstv %s388
    %v390 = vmul.f32 %v389, %v136
    %v391 = vmul.f32 %v389, %v137
    %v392 = vadd.f32 %v386, %v390
    %v393 = vadd.f32 %v387, %v391
    %s394 = sld [smem:[#allocation10 + $0x4]]
    %v395 = vstv %s394
    %v396 = vadd.f32 %v392, %v395
    %v397 = vadd.f32 %v393, %v395
    %s398 = sld [smem:[#allocation9 + $0x280]]
    %v399 = vstv %s398
    %v400 = vmul.f32 %v399, %v122
    %v401 = vmul.f32 %v399, %v123
    %v402 = vadd.f32 %v400, 0.0
    %v403 = vadd.f32 %v401, 0.0
    %s404 = sld [smem:[#allocation9 + $0x281]]
    %v405 = vstv %s404
    %v406 = vmul.f32 %v405, %v124
    %v407 = vmul.f32 %v405, %v125
    %v408 = vadd.f32 %v402, %v406
    %v409 = vadd.f32 %v403, %v407
    %s410 = sld [smem:[#allocation9 + $0x282]]
    %v411 = vstv %s410
    %v412 = vmul.f32 %v411, %v126
    %v413 = vmul.f32 %v411, %v127
    %v414 = vadd.f32 %v408, %v412
    %v415 = vadd.f32 %v409, %v413
    %s416 = sld [smem:[#allocation9 + $0x283]]
    %v417 = vstv %s416
    %v418 = vmul.f32 %v417, %v128
    %v419 = vmul.f32 %v417, %v129
    %v420 = vadd.f32 %v414, %v418
    %v421 = vadd.f32 %v415, %v419
    %s422 = sld [smem:[#allocation9 + $0x284]]
    %v423 = vstv %s422
    %v424 = vmul.f32 %v423, %v130
    %v425 = vmul.f32 %v423, %v131
    %v426 = vadd.f32 %v420, %v424
    %v427 = vadd.f32 %v421, %v425
    %s428 = sld [smem:[#allocation9 + $0x285]]
    %v429 = vstv %s428
    %v430 = vmul.f32 %v429, %v132
    %v431 = vmul.f32 %v429, %v133
    %v432 = vadd.f32 %v426, %v430
    %v433 = vadd.f32 %v427, %v431
    %s434 = sld [smem:[#allocation9 + $0x286]]
    %v435 = vstv %s434
    %v436 = vmul.f32 %v435, %v134
    %v437 = vmul.f32 %v435, %v135
    %v438 = vadd.f32 %v432, %v436
    %v439 = vadd.f32 %v433, %v437
    %s440 = sld [smem:[#allocation9 + $0x287]]
    %v441 = vstv %s440
    %v442 = vmul.f32 %v441, %v136
    %v443 = vmul.f32 %v441, %v137
    %v444 = vadd.f32 %v438, %v442
    %v445 = vadd.f32 %v439, %v443
    %s446 = sld [smem:[#allocation10 + $0x5]]
    %v447 = vstv %s446
    %v448 = vadd.f32 %v444, %v447
    %v449 = vadd.f32 %v445, %v447
    %s450 = sld [smem:[#allocation9 + $0x300]]
    %v451 = vstv %s450
    %v452 = vmul.f32 %v451, %v122
    %v453 = vmul.f32 %v451, %v123
    %v454 = vadd.f32 %v452, 0.0
    %v455 = vadd.f32 %v453, 0.0
    %s456 = sld [smem:[#allocation9 + $0x301]]
    %v457 = vstv %s456
    %v458 = vmul.f32 %v457, %v124
    %v459 = vmul.f32 %v457, %v125
    %v460 = vadd.f32 %v454, %v458
    %v461 = vadd.f32 %v455, %v459
    %s462 = sld [smem:[#allocation9 + $0x302]]
    %v463 = vstv %s462
    %v464 = vmul.f32 %v463, %v126
    %v465 = vmul.f32 %v463, %v127
    %v466 = vadd.f32 %v460, %v464
    %v467 = vadd.f32 %v461, %v465
    %s468 = sld [smem:[#allocation9 + $0x303]]
    %v469 = vstv %s468
    %v470 = vmul.f32 %v469, %v128
    %v471 = vmul.f32 %v469, %v129
    %v472 = vadd.f32 %v466, %v470
    %v473 = vadd.f32 %v467, %v471
    %s474 = sld [smem:[#allocation9 + $0x304]]
    %v475 = vstv %s474
    %v476 = vmul.f32 %v475, %v130
    %v477 = vmul.f32 %v475, %v131
    %v478 = vadd.f32 %v472, %v476
    %v479 = vadd.f32 %v473, %v477
    %s480 = sld [smem:[#allocation9 + $0x305]]
    %v481 = vstv %s480
    %v482 = vmul.f32 %v481, %v132
    %v483 = vmul.f32 %v481, %v133
    %v484 = vadd.f32 %v478, %v482
    %v485 = vadd.f32 %v479, %v483
    %s486 = sld [smem:[#allocation9 + $0x306]]
    %v487 = vstv %s486
    %v488 = vmul.f32 %v487, %v134
    %v489 = vmul.f32 %v487, %v135
    %v490 = vadd.f32 %v484, %v488
    %v491 = vadd.f32 %v485, %v489
    %s492 = sld [smem:[#allocation9 + $0x307]]
    %v493 = vstv %s492
    %v494 = vmul.f32 %v493, %v136
    %v495 = vmul.f32 %v493, %v137
    %v496 = vadd.f32 %v490, %v494
    %v497 = vadd.f32 %v491, %v495
    %s498 = sld [smem:[#allocation10 + $0x6]]
    %v499 = vstv %s498
    %v500 = vadd.f32 %v496, %v499
    %v501 = vadd.f32 %v497, %v499
    %s502 = sld [smem:[#allocation9 + $0x380]]
    %v503 = vstv %s502
    %v504 = vmul.f32 %v503, %v122
    %v505 = vmul.f32 %v503, %v123
    %v506 = vadd.f32 %v504, 0.0
    %v507 = vadd.f32 %v505, 0.0
    %s508 = sld [smem:[#allocation9 + $0x381]]
    %v509 = vstv %s508
    %v510 = vmul.f32 %v509, %v124
    %v511 = vmul.f32 %v509, %v125
    %v512 = vadd.f32 %v506, %v510
    %v513 = vadd.f32 %v507, %v511
    %s514 = sld [smem:[#allocation9 + $0x382]]
    %v515 = vstv %s514
    %v516 = vmul.f32 %v515, %v126
    %v517 = vmul.f32 %v515, %v127
    %v518 = vadd.f32 %v512, %v516
    %v519 = vadd.f32 %v513, %v517
    %s520 = sld [smem:[#allocation9 + $0x383]]
    %v521 = vstv %s520
    %v522 = vmul.f32 %v521, %v128
    %v523 = vmul.f32 %v521, %v129
    %v524 = vadd.f32 %v518, %v522
    %v525 = vadd.f32 %v519, %v523
    %s526 = sld [smem:[#allocation9 + $0x384]]
    %v527 = vstv %s526
    %v528 = vmul.f32 %v527, %v130
    %v529 = vmul.f32 %v527, %v131
    %v530 = vadd.f32 %v524, %v528
    %v531 = vadd.f32 %v525, %v529
    %s532 = sld [smem:[#allocation9 + $0x385]]
    %v533 = vstv %s532
    %v534 = vmul.f32 %v533, %v132
    %v535 = vmul.f32 %v533, %v133
    %v536 = vadd.f32 %v530, %v534
    %v537 = vadd.f32 %v531, %v535
    %s538 = sld [smem:[#allocation9 + $0x386]]
    %v539 = vstv %s538
    %v540 = vmul.f32 %v539, %v134
    %v541 = vmul.f32 %v539, %v135
    %v542 = vadd.f32 %v536, %v540
    %v543 = vadd.f32 %v537, %v541
    %s544 = sld [smem:[#allocation9 + $0x387]]
    %v545 = vstv %s544
    %v546 = vmul.f32 %v545, %v136
    %v547 = vmul.f32 %v545, %v137
    %v548 = vadd.f32 %v542, %v546
    %v549 = vadd.f32 %v543, %v547
    %s550 = sld [smem:[#allocation10 + $0x7]]
    %v551 = vstv %s550
    %v552 = vadd.f32 %v548, %v551
    %v553 = vadd.f32 %v549, %v551
    %vm554 = vcmask 261120
    %v556 = vsel %vm554, 0.0, 0
    %v559 = vsel %vm554, %v101, 0
    %561 = vmatprep.subr.mxu0 0.0
    %562 = vmatpush1.xpose.msra.mxu0 %v559
    %563 = vmatprep.subr.mxu0 0.0
    %564 = vmatpush1.xpose.msra.mxu0 0.0
    %565 = vmatprep.subr.mxu0 0.0
    %566 = vmatpush1.xpose.msra.mxu0 0.0
    %567 = vmatprep.subr.mxu0 0.0
    %568 = vmatpush1.xpose.msra.mxu0 0.0
    %569 = vmatprep.subr.mxu0 0.0
    %570 = vmatpush1.xpose.msra.mxu0 0.0
    %571 = vmatprep.subr.mxu0 0.0
    %572 = vmatpush1.xpose.msra.mxu0 0.0
    %573 = vmatprep.subr.mxu0 0.0
    %574 = vmatpush1.xpose.msra.mxu0 0.0
    %575 = vmatprep.subr.mxu0 0.0
    %576 = vmatpush1.xpose.msra.mxu0 0.0
    %577 = vmatprep.subr.mxu0 0.0
    %578 = vmatpush1.xpose.msra.mxu0 0.0
    %579 = vmatprep.subr.mxu0 0.0
    %580 = vmatpush1.xpose.msra.mxu0 0.0
    %581 = vmatprep.subr.mxu0 0.0
    %582 = vmatpush1.xpose.msra.mxu0 0.0
    %583 = vmatprep.subr.mxu0 0.0
    %584 = vmatpush1.xpose.msra.mxu0 0.0
    %585 = vmatprep.subr.mxu0 0.0
    %586 = vmatpush1.xpose.msra.mxu0 0.0
    %587 = vmatprep.subr.mxu0 0.0
    %588 = vmatpush1.xpose.msra.mxu0 0.0
    %589 = vmatprep.subr.mxu0 0.0
    %590 = vmatpush1.xpose.msra.mxu0 0.0
    %591 = vmatprep.subr.mxu0 0.0
    %592 = vmatpush1.xpose.msra.mxu0 0.0
    %593 = vmatprep.subr.mxu0 0.0
    %594 = vmatpush1.xpose.msra.mxu0 0.0
    %595 = vmatprep.subr.mxu0 0.0
    %596 = vmatpush1.xpose.msra.mxu0 0.0
    %597 = vmatprep.subr.mxu0 0.0
    %598 = vmatpush1.xpose.msra.mxu0 0.0
    %599 = vmatprep.subr.mxu0 0.0
    %600 = vmatpush1.xpose.msra.mxu0 0.0
    %601 = vmatprep.subr.mxu0 0.0
    %602 = vmatpush1.xpose.msra.mxu0 0.0
    %603 = vmatprep.subr.mxu0 0.0
    %604 = vmatpush1.xpose.msra.mxu0 0.0
    %605 = vmatprep.subr.mxu0 0.0
    %606 = vmatpush1.xpose.msra.mxu0 0.0
    %607 = vmatprep.subr.mxu0 0.0
    %608 = vmatpush1.xpose.msra.mxu0 0.0
    %609 = vmatprep.subr.mxu0 0.0
    %610 = vmatpush1.xpose.msra.mxu0 0.0
    %611 = vmatprep.subr.mxu0 0.0
    %612 = vmatpush1.xpose.msra.mxu0 0.0
    %613 = vmatprep.subr.mxu0 0.0
    %614 = vmatpush1.xpose.msra.mxu0 0.0
    %615 = vmatprep.subr.mxu0 0.0
    %616 = vmatpush1.xpose.msra.mxu0 0.0
    %617 = vmatprep.subr.mxu0 0.0
    %618 = vmatpush1.xpose.msra.mxu0 0.0
    %619 = vmatprep.subr.mxu0 0.0
    %620 = vmatpush1.xpose.msra.mxu0 0.0
    %621 = vmatprep.subr.mxu0 0.0
    %622 = vmatpush1.xpose.msra.mxu0 0.0
    %623 = vmatprep.subr.mxu0 0.0
    %624 = vmatpush1.xpose.msra.mxu0 0.0
    %625 = vmatprep.mubr.f32.mxu0 0.0
    %626 = vmatmul.mubr.f32.gmra.mrb[0].mxu0 %v556
    %v627 = vpop.f32.mrb[0].mxu0
    %v628 = vadd.f32 0.0, %v627
    %v629 = vpop.f32.mrb[0].mxu0
    %630 = vdwg.mxu0
    %v632 = vsel %vm554, %v100, 0
    %634 = vmatprep.subr.mxu0 0.0
    %635 = vmatpush1.xpose.msra.mxu0 %v632
    %636 = vmatprep.subr.mxu0 0.0
    %637 = vmatpush1.xpose.msra.mxu0 0.0
    %638 = vmatprep.subr.mxu0 0.0
    %639 = vmatpush1.xpose.msra.mxu0 0.0
    %640 = vmatprep.subr.mxu0 0.0
    %641 = vmatpush1.xpose.msra.mxu0 0.0
    %642 = vmatprep.subr.mxu0 0.0
    %643 = vmatpush1.xpose.msra.mxu0 0.0
    %644 = vmatprep.subr.mxu0 0.0
    %645 = vmatpush1.xpose.msra.mxu0 0.0
    %646 = vmatprep.subr.mxu0 0.0
    %647 = vmatpush1.xpose.msra.mxu0 0.0
    %648 = vmatprep.subr.mxu0 0.0
    %649 = vmatpush1.xpose.msra.mxu0 0.0
    %650 = vmatprep.subr.mxu0 0.0
    %651 = vmatpush1.xpose.msra.mxu0 0.0
    %652 = vmatprep.subr.mxu0 0.0
    %653 = vmatpush1.xpose.msra.mxu0 0.0
    %654 = vmatprep.subr.mxu0 0.0
    %655 = vmatpush1.xpose.msra.mxu0 0.0
    %656 = vmatprep.subr.mxu0 0.0
    %657 = vmatpush1.xpose.msra.mxu0 0.0
    %658 = vmatprep.subr.mxu0 0.0
    %659 = vmatpush1.xpose.msra.mxu0 0.0
    %660 = vmatprep.subr.mxu0 0.0
    %661 = vmatpush1.xpose.msra.mxu0 0.0
    %662 = vmatprep.subr.mxu0 0.0
    %663 = vmatpush1.xpose.msra.mxu0 0.0
    %664 = vmatprep.subr.mxu0 0.0
    %665 = vmatpush1.xpose.msra.mxu0 0.0
    %666 = vmatprep.subr.mxu0 0.0
    %667 = vmatpush1.xpose.msra.mxu0 0.0
    %668 = vmatprep.subr.mxu0 0.0
    %669 = vmatpush1.xpose.msra.mxu0 0.0
    %670 = vmatprep.subr.mxu0 0.0
    %671 = vmatpush1.xpose.msra.mxu0 0.0
    %672 = vmatprep.subr.mxu0 0.0
    %673 = vmatpush1.xpose.msra.mxu0 0.0
    %674 = vmatprep.subr.mxu0 0.0
    %675 = vmatpush1.xpose.msra.mxu0 0.0
    %676 = vmatprep.subr.mxu0 0.0
    %677 = vmatpush1.xpose.msra.mxu0 0.0
    %678 = vmatprep.subr.mxu0 0.0
    %679 = vmatpush1.xpose.msra.mxu0 0.0
    %680 = vmatprep.subr.mxu0 0.0
    %681 = vmatpush1.xpose.msra.mxu0 0.0
    %682 = vmatprep.subr.mxu0 0.0
    %683 = vmatpush1.xpose.msra.mxu0 0.0
    %684 = vmatprep.subr.mxu0 0.0
    %685 = vmatpush1.xpose.msra.mxu0 0.0
    %686 = vmatprep.subr.mxu0 0.0
    %687 = vmatpush1.xpose.msra.mxu0 0.0
    %688 = vmatprep.subr.mxu0 0.0
    %689 = vmatpush1.xpose.msra.mxu0 0.0
    %690 = vmatprep.subr.mxu0 0.0
    %691 = vmatpush1.xpose.msra.mxu0 0.0
    %692 = vmatprep.subr.mxu0 0.0
    %693 = vmatpush1.xpose.msra.mxu0 0.0
    %694 = vmatprep.subr.mxu0 0.0
    %695 = vmatpush1.xpose.msra.mxu0 0.0
    %696 = vmatprep.subr.mxu0 0.0
    %697 = vmatpush1.xpose.msra.mxu0 0.0
    %698 = vmatprep.mubr.f32.mxu0 0.0
    %699 = vmatmul.mubr.f32.gmra.mrb[0].mxu0 %v556
    %v700 = vpop.f32.mrb[0].mxu0
    %v701 = vadd.f32 %v628, %v700
    %v702 = vpop.f32.mrb[0].mxu0
    %703 = vdwg.mxu0
    %v704 = vadd.f32 %v701, %v113
    %s705 = sld [smem:[#allocation12]]
    %707 = vset.pattern.permute.xlu0 0
    %708 = vperm.xlu0 %707, %v704
    %v709 = vpop.permute.xlu0 %708
    %v713 = vrot.slane %v189, 7
    %vm714 = vcmask 1041409
    %v715 = vsel %vm714, %v713, %v188
    %v717 = vadd.f32 %v709, %v715
    %v718 = vtanh.pop %v717
    %v719 = vstv %s705
    %v720 = vmul.f32 %v719, %v718
    %v721 = vadd.f32 %v720, 0.0
    %s722 = sld [smem:[#allocation12 + $0x1]]
    %723 = vset.pattern.permute.xlu0 1
    %724 = vperm.xlu0 %723, %v704
    %v725 = vpop.permute.xlu0 %724
    %v729 = vrot.slane %v241, 7
    %v730 = vsel %vm714, %v729, %v240
    %v732 = vadd.f32 %v725, %v730
    %v733 = vtanh.pop %v732
    %v734 = vstv %s722
    %v735 = vmul.f32 %v734, %v733
    %v736 = vadd.f32 %v721, %v735
    %s737 = sld [smem:[#allocation12 + $0x2]]
    %738 = vset.pattern.permute.xlu0 2
    %739 = vperm.xlu0 %738, %v704
    %v740 = vpop.permute.xlu0 %739
    %v744 = vrot.slane %v293, 7
    %v745 = vsel %vm714, %v744, %v292
    %v747 = vadd.f32 %v740, %v745
    %v748 = vtanh.pop %v747
    %v749 = vstv %s737
    %v750 = vmul.f32 %v749, %v748
    %v751 = vadd.f32 %v736, %v750
    %s752 = sld [smem:[#allocation12 + $0x3]]
    %753 = vset.pattern.permute.xlu0 3
    %754 = vperm.xlu0 %753, %v704
    %v755 = vpop.permute.xlu0 %754
    %v759 = vrot.slane %v345, 7
    %v760 = vsel %vm714, %v759, %v344
    %v762 = vadd.f32 %v755, %v760
    %v763 = vtanh.pop %v762
    %v764 = vstv %s752
    %v765 = vmul.f32 %v764, %v763
    %v766 = vadd.f32 %v751, %v765
    %s767 = sld [smem:[#allocation12 + $0x4]]
    %768 = vset.pattern.permute.xlu0 4
    %769 = vperm.xlu0 %768, %v704
    %v770 = vpop.permute.xlu0 %769
    %v774 = vrot.slane %v397, 7
    %v775 = vsel %vm714, %v774, %v396
    %v777 = vadd.f32 %v770, %v775
    %v778 = vtanh.pop %v777
    %v779 = vstv %s767
    %v780 = vmul.f32 %v779, %v778
    %v781 = vadd.f32 %v766, %v780
    %s782 = sld [smem:[#allocation12 + $0x5]]
    %783 = vset.pattern.permute.xlu0 5
    %784 = vperm.xlu0 %783, %v704
    %v785 = vpop.permute.xlu0 %784
    %v789 = vrot.slane %v449, 7
    %v790 = vsel %vm714, %v789, %v448
    %v792 = vadd.f32 %v785, %v790
    %v793 = vtanh.pop %v792
    %v794 = vstv %s782
    %v795 = vmul.f32 %v794, %v793
    %v796 = vadd.f32 %v781, %v795
    %s797 = sld [smem:[#allocation12 + $0x6]]
    %798 = vset.pattern.permute.xlu0 6
    %799 = vperm.xlu0 %798, %v704
    %v800 = vpop.permute.xlu0 %799
    %v804 = vrot.slane %v501, 7
    %v805 = vsel %vm714, %v804, %v500
    %v807 = vadd.f32 %v800, %v805
    %v808 = vtanh.pop %v807
    %v809 = vstv %s797
    %v810 = vmul.f32 %v809, %v808
    %v811 = vadd.f32 %v796, %v810
    %s812 = sld [smem:[#allocation12 + $0x7]]
    %813 = vset.pattern.permute.xlu0 7
    %814 = vperm.xlu0 %813, %v704
    %v815 = vpop.permute.xlu0 %814
    %v819 = vrot.slane %v553, 7
    %v820 = vsel %vm714, %v819, %v552
    %v822 = vadd.f32 %v815, %v820
    %v823 = vtanh.pop %v822
    %v824 = vstv %s812
    %v825 = vmul.f32 %v824, %v823
    %v826 = vadd.f32 %v811, %v825
    %v827 = vstv %s107
    %v828 = vadd.f32 %v826, %v827
    %vm829 = vcmask 25600
    %v830 = vsel %vm829, %v828, -inf
    %831 = vmax.xlane.f32.xlu0 %v830
    %v832 = vpop.xlane.xlu0 %831
    %v833 = vsub.f32 %v828, %v832
    %v834 = vmul.f32 %v833, 1.442695
    %v835 = vpow.pop %v834
    %v836 = vsel %vm829, %v835, 0.0
    %837 = vadd.xlane.f32.xlu0 %v836
    %v838 = vpop.xlane.xlu0 %837
    %v839 = vrcp.pop %v838
    %v840 = vmul.f32 %v835, %v839
    %v843 = vrot.slane %v123, 7
    %v844 = vsel %vm714, %v843, %v122
    %v846 = vmul.f32 %v840, %v844
    %vm847 = vcmask 31744
    %v848 = vsel %vm847, %v846, 0.0
    %vm849 = vcmask 293888
    %v851 = vsel %vm849, %v848, 0
    %vm853 = vcmask 1043456
    %v855 = vsel %vm853, %v106, 0
    %857 = vmatprep.subr.mxu0 0.0
    %858 = vmatpush1.msra.mxu0 %v102
    %859 = vmatprep.subr.mxu0 0.0
    %860 = vmatpush1.msra.mxu0 %v103
    %861 = vmatprep.subr.mxu0 0.0
    %862 = vmatpush1.msra.mxu0 %v104
    %863 = vmatprep.subr.mxu0 0.0
    %864 = vmatpush1.msra.mxu0 %v105
    %865 = vmatprep.subr.mxu0 0.0
    %866 = vmatpush1.msra.mxu0 %v855
    %867 = vmatprep.subr.mxu0 0.0
    %868 = vmatpush1.msra.mxu0 0.0
    %869 = vmatprep.subr.mxu0 0.0
    %870 = vmatpush1.msra.mxu0 0.0
    %871 = vmatprep.subr.mxu0 0.0
    %872 = vmatpush1.msra.mxu0 0.0
    %873 = vmatprep.subr.mxu0 0.0
    %874 = vmatpush1.msra.mxu0 0.0
    %875 = vmatprep.subr.mxu0 0.0
    %876 = vmatpush1.msra.mxu0 0.0
    %877 = vmatprep.subr.mxu0 0.0
    %878 = vmatpush1.msra.mxu0 0.0
    %879 = vmatprep.subr.mxu0 0.0
    %880 = vmatpush1.msra.mxu0 0.0
    %881 = vmatprep.subr.mxu0 0.0
    %882 = vmatpush1.msra.mxu0 0.0
    %883 = vmatprep.subr.mxu0 0.0
    %884 = vmatpush1.msra.mxu0 0.0
    %885 = vmatprep.subr.mxu0 0.0
    %886 = vmatpush1.msra.mxu0 0.0
    %887 = vmatprep.subr.mxu0 0.0
    %888 = vmatpush1.msra.mxu0 0.0
    %889 = vmatprep.subr.mxu0 0.0
    %890 = vmatpush1.msra.mxu0 0.0
    %891 = vmatprep.subr.mxu0 0.0
    %892 = vmatpush1.msra.mxu0 0.0
    %893 = vmatprep.subr.mxu0 0.0
    %894 = vmatpush1.msra.mxu0 0.0
    %895 = vmatprep.subr.mxu0 0.0
    %896 = vmatpush1.msra.mxu0 0.0
    %897 = vmatprep.subr.mxu0 0.0
    %898 = vmatpush1.msra.mxu0 0.0
    %899 = vmatprep.subr.mxu0 0.0
    %900 = vmatpush1.msra.mxu0 0.0
    %901 = vmatprep.subr.mxu0 0.0
    %902 = vmatpush1.msra.mxu0 0.0
    %903 = vmatprep.subr.mxu0 0.0
    %904 = vmatpush1.msra.mxu0 0.0
    %905 = vmatprep.subr.mxu0 0.0
    %906 = vmatpush1.msra.mxu0 0.0
    %907 = vmatprep.subr.mxu0 0.0
    %908 = vmatpush1.msra.mxu0 0.0
    %909 = vmatprep.subr.mxu0 0.0
    %910 = vmatpush1.msra.mxu0 0.0
    %911 = vmatprep.subr.mxu0 0.0
    %912 = vmatpush1.msra.mxu0 0.0
    %913 = vmatprep.subr.mxu0 0.0
    %914 = vmatpush1.msra.mxu0 0.0
    %915 = vmatprep.subr.mxu0 0.0
    %916 = vmatpush1.msra.mxu0 0.0
    %917 = vmatprep.subr.mxu0 0.0
    %918 = vmatpush1.msra.mxu0 0.0
    %919 = vmatprep.subr.mxu0 0.0
    %920 = vmatpush1.msra.mxu0 0.0
    %921 = vmatprep.mubr.f32.mxu0 0.0
    %922 = vmatmul.mubr.f32.gmra.mrb[0].mxu0 %v851
    %v923 = vpop.f32.mrb[0].mxu0
    %v924 = vadd.f32 %v120, %v923
    %v925 = vpop.f32.mrb[0].mxu0
    %926 = vdwg.mxu0
    %v927 = vxor.u32 %v924, 2147483648
    %v928 = vmul.f32 %v927, 1.442695
    %v929 = vpow.pop %v928
    %v930 = vadd.f32 %v929, 1.0
    %v931 = vrcp.pop %v930
    %v932 = vmul.f32 1.0, %v931
    %v933 = vtanh.pop %v924
    %v934 = vmul.f32 %v932, 0.0
    %936 = vrot.lane.b32.xlu0 %v933, 64
    %v937 = vpop.permute.xlu0 %936
    %v939 = vmul.f32 %v932, %v937
    %941 = vrot.lane.b32.xlu0 %v939, 32
    %v942 = vpop.permute.xlu0 %941
    %v944 = vadd.f32 %v934, %v942
    %v945 = vtanh.pop %v944
    %947 = vrot.lane.b32.xlu0 %v945, 64
    %v948 = vpop.permute.xlu0 %947
    %v950 = vmul.f32 %v932, %v948
    %v953 = vunpack.c.l.s4 1966171168
    %v954 = vunpack.c.0.s8 %v953
    %v955 = vlaneseq
    %v956 = vshrl.u32 %v955, 7
    %v957 = vsub.s32 %v954, %v956
    %v958 = vrot.slane %v950, %v957
    %v959 = vcombine.high %v958, %v958
    %v961 = vunpack.c.l.s4 1966171168
    %v962 = vunpack.c.0.s8 %v961
    %v963 = vlaneseq
    %v964 = vshrl.u32 %v963, 7
    %v965 = vsub.s32 %v962, %v964
    %v966 = vrot.slane %v958, %v965
    %v968 = vunpack.c.l.s4 1966171168
    %v969 = vunpack.c.0.s8 %v968
    %v970 = vlaneseq
    %v971 = vshrl.u32 %v970, 7
    %v972 = vsub.s32 %v969, %v971
    %v973 = vrot.slane %v959, %v972
    %v974 = vlaneseq
    %v975 = vshrl.u32 %v974, 7
    %v976 = vsub.s32 0, %v975
    %v977 = vrot.slane %v966, %v976
    %v978 = vlaneseq
    %v979 = vshrl.u32 %v978, 7
    %v980 = vsub.s32 0, %v979
    %v981 = vrot.slane %v973, %v980
    %982 = vrot.lane.b32.xlu0 %v977, 32
    %v983 = vpop.permute.xlu0 %982
    %984 = vrot.lane.b32.xlu0 %v981, 32
    %v985 = vpop.permute.xlu0 %984
    %vm988 = vcmask 253952
    %989 = vst.msk [vmem:[#allocation13] sm:$0x1] %vm988, %v983
    %990 = vst.msk [vmem:[#allocation13 + $0x8] sm:$0x1] %vm988, %v985
    %992 = vrot.lane.b32.xlu0 %v944, 96
    %v993 = vpop.permute.xlu0 %992
    %v994 = vsel %vm554, %v993, 0
    %996 = vmatprep.subr.mxu0 0.0
    %997 = vmatpush1.xpose.msra.mxu0 %v559
    %998 = vmatprep.subr.mxu0 0.0
    %999 = vmatpush1.xpose.msra.mxu0 0.0
    %1000 = vmatprep.subr.mxu0 0.0
    %1001 = vmatpush1.xpose.msra.mxu0 0.0
    %1002 = vmatprep.subr.mxu0 0.0
    %1003 = vmatpush1.xpose.msra.mxu0 0.0
    %1004 = vmatprep.subr.mxu0 0.0
    %1005 = vmatpush1.xpose.msra.mxu0 0.0
    %1006 = vmatprep.subr.mxu0 0.0
    %1007 = vmatpush1.xpose.msra.mxu0 0.0
    %1008 = vmatprep.subr.mxu0 0.0
    %1009 = vmatpush1.xpose.msra.mxu0 0.0
    %1010 = vmatprep.subr.mxu0 0.0
    %1011 = vmatpush1.xpose.msra.mxu0 0.0
    %1012 = vmatprep.subr.mxu0 0.0
    %1013 = vmatpush1.xpose.msra.mxu0 0.0
    %1014 = vmatprep.subr.mxu0 0.0
    %1015 = vmatpush1.xpose.msra.mxu0 0.0
    %1016 = vmatprep.subr.mxu0 0.0
    %1017 = vmatpush1.xpose.msra.mxu0 0.0
    %1018 = vmatprep.subr.mxu0 0.0
    %1019 = vmatpush1.xpose.msra.mxu0 0.0
    %1020 = vmatprep.subr.mxu0 0.0
    %1021 = vmatpush1.xpose.msra.mxu0 0.0
    %1022 = vmatprep.subr.mxu0 0.0
    %1023 = vmatpush1.xpose.msra.mxu0 0.0
    %1024 = vmatprep.subr.mxu0 0.0
    %1025 = vmatpush1.xpose.msra.mxu0 0.0
    %1026 = vmatprep.subr.mxu0 0.0
    %1027 = vmatpush1.xpose.msra.mxu0 0.0
    %1028 = vmatprep.subr.mxu0 0.0
    %1029 = vmatpush1.xpose.msra.mxu0 0.0
    %1030 = vmatprep.subr.mxu0 0.0
    %1031 = vmatpush1.xpose.msra.mxu0 0.0
    %1032 = vmatprep.subr.mxu0 0.0
    %1033 = vmatpush1.xpose.msra.mxu0 0.0
    %1034 = vmatprep.subr.mxu0 0.0
    %1035 = vmatpush1.xpose.msra.mxu0 0.0
    %1036 = vmatprep.subr.mxu0 0.0
    %1037 = vmatpush1.xpose.msra.mxu0 0.0
    %1038 = vmatprep.subr.mxu0 0.0
    %1039 = vmatpush1.xpose.msra.mxu0 0.0
    %1040 = vmatprep.subr.mxu0 0.0
    %1041 = vmatpush1.xpose.msra.mxu0 0.0
    %1042 = vmatprep.subr.mxu0 0.0
    %1043 = vmatpush1.xpose.msra.mxu0 0.0
    %1044 = vmatprep.subr.mxu0 0.0
    %1045 = vmatpush1.xpose.msra.mxu0 0.0
    %1046 = vmatprep.subr.mxu0 0.0
    %1047 = vmatpush1.xpose.msra.mxu0 0.0
    %1048 = vmatprep.subr.mxu0 0.0
    %1049 = vmatpush1.xpose.msra.mxu0 0.0
    %1050 = vmatprep.subr.mxu0 0.0
    %1051 = vmatpush1.xpose.msra.mxu0 0.0
    %1052 = vmatprep.subr.mxu0 0.0
    %1053 = vmatpush1.xpose.msra.mxu0 0.0
    %1054 = vmatprep.subr.mxu0 0.0
    %1055 = vmatpush1.xpose.msra.mxu0 0.0
    %1056 = vmatprep.subr.mxu0 0.0
    %1057 = vmatpush1.xpose.msra.mxu0 0.0
    %1058 = vmatprep.subr.mxu0 0.0
    %1059 = vmatpush1.xpose.msra.mxu0 0.0
    %1060 = vmatprep.mubr.f32.mxu0 0.0
    %1061 = vmatmul.mubr.f32.gmra.mrb[0].mxu0 %v994
    %v1062 = vpop.f32.mrb[0].mxu0
    %v1063 = vadd.f32 0.0, %v1062
    %v1064 = vpop.f32.mrb[0].mxu0
    %1065 = vdwg.mxu0
    %1066 = vrot.lane.b32.xlu0 %v950, 32
    %v1067 = vpop.permute.xlu0 %1066
    %v1068 = vsel %vm554, %v1067, 0
    %1070 = vmatprep.subr.mxu0 0.0
    %1071 = vmatpush1.xpose.msra.mxu0 %v632
    %1072 = vmatprep.subr.mxu0 0.0
    %1073 = vmatpush1.xpose.msra.mxu0 0.0
    %1074 = vmatprep.subr.mxu0 0.0
    %1075 = vmatpush1.xpose.msra.mxu0 0.0
    %1076 = vmatprep.subr.mxu0 0.0
    %1077 = vmatpush1.xpose.msra.mxu0 0.0
    %1078 = vmatprep.subr.mxu0 0.0
    %1079 = vmatpush1.xpose.msra.mxu0 0.0
    %1080 = vmatprep.subr.mxu0 0.0
    %1081 = vmatpush1.xpose.msra.mxu0 0.0
    %1082 = vmatprep.subr.mxu0 0.0
    %1083 = vmatpush1.xpose.msra.mxu0 0.0
    %1084 = vmatprep.subr.mxu0 0.0
    %1085 = vmatpush1.xpose.msra.mxu0 0.0
    %1086 = vmatprep.subr.mxu0 0.0
    %1087 = vmatpush1.xpose.msra.mxu0 0.0
    %1088 = vmatprep.subr.mxu0 0.0
    %1089 = vmatpush1.xpose.msra.mxu0 0.0
    %1090 = vmatprep.subr.mxu0 0.0
    %1091 = vmatpush1.xpose.msra.mxu0 0.0
    %1092 = vmatprep.subr.mxu0 0.0
    %1093 = vmatpush1.xpose.msra.mxu0 0.0
    %1094 = vmatprep.subr.mxu0 0.0
    %1095 = vmatpush1.xpose.msra.mxu0 0.0
    %1096 = vmatprep.subr.mxu0 0.0
    %1097 = vmatpush1.xpose.msra.mxu0 0.0
    %1098 = vmatprep.subr.mxu0 0.0
    %1099 = vmatpush1.xpose.msra.mxu0 0.0
    %1100 = vmatprep.subr.mxu0 0.0
    %1101 = vmatpush1.xpose.msra.mxu0 0.0
    %1102 = vmatprep.subr.mxu0 0.0
    %1103 = vmatpush1.xpose.msra.mxu0 0.0
    %1104 = vmatprep.subr.mxu0 0.0
    %1105 = vmatpush1.xpose.msra.mxu0 0.0
    %1106 = vmatprep.subr.mxu0 0.0
    %1107 = vmatpush1.xpose.msra.mxu0 0.0
    %1108 = vmatprep.subr.mxu0 0.0
    %1109 = vmatpush1.xpose.msra.mxu0 0.0
    %1110 = vmatprep.subr.mxu0 0.0
    %1111 = vmatpush1.xpose.msra.mxu0 0.0
    %1112 = vmatprep.subr.mxu0 0.0
    %1113 = vmatpush1.xpose.msra.mxu0 0.0
    %1114 = vmatprep.subr.mxu0 0.0
    %1115 = vmatpush1.xpose.msra.mxu0 0.0
    %1116 = vmatprep.subr.mxu0 0.0
    %1117 = vmatpush1.xpose.msra.mxu0 0.0
    %1118 = vmatprep.subr.mxu0 0.0
    %1119 = vmatpush1.xpose.msra.mxu0 0.0
    %1120 = vmatprep.subr.mxu0 0.0
    %1121 = vmatpush1.xpose.msra.mxu0 0.0
    %1122 = vmatprep.subr.mxu0 0.0
    %1123 = vmatpush1.xpose.msra.mxu0 0.0
    %1124 = vmatprep.subr.mxu0 0.0
    %1125 = vmatpush1.xpose.msra.mxu0 0.0
    %1126 = vmatprep.subr.mxu0 0.0
    %1127 = vmatpush1.xpose.msra.mxu0 0.0
    %1128 = vmatprep.subr.mxu0 0.0
    %1129 = vmatpush1.xpose.msra.mxu0 0.0
    %1130 = vmatprep.subr.mxu0 0.0
    %1131 = vmatpush1.xpose.msra.mxu0 0.0
    %1132 = vmatprep.subr.mxu0 0.0
    %1133 = vmatpush1.xpose.msra.mxu0 0.0
    %1134 = vmatprep.mubr.f32.mxu0 0.0
    %1135 = vmatmul.mubr.f32.gmra.mrb[0].mxu0 %v1068
    %v1136 = vpop.f32.mrb[0].mxu0
    %v1137 = vadd.f32 %v1063, %v1136
    %v1138 = vpop.f32.mrb[0].mxu0
    %1139 = vdwg.mxu0
    %v1140 = vadd.f32 %v1137, %v113
    %s1141 = sld [smem:[#allocation12]]
    %1143 = vset.pattern.permute.xlu0 0
    %1144 = vperm.xlu0 %1143, %v1140
    %v1145 = vpop.permute.xlu0 %1144
    %v1147 = vadd.f32 %v1145, %v715
    %v1148 = vtanh.pop %v1147
    %v1149 = vstv %s1141
    %v1150 = vmul.f32 %v1149, %v1148
    %v1151 = vadd.f32 %v1150, 0.0
    %s1152 = sld [smem:[#allocation12 + $0x1]]
    %1153 = vset.pattern.permute.xlu0 1
    %1154 = vperm.xlu0 %1153, %v1140
    %v1155 = vpop.permute.xlu0 %1154
    %v1157 = vadd.f32 %v1155, %v730
    %v1158 = vtanh.pop %v1157
    %v1159 = vstv %s1152
    %v1160 = vmul.f32 %v1159, %v1158
    %v1161 = vadd.f32 %v1151, %v1160
    %s1162 = sld [smem:[#allocation12 + $0x2]]
    %1163 = vset.pattern.permute.xlu0 2
    %1164 = vperm.xlu0 %1163, %v1140
    %v1165 = vpop.permute.xlu0 %1164
    %v1167 = vadd.f32 %v1165, %v745
    %v1168 = vtanh.pop %v1167
    %v1169 = vstv %s1162
    %v1170 = vmul.f32 %v1169, %v1168
    %v1171 = vadd.f32 %v1161, %v1170
    %s1172 = sld [smem:[#allocation12 + $0x3]]
    %1173 = vset.pattern.permute.xlu0 3
    %1174 = vperm.xlu0 %1173, %v1140
    %v1175 = vpop.permute.xlu0 %1174
    %v1177 = vadd.f32 %v1175, %v760
    %v1178 = vtanh.pop %v1177
    %v1179 = vstv %s1172
    %v1180 = vmul.f32 %v1179, %v1178
    %v1181 = vadd.f32 %v1171, %v1180
    %s1182 = sld [smem:[#allocation12 + $0x4]]
    %1183 = vset.pattern.permute.xlu0 4
    %1184 = vperm.xlu0 %1183, %v1140
    %v1185 = vpop.permute.xlu0 %1184
    %v1187 = vadd.f32 %v1185, %v775
    %v1188 = vtanh.pop %v1187
    %v1189 = vstv %s1182
    %v1190 = vmul.f32 %v1189, %v1188
    %v1191 = vadd.f32 %v1181, %v1190
    %s1192 = sld [smem:[#allocation12 + $0x5]]
    %1193 = vset.pattern.permute.xlu0 5
    %1194 = vperm.xlu0 %1193, %v1140
    %v1195 = vpop.permute.xlu0 %1194
    %v1197 = vadd.f32 %v1195, %v790
    %v1198 = vtanh.pop %v1197
    %v1199 = vstv %s1192
    %v1200 = vmul.f32 %v1199, %v1198
    %v1201 = vadd.f32 %v1191, %v1200
    %s1202 = sld [smem:[#allocation12 + $0x6]]
    %1203 = vset.pattern.permute.xlu0 6
    %1204 = vperm.xlu0 %1203, %v1140
    %v1205 = vpop.permute.xlu0 %1204
    %v1207 = vadd.f32 %v1205, %v805
    %v1208 = vtanh.pop %v1207
    %v1209 = vstv %s1202
    %v1210 = vmul.f32 %v1209, %v1208
    %v1211 = vadd.f32 %v1201, %v1210
    %s1212 = sld [smem:[#allocation12 + $0x7]]
    %1213 = vset.pattern.permute.xlu0 7
    %1214 = vperm.xlu0 %1213, %v1140
    %v1215 = vpop.permute.xlu0 %1214
    %v1217 = vadd.f32 %v1215, %v820
    %v1218 = vtanh.pop %v1217
    %v1219 = vstv %s1212
    %v1220 = vmul.f32 %v1219, %v1218
    %v1221 = vadd.f32 %v1211, %v1220
    %v1222 = vadd.f32 %v1221, %v827
    %v1223 = vsel %vm829, %v1222, -inf
    %1224 = vmax.xlane.f32.xlu0 %v1223
    %v1225 = vpop.xlane.xlu0 %1224
    %v1226 = vsub.f32 %v1222, %v1225
    %v1227 = vmul.f32 %v1226, 1.442695
    %v1228 = vpow.pop %v1227
    %v1229 = vsel %vm829, %v1228, 0.0
    %1230 = vadd.xlane.f32.xlu0 %v1229
    %v1231 = vpop.xlane.xlu0 %1230
    %v1232 = vrcp.pop %v1231
    %v1233 = vmul.f32 %v1228, %v1232
    %v1236 = vrot.slane %v125, 7
    %v1237 = vsel %vm714, %v1236, %v124
    %v1239 = vmul.f32 %v1233, %v1237
    %1240 = vrot.lane.b32.xlu0 %v950, 36
    %v1241 = vpop.permute.xlu0 %1240
    %v1243 = vsel %vm847, %v1239, %v1241
    %v1245 = vsel %vm849, %v1243, 0
    %1247 = vmatprep.subr.mxu0 0.0
    %1248 = vmatpush1.msra.mxu0 %v102
    %1249 = vmatprep.subr.mxu0 0.0
    %1250 = vmatpush1.msra.mxu0 %v103
    %1251 = vmatprep.subr.mxu0 0.0
    %1252 = vmatpush1.msra.mxu0 %v104
    %1253 = vmatprep.subr.mxu0 0.0
    %1254 = vmatpush1.msra.mxu0 %v105
    %1255 = vmatprep.subr.mxu0 0.0
    %1256 = vmatpush1.msra.mxu0 %v855
    %1257 = vmatprep.subr.mxu0 0.0
    %1258 = vmatpush1.msra.mxu0 0.0
    %1259 = vmatprep.subr.mxu0 0.0
    %1260 = vmatpush1.msra.mxu0 0.0
    %1261 = vmatprep.subr.mxu0 0.0
    %1262 = vmatpush1.msra.mxu0 0.0
    %1263 = vmatprep.subr.mxu0 0.0
    %1264 = vmatpush1.msra.mxu0 0.0
    %1265 = vmatprep.subr.mxu0 0.0
    %1266 = vmatpush1.msra.mxu0 0.0
    %1267 = vmatprep.subr.mxu0 0.0
    %1268 = vmatpush1.msra.mxu0 0.0
    %1269 = vmatprep.subr.mxu0 0.0
    %1270 = vmatpush1.msra.mxu0 0.0
    %1271 = vmatprep.subr.mxu0 0.0
    %1272 = vmatpush1.msra.mxu0 0.0
    %1273 = vmatprep.subr.mxu0 0.0
    %1274 = vmatpush1.msra.mxu0 0.0
    %1275 = vmatprep.subr.mxu0 0.0
    %1276 = vmatpush1.msra.mxu0 0.0
    %1277 = vmatprep.subr.mxu0 0.0
    %1278 = vmatpush1.msra.mxu0 0.0
    %1279 = vmatprep.subr.mxu0 0.0
    %1280 = vmatpush1.msra.mxu0 0.0
    %1281 = vmatprep.subr.mxu0 0.0
    %1282 = vmatpush1.msra.mxu0 0.0
    %1283 = vmatprep.subr.mxu0 0.0
    %1284 = vmatpush1.msra.mxu0 0.0
    %1285 = vmatprep.subr.mxu0 0.0
    %1286 = vmatpush1.msra.mxu0 0.0
    %1287 = vmatprep.subr.mxu0 0.0
    %1288 = vmatpush1.msra.mxu0 0.0
    %1289 = vmatprep.subr.mxu0 0.0
    %1290 = vmatpush1.msra.mxu0 0.0
    %1291 = vmatprep.subr.mxu0 0.0
    %1292 = vmatpush1.msra.mxu0 0.0
    %1293 = vmatprep.subr.mxu0 0.0
    %1294 = vmatpush1.msra.mxu0 0.0
    %1295 = vmatprep.subr.mxu0 0.0
    %1296 = vmatpush1.msra.mxu0 0.0
    %1297 = vmatprep.subr.mxu0 0.0
    %1298 = vmatpush1.msra.mxu0 0.0
    %1299 = vmatprep.subr.mxu0 0.0
    %1300 = vmatpush1.msra.mxu0 0.0
    %1301 = vmatprep.subr.mxu0 0.0
    %1302 = vmatpush1.msra.mxu0 0.0
    %1303 = vmatprep.subr.mxu0 0.0
    %1304 = vmatpush1.msra.mxu0 0.0
    %1305 = vmatprep.subr.mxu0 0.0
    %1306 = vmatpush1.msra.mxu0 0.0
    %1307 = vmatprep.subr.mxu0 0.0
    %1308 = vmatpush1.msra.mxu0 0.0
    %1309 = vmatprep.subr.mxu0 0.0
    %1310 = vmatpush1.msra.mxu0 0.0
    %1311 = vmatprep.mubr.f32.mxu0 0.0
    %1312 = vmatmul.mubr.f32.gmra.mrb[0].mxu0 %v1245
    %v1313 = vpop.f32.mrb[0].mxu0
    %v1314 = vadd.f32 %v120, %v1313
    %v1315 = vpop.f32.mrb[0].mxu0
    %1316 = vdwg.mxu0
    %v1317 = vxor.u32 %v1314, 2147483648
    %v1318 = vmul.f32 %v1317, 1.442695
    %v1319 = vpow.pop %v1318
    %v1320 = vadd.f32 %v1319, 1.0
    %v1321 = vrcp.pop %v1320
    %v1322 = vmul.f32 1.0, %v1321
    %v1323 = vtanh.pop %v1314
    %v1324 = vmul.f32 %v1322, %v944
    %1326 = vrot.lane.b32.xlu0 %v1323, 64
    %v1327 = vpop.permute.xlu0 %1326
    %v1329 = vmul.f32 %v1322, %v1327
    %1331 = vrot.lane.b32.xlu0 %v1329, 32
    %v1332 = vpop.permute.xlu0 %1331
    %v1334 = vadd.f32 %v1324, %v1332
    %v1335 = vtanh.pop %v1334
    %1337 = vrot.lane.b32.xlu0 %v1335, 64
    %v1338 = vpop.permute.xlu0 %1337
    %v1340 = vmul.f32 %v1322, %v1338
    %v1343 = vunpack.c.l.s4 1966171168
    %v1344 = vunpack.c.0.s8 %v1343
    %v1345 = vlaneseq
    %v1346 = vshrl.u32 %v1345, 7
    %v1347 = vsub.s32 %v1344, %v1346
    %v1348 = vrot.slane %v1340, %v1347
    %v1349 = vcombine.high %v1348, %v1348
    %v1351 = vunpack.c.l.s4 1966171168
    %v1352 = vunpack.c.0.s8 %v1351
    %v1353 = vlaneseq
    %v1354 = vshrl.u32 %v1353, 7
    %v1355 = vsub.s32 %v1352, %v1354
    %v1356 = vrot.slane %v1348, %v1355
    %v1358 = vunpack.c.l.s4 1966171168
    %v1359 = vunpack.c.0.s8 %v1358
    %v1360 = vlaneseq
    %v1361 = vshrl.u32 %v1360, 7
    %v1362 = vsub.s32 %v1359, %v1361
    %v1363 = vrot.slane %v1349, %v1362
    %v1364 = vlaneseq
    %v1365 = vshrl.u32 %v1364, 7
    %v1366 = vsub.s32 0, %v1365
    %v1367 = vrot.slane %v1356, %v1366
    %v1368 = vlaneseq
    %v1369 = vshrl.u32 %v1368, 7
    %v1370 = vsub.s32 0, %v1369
    %v1371 = vrot.slane %v1363, %v1370
    %1372 = vrot.lane.b32.xlu0 %v1367, 32
    %v1373 = vpop.permute.xlu0 %1372
    %1374 = vrot.lane.b32.xlu0 %v1371, 32
    %v1375 = vpop.permute.xlu0 %1374
    %1378 = vst.msk [vmem:[#allocation13 + $0x1] sm:$0x1] %vm988, %v1373
    %1379 = vst.msk [vmem:[#allocation13 + $0x9] sm:$0x1] %vm988, %v1375
    %1381 = vrot.lane.b32.xlu0 %v1334, 96
    %v1382 = vpop.permute.xlu0 %1381
    %v1383 = vsel %vm554, %v1382, 0
    %1385 = vmatprep.subr.mxu0 0.0
    %1386 = vmatpush1.xpose.msra.mxu0 %v559
    %1387 = vmatprep.subr.mxu0 0.0
    %1388 = vmatpush1.xpose.msra.mxu0 0.0
    %1389 = vmatprep.subr.mxu0 0.0
    %1390 = vmatpush1.xpose.msra.mxu0 0.0
    %1391 = vmatprep.subr.mxu0 0.0
    %1392 = vmatpush1.xpose.msra.mxu0 0.0
    %1393 = vmatprep.subr.mxu0 0.0
    %1394 = vmatpush1.xpose.msra.mxu0 0.0
    %1395 = vmatprep.subr.mxu0 0.0
    %1396 = vmatpush1.xpose.msra.mxu0 0.0
    %1397 = vmatprep.subr.mxu0 0.0
    %1398 = vmatpush1.xpose.msra.mxu0 0.0
    %1399 = vmatprep.subr.mxu0 0.0
    %1400 = vmatpush1.xpose.msra.mxu0 0.0
    %1401 = vmatprep.subr.mxu0 0.0
    %1402 = vmatpush1.xpose.msra.mxu0 0.0
    %1403 = vmatprep.subr.mxu0 0.0
    %1404 = vmatpush1.xpose.msra.mxu0 0.0
    %1405 = vmatprep.subr.mxu0 0.0
    %1406 = vmatpush1.xpose.msra.mxu0 0.0
    %1407 = vmatprep.subr.mxu0 0.0
    %1408 = vmatpush1.xpose.msra.mxu0 0.0
    %1409 = vmatprep.subr.mxu0 0.0
    %1410 = vmatpush1.xpose.msra.mxu0 0.0
    %1411 = vmatprep.subr.mxu0 0.0
    %1412 = vmatpush1.xpose.msra.mxu0 0.0
    %1413 = vmatprep.subr.mxu0 0.0
    %1414 = vmatpush1.xpose.msra.mxu0 0.0
    %1415 = vmatprep.subr.mxu0 0.0
    %1416 = vmatpush1.xpose.msra.mxu0 0.0
    %1417 = vmatprep.subr.mxu0 0.0
    %1418 = vmatpush1.xpose.msra.mxu0 0.0
    %1419 = vmatprep.subr.mxu0 0.0
    %1420 = vmatpush1.xpose.msra.mxu0 0.0
    %1421 = vmatprep.subr.mxu0 0.0
    %1422 = vmatpush1.xpose.msra.mxu0 0.0
    %1423 = vmatprep.subr.mxu0 0.0
    %1424 = vmatpush1.xpose.msra.mxu0 0.0
    %1425 = vmatprep.subr.mxu0 0.0
    %1426 = vmatpush1.xpose.msra.mxu0 0.0
    %1427 = vmatprep.subr.mxu0 0.0
    %1428 = vmatpush1.xpose.msra.mxu0 0.0
    %1429 = vmatprep.subr.mxu0 0.0
    %1430 = vmatpush1.xpose.msra.mxu0 0.0
    %1431 = vmatprep.subr.mxu0 0.0
    %1432 = vmatpush1.xpose.msra.mxu0 0.0
    %1433 = vmatprep.subr.mxu0 0.0
    %1434 = vmatpush1.xpose.msra.mxu0 0.0
    %1435 = vmatprep.subr.mxu0 0.0
    %1436 = vmatpush1.xpose.msra.mxu0 0.0
    %1437 = vmatprep.subr.mxu0 0.0
    %1438 = vmatpush1.xpose.msra.mxu0 0.0
    %1439 = vmatprep.subr.mxu0 0.0
    %1440 = vmatpush1.xpose.msra.mxu0 0.0
    %1441 = vmatprep.subr.mxu0 0.0
    %1442 = vmatpush1.xpose.msra.mxu0 0.0
    %1443 = vmatprep.subr.mxu0 0.0
    %1444 = vmatpush1.xpose.msra.mxu0 0.0
    %1445 = vmatprep.subr.mxu0 0.0
    %1446 = vmatpush1.xpose.msra.mxu0 0.0
    %1447 = vmatprep.subr.mxu0 0.0
    %1448 = vmatpush1.xpose.msra.mxu0 0.0
    %1449 = vmatprep.mubr.f32.mxu0 0.0
    %1450 = vmatmul.mubr.f32.gmra.mrb[0].mxu0 %v1383
    %v1451 = vpop.f32.mrb[0].mxu0
    %v1452 = vadd.f32 0.0, %v1451
    %v1453 = vpop.f32.mrb[0].mxu0
    %1454 = vdwg.mxu0
    %1455 = vrot.lane.b32.xlu0 %v1340, 32
    %v1456 = vpop.permute.xlu0 %1455
    %v1457 = vsel %vm554, %v1456, 0
    %1459 = vmatprep.subr.mxu0 0.0
    %1460 = vmatpush1.xpose.msra.mxu0 %v632
    %1461 = vmatprep.subr.mxu0 0.0
    %1462 = vmatpush1.xpose.msra.mxu0 0.0
    %1463 = vmatprep.subr.mxu0 0.0
    %1464 = vmatpush1.xpose.msra.mxu0 0.0
    %1465 = vmatprep.subr.mxu0 0.0
    %1466 = vmatpush1.xpose.msra.mxu0 0.0
    %1467 = vmatprep.subr.mxu0 0.0
    %1468 = vmatpush1.xpose.msra.mxu0 0.0
    %1469 = vmatprep.subr.mxu0 0.0
    %1470 = vmatpush1.xpose.msra.mxu0 0.0
    %1471 = vmatprep.subr.mxu0 0.0
    %1472 = vmatpush1.xpose.msra.mxu0 0.0
    %1473 = vmatprep.subr.mxu0 0.0
    %1474 = vmatpush1.xpose.msra.mxu0 0.0
    %1475 = vmatprep.subr.mxu0 0.0
    %1476 = vmatpush1.xpose.msra.mxu0 0.0
    %1477 = vmatprep.subr.mxu0 0.0
    %1478 = vmatpush1.xpose.msra.mxu0 0.0
    %1479 = vmatprep.subr.mxu0 0.0
    %1480 = vmatpush1.xpose.msra.mxu0 0.0
    %1481 = vmatprep.subr.mxu0 0.0
    %1482 = vmatpush1.xpose.msra.mxu0 0.0
    %1483 = vmatprep.subr.mxu0 0.0
    %1484 = vmatpush1.xpose.msra.mxu0 0.0
    %1485 = vmatprep.subr.mxu0 0.0
    %1486 = vmatpush1.xpose.msra.mxu0 0.0
    %1487 = vmatprep.subr.mxu0 0.0
    %1488 = vmatpush1.xpose.msra.mxu0 0.0
    %1489 = vmatprep.subr.mxu0 0.0
    %1490 = vmatpush1.xpose.msra.mxu0 0.0
    %1491 = vmatprep.subr.mxu0 0.0
    %1492 = vmatpush1.xpose.msra.mxu0 0.0
    %1493 = vmatprep.subr.mxu0 0.0
    %1494 = vmatpush1.xpose.msra.mxu0 0.0
    %1495 = vmatprep.subr.mxu0 0.0
    %1496 = vmatpush1.xpose.msra.mxu0 0.0
    %1497 = vmatprep.subr.mxu0 0.0
    %1498 = vmatpush1.xpose.msra.mxu0 0.0
    %1499 = vmatprep.subr.mxu0 0.0
    %1500 = vmatpush1.xpose.msra.mxu0 0.0
    %1501 = vmatprep.subr.mxu0 0.0
    %1502 = vmatpush1.xpose.msra.mxu0 0.0
    %1503 = vmatprep.subr.mxu0 0.0
    %1504 = vmatpush1.xpose.msra.mxu0 0.0
    %1505 = vmatprep.subr.mxu0 0.0
    %1506 = vmatpush1.xpose.msra.mxu0 0.0
    %1507 = vmatprep.subr.mxu0 0.0
    %1508 = vmatpush1.xpose.msra.mxu0 0.0
    %1509 = vmatprep.subr.mxu0 0.0
    %1510 = vmatpush1.xpose.msra.mxu0 0.0
    %1511 = vmatprep.subr.mxu0 0.0
    %1512 = vmatpush1.xpose.msra.mxu0 0.0
    %1513 = vmatprep.subr.mxu0 0.0
    %1514 = vmatpush1.xpose.msra.mxu0 0.0
    %1515 = vmatprep.subr.mxu0 0.0
    %1516 = vmatpush1.xpose.msra.mxu0 0.0
    %1517 = vmatprep.subr.mxu0 0.0
    %1518 = vmatpush1.xpose.msra.mxu0 0.0
    %1519 = vmatprep.subr.mxu0 0.0
    %1520 = vmatpush1.xpose.msra.mxu0 0.0
    %1521 = vmatprep.subr.mxu0 0.0
    %1522 = vmatpush1.xpose.msra.mxu0 0.0
    %1523 = vmatprep.mubr.f32.mxu0 0.0
    %1524 = vmatmul.mubr.f32.gmra.mrb[0].mxu0 %v1457
    %v1525 = vpop.f32.mrb[0].mxu0
    %v1526 = vadd.f32 %v1452, %v1525
    %v1527 = vpop.f32.mrb[0].mxu0
    %1528 = vdwg.mxu0
    %v1529 = vadd.f32 %v1526, %v113
    %s1530 = sld [smem:[#allocation12]]
    %1532 = vset.pattern.permute.xlu0 0
    %1533 = vperm.xlu0 %1532, %v1529
    %v1534 = vpop.permute.xlu0 %1533
    %v1536 = vadd.f32 %v1534, %v715
    %v1537 = vtanh.pop %v1536
    %v1538 = vstv %s1530
    %v1539 = vmul.f32 %v1538, %v1537
    %v1540 = vadd.f32 %v1539, 0.0
    %s1541 = sld [smem:[#allocation12 + $0x1]]
    %1542 = vset.pattern.permute.xlu0 1
    %1543 = vperm.xlu0 %1542, %v1529
    %v1544 = vpop.permute.xlu0 %1543
    %v1546 = vadd.f32 %v1544, %v730
    %v1547 = vtanh.pop %v1546
    %v1548 = vstv %s1541
    %v1549 = vmul.f32 %v1548, %v1547
    %v1550 = vadd.f32 %v1540, %v1549
    %s1551 = sld [smem:[#allocation12 + $0x2]]
    %1552 = vset.pattern.permute.xlu0 2
    %1553 = vperm.xlu0 %1552, %v1529
    %v1554 = vpop.permute.xlu0 %1553
    %v1556 = vadd.f32 %v1554, %v745
    %v1557 = vtanh.pop %v1556
    %v1558 = vstv %s1551
    %v1559 = vmul.f32 %v1558, %v1557
    %v1560 = vadd.f32 %v1550, %v1559
    %s1561 = sld [smem:[#allocation12 + $0x3]]
    %1562 = vset.pattern.permute.xlu0 3
    %1563 = vperm.xlu0 %1562, %v1529
    %v1564 = vpop.permute.xlu0 %1563
    %v1566 = vadd.f32 %v1564, %v760
    %v1567 = vtanh.pop %v1566
    %v1568 = vstv %s1561
    %v1569 = vmul.f32 %v1568, %v1567
    %v1570 = vadd.f32 %v1560, %v1569
    %s1571 = sld [smem:[#allocation12 + $0x4]]
    %1572 = vset.pattern.permute.xlu0 4
    %1573 = vperm.xlu0 %1572, %v1529
    %v1574 = vpop.permute.xlu0 %1573
    %v1576 = vadd.f32 %v1574, %v775
    %v1577 = vtanh.pop %v1576
    %v1578 = vstv %s1571
    %v1579 = vmul.f32 %v1578, %v1577
    %v1580 = vadd.f32 %v1570, %v1579
    %s1581 = sld [smem:[#allocation12 + $0x5]]
    %1582 = vset.pattern.permute.xlu0 5
    %1583 = vperm.xlu0 %1582, %v1529
    %v1584 = vpop.permute.xlu0 %1583
    %v1586 = vadd.f32 %v1584, %v790
    %v1587 = vtanh.pop %v1586
    %v1588 = vstv %s1581
    %v1589 = vmul.f32 %v1588, %v1587
    %v1590 = vadd.f32 %v1580, %v1589
    %s1591 = sld [smem:[#allocation12 + $0x6]]
    %1592 = vset.pattern.permute.xlu0 6
    %1593 = vperm.xlu0 %1592, %v1529
    %v1594 = vpop.permute.xlu0 %1593
    %v1596 = vadd.f32 %v1594, %v805
    %v1597 = vtanh.pop %v1596
    %v1598 = vstv %s1591
    %v1599 = vmul.f32 %v1598, %v1597
    %v1600 = vadd.f32 %v1590, %v1599
    %s1601 = sld [smem:[#allocation12 + $0x7]]
    %1602 = vset.pattern.permute.xlu0 7
    %1603 = vperm.xlu0 %1602, %v1529
    %v1604 = vpop.permute.xlu0 %1603
    %v1606 = vadd.f32 %v1604, %v820
    %v1607 = vtanh.pop %v1606
    %v1608 = vstv %s1601
    %v1609 = vmul.f32 %v1608, %v1607
    %v1610 = vadd.f32 %v1600, %v1609
    %v1611 = vadd.f32 %v1610, %v827
    %v1612 = vsel %vm829, %v1611, -inf
    %1613 = vmax.xlane.f32.xlu0 %v1612
    %v1614 = vpop.xlane.xlu0 %1613
    %v1615 = vsub.f32 %v1611, %v1614
    %v1616 = vmul.f32 %v1615, 1.442695
    %v1617 = vpow.pop %v1616
    %v1618 = vsel %vm829, %v1617, 0.0
    %1619 = vadd.xlane.f32.xlu0 %v1618
    %v1620 = vpop.xlane.xlu0 %1619
    %v1621 = vrcp.pop %v1620
    %v1622 = vmul.f32 %v1617, %v1621
    %v1625 = vrot.slane %v127, 7
    %v1626 = vsel %vm714, %v1625, %v126
    %v1628 = vmul.f32 %v1622, %v1626
    %1629 = vrot.lane.b32.xlu0 %v1340, 36
    %v1630 = vpop.permute.xlu0 %1629
    %v1632 = vsel %vm847, %v1628, %v1630
    %v1634 = vsel %vm849, %v1632, 0
    %1636 = vmatprep.subr.mxu0 0.0
    %1637 = vmatpush1.msra.mxu0 %v102
    %1638 = vmatprep.subr.mxu0 0.0
    %1639 = vmatpush1.msra.mxu0 %v103
    %1640 = vmatprep.subr.mxu0 0.0
    %1641 = vmatpush1.msra.mxu0 %v104
    %1642 = vmatprep.subr.mxu0 0.0
    %1643 = vmatpush1.msra.mxu0 %v105
    %1644 = vmatprep.subr.mxu0 0.0
    %1645 = vmatpush1.msra.mxu0 %v855
    %1646 = vmatprep.subr.mxu0 0.0
    %1647 = vmatpush1.msra.mxu0 0.0
    %1648 = vmatprep.subr.mxu0 0.0
    %1649 = vmatpush1.msra.mxu0 0.0
    %1650 = vmatprep.subr.mxu0 0.0
    %1651 = vmatpush1.msra.mxu0 0.0
    %1652 = vmatprep.subr.mxu0 0.0
    %1653 = vmatpush1.msra.mxu0 0.0
    %1654 = vmatprep.subr.mxu0 0.0
    %1655 = vmatpush1.msra.mxu0 0.0
    %1656 = vmatprep.subr.mxu0 0.0
    %1657 = vmatpush1.msra.mxu0 0.0
    %1658 = vmatprep.subr.mxu0 0.0
    %1659 = vmatpush1.msra.mxu0 0.0
    %1660 = vmatprep.subr.mxu0 0.0
    %1661 = vmatpush1.msra.mxu0 0.0
    %1662 = vmatprep.subr.mxu0 0.0
    %1663 = vmatpush1.msra.mxu0 0.0
    %1664 = vmatprep.subr.mxu0 0.0
    %1665 = vmatpush1.msra.mxu0 0.0
    %1666 = vmatprep.subr.mxu0 0.0
    %1667 = vmatpush1.msra.mxu0 0.0
    %1668 = vmatprep.subr.mxu0 0.0
    %1669 = vmatpush1.msra.mxu0 0.0
    %1670 = vmatprep.subr.mxu0 0.0
    %1671 = vmatpush1.msra.mxu0 0.0
    %1672 = vmatprep.subr.mxu0 0.0
    %1673 = vmatpush1.msra.mxu0 0.0
    %1674 = vmatprep.subr.mxu0 0.0
    %1675 = vmatpush1.msra.mxu0 0.0
    %1676 = vmatprep.subr.mxu0 0.0
    %1677 = vmatpush1.msra.mxu0 0.0
    %1678 = vmatprep.subr.mxu0 0.0
    %1679 = vmatpush1.msra.mxu0 0.0
    %1680 = vmatprep.subr.mxu0 0.0
    %1681 = vmatpush1.msra.mxu0 0.0
    %1682 = vmatprep.subr.mxu0 0.0
    %1683 = vmatpush1.msra.mxu0 0.0
    %1684 = vmatprep.subr.mxu0 0.0
    %1685 = vmatpush1.msra.mxu0 0.0
    %1686 = vmatprep.subr.mxu0 0.0
    %1687 = vmatpush1.msra.mxu0 0.0
    %1688 = vmatprep.subr.mxu0 0.0
    %1689 = vmatpush1.msra.mxu0 0.0
    %1690 = vmatprep.subr.mxu0 0.0
    %1691 = vmatpush1.msra.mxu0 0.0
    %1692 = vmatprep.subr.mxu0 0.0
    %1693 = vmatpush1.msra.mxu0 0.0
    %1694 = vmatprep.subr.mxu0 0.0
    %1695 = vmatpush1.msra.mxu0 0.0
    %1696 = vmatprep.subr.mxu0 0.0
    %1697 = vmatpush1.msra.mxu0 0.0
    %1698 = vmatprep.subr.mxu0 0.0
    %1699 = vmatpush1.msra.mxu0 0.0
    %1700 = vmatprep.mubr.f32.mxu0 0.0
    %1701 = vmatmul.mubr.f32.gmra.mrb[0].mxu0 %v1634
    %v1702 = vpop.f32.mrb[0].mxu0
    %v1703 = vadd.f32 %v120, %v1702
    %v1704 = vpop.f32.mrb[0].mxu0
    %1705 = vdwg.mxu0
    %v1706 = vxor.u32 %v1703, 2147483648
    %v1707 = vmul.f32 %v1706, 1.442695
    %v1708 = vpow.pop %v1707
    %v1709 = vadd.f32 %v1708, 1.0
    %v1710 = vrcp.pop %v1709
    %v1711 = vmul.f32 1.0, %v1710
    %v1712 = vtanh.pop %v1703
    %v1713 = vmul.f32 %v1711, %v1334
    %1715 = vrot.lane.b32.xlu0 %v1712, 64
    %v1716 = vpop.permute.xlu0 %1715
    %v1718 = vmul.f32 %v1711, %v1716
    %1720 = vrot.lane.b32.xlu0 %v1718, 32
    %v1721 = vpop.permute.xlu0 %1720
    %v1723 = vadd.f32 %v1713, %v1721
    %v1724 = vtanh.pop %v1723
    %1726 = vrot.lane.b32.xlu0 %v1724, 64
    %v1727 = vpop.permute.xlu0 %1726
    %v1729 = vmul.f32 %v1711, %v1727
    %v1732 = vunpack.c.l.s4 1966171168
    %v1733 = vunpack.c.0.s8 %v1732
    %v1734 = vlaneseq
    %v1735 = vshrl.u32 %v1734, 7
    %v1736 = vsub.s32 %v1733, %v1735
    %v1737 = vrot.slane %v1729, %v1736
    %v1738 = vcombine.high %v1737, %v1737
    %v1740 = vunpack.c.l.s4 1966171168
    %v1741 = vunpack.c.0.s8 %v1740
    %v1742 = vlaneseq
    %v1743 = vshrl.u32 %v1742, 7
    %v1744 = vsub.s32 %v1741, %v1743
    %v1745 = vrot.slane %v1737, %v1744
    %v1747 = vunpack.c.l.s4 1966171168
    %v1748 = vunpack.c.0.s8 %v1747
    %v1749 = vlaneseq
    %v1750 = vshrl.u32 %v1749, 7
    %v1751 = vsub.s32 %v1748, %v1750
    %v1752 = vrot.slane %v1738, %v1751
    %v1753 = vlaneseq
    %v1754 = vshrl.u32 %v1753, 7
    %v1755 = vsub.s32 0, %v1754
    %v1756 = vrot.slane %v1745, %v1755
    %v1757 = vlaneseq
    %v1758 = vshrl.u32 %v1757, 7
    %v1759 = vsub.s32 0, %v1758
    %v1760 = vrot.slane %v1752, %v1759
    %1761 = vrot.lane.b32.xlu0 %v1756, 32
    %v1762 = vpop.permute.xlu0 %1761
    %1763 = vrot.lane.b32.xlu0 %v1760, 32
    %v1764 = vpop.permute.xlu0 %1763
    %1767 = vst.msk [vmem:[#allocation13 + $0x2] sm:$0x1] %vm988, %v1762
    %1768 = vst.msk [vmem:[#allocation13 + $0xa] sm:$0x1] %vm988, %v1764
    %1770 = vrot.lane.b32.xlu0 %v1723, 96
    %v1771 = vpop.permute.xlu0 %1770
    %v1772 = vsel %vm554, %v1771, 0
    %1774 = vmatprep.subr.mxu0 0.0
    %1775 = vmatpush1.xpose.msra.mxu0 %v559
    %1776 = vmatprep.subr.mxu0 0.0
    %1777 = vmatpush1.xpose.msra.mxu0 0.0
    %1778 = vmatprep.subr.mxu0 0.0
    %1779 = vmatpush1.xpose.msra.mxu0 0.0
    %1780 = vmatprep.subr.mxu0 0.0
    %1781 = vmatpush1.xpose.msra.mxu0 0.0
    %1782 = vmatprep.subr.mxu0 0.0
    %1783 = vmatpush1.xpose.msra.mxu0 0.0
    %1784 = vmatprep.subr.mxu0 0.0
    %1785 = vmatpush1.xpose.msra.mxu0 0.0
    %1786 = vmatprep.subr.mxu0 0.0
    %1787 = vmatpush1.xpose.msra.mxu0 0.0
    %1788 = vmatprep.subr.mxu0 0.0
    %1789 = vmatpush1.xpose.msra.mxu0 0.0
    %1790 = vmatprep.subr.mxu0 0.0
    %1791 = vmatpush1.xpose.msra.mxu0 0.0
    %1792 = vmatprep.subr.mxu0 0.0
    %1793 = vmatpush1.xpose.msra.mxu0 0.0
    %1794 = vmatprep.subr.mxu0 0.0
    %1795 = vmatpush1.xpose.msra.mxu0 0.0
    %1796 = vmatprep.subr.mxu0 0.0
    %1797 = vmatpush1.xpose.msra.mxu0 0.0
    %1798 = vmatprep.subr.mxu0 0.0
    %1799 = vmatpush1.xpose.msra.mxu0 0.0
    %1800 = vmatprep.subr.mxu0 0.0
    %1801 = vmatpush1.xpose.msra.mxu0 0.0
    %1802 = vmatprep.subr.mxu0 0.0
    %1803 = vmatpush1.xpose.msra.mxu0 0.0
    %1804 = vmatprep.subr.mxu0 0.0
    %1805 = vmatpush1.xpose.msra.mxu0 0.0
    %1806 = vmatprep.subr.mxu0 0.0
    %1807 = vmatpush1.xpose.msra.mxu0 0.0
    %1808 = vmatprep.subr.mxu0 0.0
    %1809 = vmatpush1.xpose.msra.mxu0 0.0
    %1810 = vmatprep.subr.mxu0 0.0
    %1811 = vmatpush1.xpose.msra.mxu0 0.0
    %1812 = vmatprep.subr.mxu0 0.0
    %1813 = vmatpush1.xpose.msra.mxu0 0.0
    %1814 = vmatprep.subr.mxu0 0.0
    %1815 = vmatpush1.xpose.msra.mxu0 0.0
    %1816 = vmatprep.subr.mxu0 0.0
    %1817 = vmatpush1.xpose.msra.mxu0 0.0
    %1818 = vmatprep.subr.mxu0 0.0
    %1819 = vmatpush1.xpose.msra.mxu0 0.0
    %1820 = vmatprep.subr.mxu0 0.0
    %1821 = vmatpush1.xpose.msra.mxu0 0.0
    %1822 = vmatprep.subr.mxu0 0.0
    %1823 = vmatpush1.xpose.msra.mxu0 0.0
    %1824 = vmatprep.subr.mxu0 0.0
    %1825 = vmatpush1.xpose.msra.mxu0 0.0
    %1826 = vmatprep.subr.mxu0 0.0
    %1827 = vmatpush1.xpose.msra.mxu0 0.0
    %1828 = vmatprep.subr.mxu0 0.0
    %1829 = vmatpush1.xpose.msra.mxu0 0.0
    %1830 = vmatprep.subr.mxu0 0.0
    %1831 = vmatpush1.xpose.msra.mxu0 0.0
    %1832 = vmatprep.subr.mxu0 0.0
    %1833 = vmatpush1.xpose.msra.mxu0 0.0
    %1834 = vmatprep.subr.mxu0 0.0
    %1835 = vmatpush1.xpose.msra.mxu0 0.0
    %1836 = vmatprep.subr.mxu0 0.0
    %1837 = vmatpush1.xpose.msra.mxu0 0.0
    %1838 = vmatprep.mubr.f32.mxu0 0.0
    %1839 = vmatmul.mubr.f32.gmra.mrb[0].mxu0 %v1772
    %v1840 = vpop.f32.mrb[0].mxu0
    %v1841 = vadd.f32 0.0, %v1840
    %v1842 = vpop.f32.mrb[0].mxu0
    %1843 = vdwg.mxu0
    %1844 = vrot.lane.b32.xlu0 %v1729, 32
    %v1845 = vpop.permute.xlu0 %1844
    %v1846 = vsel %vm554, %v1845, 0
    %1848 = vmatprep.subr.mxu0 0.0
    %1849 = vmatpush1.xpose.msra.mxu0 %v632
    %1850 = vmatprep.subr.mxu0 0.0
    %1851 = vmatpush1.xpose.msra.mxu0 0.0
    %1852 = vmatprep.subr.mxu0 0.0
    %1853 = vmatpush1.xpose.msra.mxu0 0.0
    %1854 = vmatprep.subr.mxu0 0.0
    %1855 = vmatpush1.xpose.msra.mxu0 0.0
    %1856 = vmatprep.subr.mxu0 0.0
    %1857 = vmatpush1.xpose.msra.mxu0 0.0
    %1858 = vmatprep.subr.mxu0 0.0
    %1859 = vmatpush1.xpose.msra.mxu0 0.0
    %1860 = vmatprep.subr.mxu0 0.0
    %1861 = vmatpush1.xpose.msra.mxu0 0.0
    %1862 = vmatprep.subr.mxu0 0.0
    %1863 = vmatpush1.xpose.msra.mxu0 0.0
    %1864 = vmatprep.subr.mxu0 0.0
    %1865 = vmatpush1.xpose.msra.mxu0 0.0
    %1866 = vmatprep.subr.mxu0 0.0
    %1867 = vmatpush1.xpose.msra.mxu0 0.0
    %1868 = vmatprep.subr.mxu0 0.0
    %1869 = vmatpush1.xpose.msra.mxu0 0.0
    %1870 = vmatprep.subr.mxu0 0.0
    %1871 = vmatpush1.xpose.msra.mxu0 0.0
    %1872 = vmatprep.subr.mxu0 0.0
    %1873 = vmatpush1.xpose.msra.mxu0 0.0
    %1874 = vmatprep.subr.mxu0 0.0
    %1875 = vmatpush1.xpose.msra.mxu0 0.0
    %1876 = vmatprep.subr.mxu0 0.0
    %1877 = vmatpush1.xpose.msra.mxu0 0.0
    %1878 = vmatprep.subr.mxu0 0.0
    %1879 = vmatpush1.xpose.msra.mxu0 0.0
    %1880 = vmatprep.subr.mxu0 0.0
    %1881 = vmatpush1.xpose.msra.mxu0 0.0
    %1882 = vmatprep.subr.mxu0 0.0
    %1883 = vmatpush1.xpose.msra.mxu0 0.0
    %1884 = vmatprep.subr.mxu0 0.0
    %1885 = vmatpush1.xpose.msra.mxu0 0.0
    %1886 = vmatprep.subr.mxu0 0.0
    %1887 = vmatpush1.xpose.msra.mxu0 0.0
    %1888 = vmatprep.subr.mxu0 0.0
    %1889 = vmatpush1.xpose.msra.mxu0 0.0
    %1890 = vmatprep.subr.mxu0 0.0
    %1891 = vmatpush1.xpose.msra.mxu0 0.0
    %1892 = vmatprep.subr.mxu0 0.0
    %1893 = vmatpush1.xpose.msra.mxu0 0.0
    %1894 = vmatprep.subr.mxu0 0.0
    %1895 = vmatpush1.xpose.msra.mxu0 0.0
    %1896 = vmatprep.subr.mxu0 0.0
    %1897 = vmatpush1.xpose.msra.mxu0 0.0
    %1898 = vmatprep.subr.mxu0 0.0
    %1899 = vmatpush1.xpose.msra.mxu0 0.0
    %1900 = vmatprep.subr.mxu0 0.0
    %1901 = vmatpush1.xpose.msra.mxu0 0.0
    %1902 = vmatprep.subr.mxu0 0.0
    %1903 = vmatpush1.xpose.msra.mxu0 0.0
    %1904 = vmatprep.subr.mxu0 0.0
    %1905 = vmatpush1.xpose.msra.mxu0 0.0
    %1906 = vmatprep.subr.mxu0 0.0
    %1907 = vmatpush1.xpose.msra.mxu0 0.0
    %1908 = vmatprep.subr.mxu0 0.0
    %1909 = vmatpush1.xpose.msra.mxu0 0.0
    %1910 = vmatprep.subr.mxu0 0.0
    %1911 = vmatpush1.xpose.msra.mxu0 0.0
    %1912 = vmatprep.mubr.f32.mxu0 0.0
    %1913 = vmatmul.mubr.f32.gmra.mrb[0].mxu0 %v1846
    %v1914 = vpop.f32.mrb[0].mxu0
    %v1915 = vadd.f32 %v1841, %v1914
    %v1916 = vpop.f32.mrb[0].mxu0
    %1917 = vdwg.mxu0
    %v1918 = vadd.f32 %v1915, %v113
    %s1919 = sld [smem:[#allocation12]]
    %1921 = vset.pattern.permute.xlu0 0
    %1922 = vperm.xlu0 %1921, %v1918
    %v1923 = vpop.permute.xlu0 %1922
    %v1925 = vadd.f32 %v1923, %v715
    %v1926 = vtanh.pop %v1925
    %v1927 = vstv %s1919
    %v1928 = vmul.f32 %v1927, %v1926
    %v1929 = vadd.f32 %v1928, 0.0
    %s1930 = sld [smem:[#allocation12 + $0x1]]
    %1931 = vset.pattern.permute.xlu0 1
    %1932 = vperm.xlu0 %1931, %v1918
    %v1933 = vpop.permute.xlu0 %1932
    %v1935 = vadd.f32 %v1933, %v730
    %v1936 = vtanh.pop %v1935
    %v1937 = vstv %s1930
    %v1938 = vmul.f32 %v1937, %v1936
    %v1939 = vadd.f32 %v1929, %v1938
    %s1940 = sld [smem:[#allocation12 + $0x2]]
    %1941 = vset.pattern.permute.xlu0 2
    %1942 = vperm.xlu0 %1941, %v1918
    %v1943 = vpop.permute.xlu0 %1942
    %v1945 = vadd.f32 %v1943, %v745
    %v1946 = vtanh.pop %v1945
    %v1947 = vstv %s1940
    %v1948 = vmul.f32 %v1947, %v1946
    %v1949 = vadd.f32 %v1939, %v1948
    %s1950 = sld [smem:[#allocation12 + $0x3]]
    %1951 = vset.pattern.permute.xlu0 3
    %1952 = vperm.xlu0 %1951, %v1918
    %v1953 = vpop.permute.xlu0 %1952
    %v1955 = vadd.f32 %v1953, %v760
    %v1956 = vtanh.pop %v1955
    %v1957 = vstv %s1950
    %v1958 = vmul.f32 %v1957, %v1956
    %v1959 = vadd.f32 %v1949, %v1958
    %s1960 = sld [smem:[#allocation12 + $0x4]]
    %1961 = vset.pattern.permute.xlu0 4
    %1962 = vperm.xlu0 %1961, %v1918
    %v1963 = vpop.permute.xlu0 %1962
    %v1965 = vadd.f32 %v1963, %v775
    %v1966 = vtanh.pop %v1965
    %v1967 = vstv %s1960
    %v1968 = vmul.f32 %v1967, %v1966
    %v1969 = vadd.f32 %v1959, %v1968
    %s1970 = sld [smem:[#allocation12 + $0x5]]
    %1971 = vset.pattern.permute.xlu0 5
    %1972 = vperm.xlu0 %1971, %v1918
    %v1973 = vpop.permute.xlu0 %1972
    %v1975 = vadd.f32 %v1973, %v790
    %v1976 = vtanh.pop %v1975
    %v1977 = vstv %s1970
    %v1978 = vmul.f32 %v1977, %v1976
    %v1979 = vadd.f32 %v1969, %v1978
    %s1980 = sld [smem:[#allocation12 + $0x6]]
    %1981 = vset.pattern.permute.xlu0 6
    %1982 = vperm.xlu0 %1981, %v1918
    %v1983 = vpop.permute.xlu0 %1982
    %v1985 = vadd.f32 %v1983, %v805
    %v1986 = vtanh.pop %v1985
    %v1987 = vstv %s1980
    %v1988 = vmul.f32 %v1987, %v1986
    %v1989 = vadd.f32 %v1979, %v1988
    %s1990 = sld [smem:[#allocation12 + $0x7]]
    %1991 = vset.pattern.permute.xlu0 7
    %1992 = vperm.xlu0 %1991, %v1918
    %v1993 = vpop.permute.xlu0 %1992
    %v1995 = vadd.f32 %v1993, %v820
    %v1996 = vtanh.pop %v1995
    %v1997 = vstv %s1990
    %v1998 = vmul.f32 %v1997, %v1996
    %v1999 = vadd.f32 %v1989, %v1998
    %v2000 = vadd.f32 %v1999, %v827
    %v2001 = vsel %vm829, %v2000, -inf
    %2002 = vmax.xlane.f32.xlu0 %v2001
    %v2003 = vpop.xlane.xlu0 %2002
    %v2004 = vsub.f32 %v2000, %v2003
    %v2005 = vmul.f32 %v2004, 1.442695
    %v2006 = vpow.pop %v2005
    %v2007 = vsel %vm829, %v2006, 0.0
    %2008 = vadd.xlane.f32.xlu0 %v2007
    %v2009 = vpop.xlane.xlu0 %2008
    %v2010 = vrcp.pop %v2009
    %v2011 = vmul.f32 %v2006, %v2010
    %v2014 = vrot.slane %v129, 7
    %v2015 = vsel %vm714, %v2014, %v128
    %v2017 = vmul.f32 %v2011, %v2015
    %2018 = vrot.lane.b32.xlu0 %v1729, 36
    %v2019 = vpop.permute.xlu0 %2018
    %v2021 = vsel %vm847, %v2017, %v2019
    %v2023 = vsel %vm849, %v2021, 0
    %2025 = vmatprep.subr.mxu0 0.0
    %2026 = vmatpush1.msra.mxu0 %v102
    %2027 = vmatprep.subr.mxu0 0.0
    %2028 = vmatpush1.msra.mxu0 %v103
    %2029 = vmatprep.subr.mxu0 0.0
    %2030 = vmatpush1.msra.mxu0 %v104
    %2031 = vmatprep.subr.mxu0 0.0
    %2032 = vmatpush1.msra.mxu0 %v105
    %2033 = vmatprep.subr.mxu0 0.0
    %2034 = vmatpush1.msra.mxu0 %v855
    %2035 = vmatprep.subr.mxu0 0.0
    %2036 = vmatpush1.msra.mxu0 0.0
    %2037 = vmatprep.subr.mxu0 0.0
    %2038 = vmatpush1.msra.mxu0 0.0
    %2039 = vmatprep.subr.mxu0 0.0
    %2040 = vmatpush1.msra.mxu0 0.0
    %2041 = vmatprep.subr.mxu0 0.0
    %2042 = vmatpush1.msra.mxu0 0.0
    %2043 = vmatprep.subr.mxu0 0.0
    %2044 = vmatpush1.msra.mxu0 0.0
    %2045 = vmatprep.subr.mxu0 0.0
    %2046 = vmatpush1.msra.mxu0 0.0
    %2047 = vmatprep.subr.mxu0 0.0
    %2048 = vmatpush1.msra.mxu0 0.0
    %2049 = vmatprep.subr.mxu0 0.0
    %2050 = vmatpush1.msra.mxu0 0.0
    %2051 = vmatprep.subr.mxu0 0.0
    %2052 = vmatpush1.msra.mxu0 0.0
    %2053 = vmatprep.subr.mxu0 0.0
    %2054 = vmatpush1.msra.mxu0 0.0
    %2055 = vmatprep.subr.mxu0 0.0
    %2056 = vmatpush1.msra.mxu0 0.0
    %2057 = vmatprep.subr.mxu0 0.0
    %2058 = vmatpush1.msra.mxu0 0.0
    %2059 = vmatprep.subr.mxu0 0.0
    %2060 = vmatpush1.msra.mxu0 0.0
    %2061 = vmatprep.subr.mxu0 0.0
    %2062 = vmatpush1.msra.mxu0 0.0
    %2063 = vmatprep.subr.mxu0 0.0
    %2064 = vmatpush1.msra.mxu0 0.0
    %2065 = vmatprep.subr.mxu0 0.0
    %2066 = vmatpush1.msra.mxu0 0.0
    %2067 = vmatprep.subr.mxu0 0.0
    %2068 = vmatpush1.msra.mxu0 0.0
    %2069 = vmatprep.subr.mxu0 0.0
    %2070 = vmatpush1.msra.mxu0 0.0
    %2071 = vmatprep.subr.mxu0 0.0
    %2072 = vmatpush1.msra.mxu0 0.0
    %2073 = vmatprep.subr.mxu0 0.0
    %2074 = vmatpush1.msra.mxu0 0.0
    %2075 = vmatprep.subr.mxu0 0.0
    %2076 = vmatpush1.msra.mxu0 0.0
    %2077 = vmatprep.subr.mxu0 0.0
    %2078 = vmatpush1.msra.mxu0 0.0
    %2079 = vmatprep.subr.mxu0 0.0
    %2080 = vmatpush1.msra.mxu0 0.0
    %2081 = vmatprep.subr.mxu0 0.0
    %2082 = vmatpush1.msra.mxu0 0.0
    %2083 = vmatprep.subr.mxu0 0.0
    %2084 = vmatpush1.msra.mxu0 0.0
    %2085 = vmatprep.subr.mxu0 0.0
    %2086 = vmatpush1.msra.mxu0 0.0
    %2087 = vmatprep.subr.mxu0 0.0
    %2088 = vmatpush1.msra.mxu0 0.0
    %2089 = vmatprep.mubr.f32.mxu0 0.0
    %2090 = vmatmul.mubr.f32.gmra.mrb[0].mxu0 %v2023
    %v2091 = vpop.f32.mrb[0].mxu0
    %v2092 = vadd.f32 %v120, %v2091
    %v2093 = vpop.f32.mrb[0].mxu0
    %2094 = vdwg.mxu0
    %v2095 = vxor.u32 %v2092, 2147483648
    %v2096 = vmul.f32 %v2095, 1.442695
    %v2097 = vpow.pop %v2096
    %v2098 = vadd.f32 %v2097, 1.0
    %v2099 = vrcp.pop %v2098
    %v2100 = vmul.f32 1.0, %v2099
    %v2101 = vtanh.pop %v2092
    %v2102 = vmul.f32 %v2100, %v1723
    %2104 = vrot.lane.b32.xlu0 %v2101, 64
    %v2105 = vpop.permute.xlu0 %2104
    %v2107 = vmul.f32 %v2100, %v2105
    %2109 = vrot.lane.b32.xlu0 %v2107, 32
    %v2110 = vpop.permute.xlu0 %2109
    %v2112 = vadd.f32 %v2102, %v2110
    %v2113 = vtanh.pop %v2112
    %2115 = vrot.lane.b32.xlu0 %v2113, 64
    %v2116 = vpop.permute.xlu0 %2115
    %v2118 = vmul.f32 %v2100, %v2116
    %v2121 = vunpack.c.l.s4 1966171168
    %v2122 = vunpack.c.0.s8 %v2121
    %v2123 = vlaneseq
    %v2124 = vshrl.u32 %v2123, 7
    %v2125 = vsub.s32 %v2122, %v2124
    %v2126 = vrot.slane %v2118, %v2125
    %v2127 = vcombine.high %v2126, %v2126
    %v2129 = vunpack.c.l.s4 1966171168
    %v2130 = vunpack.c.0.s8 %v2129
    %v2131 = vlaneseq
    %v2132 = vshrl.u32 %v2131, 7
    %v2133 = vsub.s32 %v2130, %v2132
    %v2134 = vrot.slane %v2126, %v2133
    %v2136 = vunpack.c.l.s4 1966171168
    %v2137 = vunpack.c.0.s8 %v2136
    %v2138 = vlaneseq
    %v2139 = vshrl.u32 %v2138, 7
    %v2140 = vsub.s32 %v2137, %v2139
    %v2141 = vrot.slane %v2127, %v2140
    %v2142 = vlaneseq
    %v2143 = vshrl.u32 %v2142, 7
    %v2144 = vsub.s32 0, %v2143
    %v2145 = vrot.slane %v2134, %v2144
    %v2146 = vlaneseq
    %v2147 = vshrl.u32 %v2146, 7
    %v2148 = vsub.s32 0, %v2147
    %v2149 = vrot.slane %v2141, %v2148
    %2150 = vrot.lane.b32.xlu0 %v2145, 32
    %v2151 = vpop.permute.xlu0 %2150
    %2152 = vrot.lane.b32.xlu0 %v2149, 32
    %v2153 = vpop.permute.xlu0 %2152
    %2156 = vst.msk [vmem:[#allocation13 + $0x3] sm:$0x1] %vm988, %v2151
    %2157 = vst.msk [vmem:[#allocation13 + $0xb] sm:$0x1] %vm988, %v2153
    %2159 = vrot.lane.b32.xlu0 %v2112, 96
    %v2160 = vpop.permute.xlu0 %2159
    %v2161 = vsel %vm554, %v2160, 0
    %2163 = vmatprep.subr.mxu0 0.0
    %2164 = vmatpush1.xpose.msra.mxu0 %v559
    %2165 = vmatprep.subr.mxu0 0.0
    %2166 = vmatpush1.xpose.msra.mxu0 0.0
    %2167 = vmatprep.subr.mxu0 0.0
    %2168 = vmatpush1.xpose.msra.mxu0 0.0
    %2169 = vmatprep.subr.mxu0 0.0
    %2170 = vmatpush1.xpose.msra.mxu0 0.0
    %2171 = vmatprep.subr.mxu0 0.0
    %2172 = vmatpush1.xpose.msra.mxu0 0.0
    %2173 = vmatprep.subr.mxu0 0.0
    %2174 = vmatpush1.xpose.msra.mxu0 0.0
    %2175 = vmatprep.subr.mxu0 0.0
    %2176 = vmatpush1.xpose.msra.mxu0 0.0
    %2177 = vmatprep.subr.mxu0 0.0
    %2178 = vmatpush1.xpose.msra.mxu0 0.0
    %2179 = vmatprep.subr.mxu0 0.0
    %2180 = vmatpush1.xpose.msra.mxu0 0.0
    %2181 = vmatprep.subr.mxu0 0.0
    %2182 = vmatpush1.xpose.msra.mxu0 0.0
    %2183 = vmatprep.subr.mxu0 0.0
    %2184 = vmatpush1.xpose.msra.mxu0 0.0
    %2185 = vmatprep.subr.mxu0 0.0
    %2186 = vmatpush1.xpose.msra.mxu0 0.0
    %2187 = vmatprep.subr.mxu0 0.0
    %2188 = vmatpush1.xpose.msra.mxu0 0.0
    %2189 = vmatprep.subr.mxu0 0.0
    %2190 = vmatpush1.xpose.msra.mxu0 0.0
    %2191 = vmatprep.subr.mxu0 0.0
    %2192 = vmatpush1.xpose.msra.mxu0 0.0
    %2193 = vmatprep.subr.mxu0 0.0
    %2194 = vmatpush1.xpose.msra.mxu0 0.0
    %2195 = vmatprep.subr.mxu0 0.0
    %2196 = vmatpush1.xpose.msra.mxu0 0.0
    %2197 = vmatprep.subr.mxu0 0.0
    %2198 = vmatpush1.xpose.msra.mxu0 0.0
    %2199 = vmatprep.subr.mxu0 0.0
    %2200 = vmatpush1.xpose.msra.mxu0 0.0
    %2201 = vmatprep.subr.mxu0 0.0
    %2202 = vmatpush1.xpose.msra.mxu0 0.0
    %2203 = vmatprep.subr.mxu0 0.0
    %2204 = vmatpush1.xpose.msra.mxu0 0.0
    %2205 = vmatprep.subr.mxu0 0.0
    %2206 = vmatpush1.xpose.msra.mxu0 0.0
    %2207 = vmatprep.subr.mxu0 0.0
    %2208 = vmatpush1.xpose.msra.mxu0 0.0
    %2209 = vmatprep.subr.mxu0 0.0
    %2210 = vmatpush1.xpose.msra.mxu0 0.0
    %2211 = vmatprep.subr.mxu0 0.0
    %2212 = vmatpush1.xpose.msra.mxu0 0.0
    %2213 = vmatprep.subr.mxu0 0.0
    %2214 = vmatpush1.xpose.msra.mxu0 0.0
    %2215 = vmatprep.subr.mxu0 0.0
    %2216 = vmatpush1.xpose.msra.mxu0 0.0
    %2217 = vmatprep.subr.mxu0 0.0
    %2218 = vmatpush1.xpose.msra.mxu0 0.0
    %2219 = vmatprep.subr.mxu0 0.0
    %2220 = vmatpush1.xpose.msra.mxu0 0.0
    %2221 = vmatprep.subr.mxu0 0.0
    %2222 = vmatpush1.xpose.msra.mxu0 0.0
    %2223 = vmatprep.subr.mxu0 0.0
    %2224 = vmatpush1.xpose.msra.mxu0 0.0
    %2225 = vmatprep.subr.mxu0 0.0
    %2226 = vmatpush1.xpose.msra.mxu0 0.0
    %2227 = vmatprep.mubr.f32.mxu0 0.0
    %2228 = vmatmul.mubr.f32.gmra.mrb[0].mxu0 %v2161
    %v2229 = vpop.f32.mrb[0].mxu0
    %v2230 = vadd.f32 0.0, %v2229
    %v2231 = vpop.f32.mrb[0].mxu0
    %2232 = vdwg.mxu0
    %2233 = vrot.lane.b32.xlu0 %v2118, 32
    %v2234 = vpop.permute.xlu0 %2233
    %v2235 = vsel %vm554, %v2234, 0
    %2237 = vmatprep.subr.mxu0 0.0
    %2238 = vmatpush1.xpose.msra.mxu0 %v632
    %2239 = vmatprep.subr.mxu0 0.0
    %2240 = vmatpush1.xpose.msra.mxu0 0.0
    %2241 = vmatprep.subr.mxu0 0.0
    %2242 = vmatpush1.xpose.msra.mxu0 0.0
    %2243 = vmatprep.subr.mxu0 0.0
    %2244 = vmatpush1.xpose.msra.mxu0 0.0
    %2245 = vmatprep.subr.mxu0 0.0
    %2246 = vmatpush1.xpose.msra.mxu0 0.0
    %2247 = vmatprep.subr.mxu0 0.0
    %2248 = vmatpush1.xpose.msra.mxu0 0.0
    %2249 = vmatprep.subr.mxu0 0.0
    %2250 = vmatpush1.xpose.msra.mxu0 0.0
    %2251 = vmatprep.subr.mxu0 0.0
    %2252 = vmatpush1.xpose.msra.mxu0 0.0
    %2253 = vmatprep.subr.mxu0 0.0
    %2254 = vmatpush1.xpose.msra.mxu0 0.0
    %2255 = vmatprep.subr.mxu0 0.0
    %2256 = vmatpush1.xpose.msra.mxu0 0.0
    %2257 = vmatprep.subr.mxu0 0.0
    %2258 = vmatpush1.xpose.msra.mxu0 0.0
    %2259 = vmatprep.subr.mxu0 0.0
    %2260 = vmatpush1.xpose.msra.mxu0 0.0
    %2261 = vmatprep.subr.mxu0 0.0
    %2262 = vmatpush1.xpose.msra.mxu0 0.0
    %2263 = vmatprep.subr.mxu0 0.0
    %2264 = vmatpush1.xpose.msra.mxu0 0.0
    %2265 = vmatprep.subr.mxu0 0.0
    %2266 = vmatpush1.xpose.msra.mxu0 0.0
    %2267 = vmatprep.subr.mxu0 0.0
    %2268 = vmatpush1.xpose.msra.mxu0 0.0
    %2269 = vmatprep.subr.mxu0 0.0
    %2270 = vmatpush1.xpose.msra.mxu0 0.0
    %2271 = vmatprep.subr.mxu0 0.0
    %2272 = vmatpush1.xpose.msra.mxu0 0.0
    %2273 = vmatprep.subr.mxu0 0.0
    %2274 = vmatpush1.xpose.msra.mxu0 0.0
    %2275 = vmatprep.subr.mxu0 0.0
    %2276 = vmatpush1.xpose.msra.mxu0 0.0
    %2277 = vmatprep.subr.mxu0 0.0
    %2278 = vmatpush1.xpose.msra.mxu0 0.0
    %2279 = vmatprep.subr.mxu0 0.0
    %2280 = vmatpush1.xpose.msra.mxu0 0.0
    %2281 = vmatprep.subr.mxu0 0.0
    %2282 = vmatpush1.xpose.msra.mxu0 0.0
    %2283 = vmatprep.subr.mxu0 0.0
    %2284 = vmatpush1.xpose.msra.mxu0 0.0
    %2285 = vmatprep.subr.mxu0 0.0
    %2286 = vmatpush1.xpose.msra.mxu0 0.0
    %2287 = vmatprep.subr.mxu0 0.0
    %2288 = vmatpush1.xpose.msra.mxu0 0.0
    %2289 = vmatprep.subr.mxu0 0.0
    %2290 = vmatpush1.xpose.msra.mxu0 0.0
    %2291 = vmatprep.subr.mxu0 0.0
    %2292 = vmatpush1.xpose.msra.mxu0 0.0
    %2293 = vmatprep.subr.mxu0 0.0
    %2294 = vmatpush1.xpose.msra.mxu0 0.0
    %2295 = vmatprep.subr.mxu0 0.0
    %2296 = vmatpush1.xpose.msra.mxu0 0.0
    %2297 = vmatprep.subr.mxu0 0.0
    %2298 = vmatpush1.xpose.msra.mxu0 0.0
    %2299 = vmatprep.subr.mxu0 0.0
    %2300 = vmatpush1.xpose.msra.mxu0 0.0
    %2301 = vmatprep.mubr.f32.mxu0 0.0
    %2302 = vmatmul.mubr.f32.gmra.mrb[0].mxu0 %v2235
    %v2303 = vpop.f32.mrb[0].mxu0
    %v2304 = vadd.f32 %v2230, %v2303
    %v2305 = vpop.f32.mrb[0].mxu0
    %2306 = vdwg.mxu0
    %v2307 = vadd.f32 %v2304, %v113
    %s2308 = sld [smem:[#allocation12]]
    %2310 = vset.pattern.permute.xlu0 0
    %2311 = vperm.xlu0 %2310, %v2307
    %v2312 = vpop.permute.xlu0 %2311
    %v2314 = vadd.f32 %v2312, %v715
    %v2315 = vtanh.pop %v2314
    %v2316 = vstv %s2308
    %v2317 = vmul.f32 %v2316, %v2315
    %v2318 = vadd.f32 %v2317, 0.0
    %s2319 = sld [smem:[#allocation12 + $0x1]]
    %2320 = vset.pattern.permute.xlu0 1
    %2321 = vperm.xlu0 %2320, %v2307
    %v2322 = vpop.permute.xlu0 %2321
    %v2324 = vadd.f32 %v2322, %v730
    %v2325 = vtanh.pop %v2324
    %v2326 = vstv %s2319
    %v2327 = vmul.f32 %v2326, %v2325
    %v2328 = vadd.f32 %v2318, %v2327
    %s2329 = sld [smem:[#allocation12 + $0x2]]
    %2330 = vset.pattern.permute.xlu0 2
    %2331 = vperm.xlu0 %2330, %v2307
    %v2332 = vpop.permute.xlu0 %2331
    %v2334 = vadd.f32 %v2332, %v745
    %v2335 = vtanh.pop %v2334
    %v2336 = vstv %s2329
    %v2337 = vmul.f32 %v2336, %v2335
    %v2338 = vadd.f32 %v2328, %v2337
    %s2339 = sld [smem:[#allocation12 + $0x3]]
    %2340 = vset.pattern.permute.xlu0 3
    %2341 = vperm.xlu0 %2340, %v2307
    %v2342 = vpop.permute.xlu0 %2341
    %v2344 = vadd.f32 %v2342, %v760
    %v2345 = vtanh.pop %v2344
    %v2346 = vstv %s2339
    %v2347 = vmul.f32 %v2346, %v2345
    %v2348 = vadd.f32 %v2338, %v2347
    %s2349 = sld [smem:[#allocation12 + $0x4]]
    %2350 = vset.pattern.permute.xlu0 4
    %2351 = vperm.xlu0 %2350, %v2307
    %v2352 = vpop.permute.xlu0 %2351
    %v2354 = vadd.f32 %v2352, %v775
    %v2355 = vtanh.pop %v2354
    %v2356 = vstv %s2349
    %v2357 = vmul.f32 %v2356, %v2355
    %v2358 = vadd.f32 %v2348, %v2357
    %s2359 = sld [smem:[#allocation12 + $0x5]]
    %2360 = vset.pattern.permute.xlu0 5
    %2361 = vperm.xlu0 %2360, %v2307
    %v2362 = vpop.permute.xlu0 %2361
    %v2364 = vadd.f32 %v2362, %v790
    %v2365 = vtanh.pop %v2364
    %v2366 = vstv %s2359
    %v2367 = vmul.f32 %v2366, %v2365
    %v2368 = vadd.f32 %v2358, %v2367
    %s2369 = sld [smem:[#allocation12 + $0x6]]
    %2370 = vset.pattern.permute.xlu0 6
    %2371 = vperm.xlu0 %2370, %v2307
    %v2372 = vpop.permute.xlu0 %2371
    %v2374 = vadd.f32 %v2372, %v805
    %v2375 = vtanh.pop %v2374
    %v2376 = vstv %s2369
    %v2377 = vmul.f32 %v2376, %v2375
    %v2378 = vadd.f32 %v2368, %v2377
    %s2379 = sld [smem:[#allocation12 + $0x7]]
    %2380 = vset.pattern.permute.xlu0 7
    %2381 = vperm.xlu0 %2380, %v2307
    %v2382 = vpop.permute.xlu0 %2381
    %v2384 = vadd.f32 %v2382, %v820
    %v2385 = vtanh.pop %v2384
    %v2386 = vstv %s2379
    %v2387 = vmul.f32 %v2386, %v2385
    %v2388 = vadd.f32 %v2378, %v2387
    %v2389 = vadd.f32 %v2388, %v827
    %v2390 = vsel %vm829, %v2389, -inf
    %2391 = vmax.xlane.f32.xlu0 %v2390
    %v2392 = vpop.xlane.xlu0 %2391
    %v2393 = vsub.f32 %v2389, %v2392
    %v2394 = vmul.f32 %v2393, 1.442695
    %v2395 = vpow.pop %v2394
    %v2396 = vsel %vm829, %v2395, 0.0
    %2397 = vadd.xlane.f32.xlu0 %v2396
    %v2398 = vpop.xlane.xlu0 %2397
    %v2399 = vrcp.pop %v2398
    %v2400 = vmul.f32 %v2395, %v2399
    %v2403 = vrot.slane %v131, 7
    %v2404 = vsel %vm714, %v2403, %v130
    %v2406 = vmul.f32 %v2400, %v2404
    %2407 = vrot.lane.b32.xlu0 %v2118, 36
    %v2408 = vpop.permute.xlu0 %2407
    %v2410 = vsel %vm847, %v2406, %v2408
    %v2412 = vsel %vm849, %v2410, 0
    %2414 = vmatprep.subr.mxu0 0.0
    %2415 = vmatpush1.msra.mxu0 %v102
    %2416 = vmatprep.subr.mxu0 0.0
    %2417 = vmatpush1.msra.mxu0 %v103
    %2418 = vmatprep.subr.mxu0 0.0
    %2419 = vmatpush1.msra.mxu0 %v104
    %2420 = vmatprep.subr.mxu0 0.0
    %2421 = vmatpush1.msra.mxu0 %v105
    %2422 = vmatprep.subr.mxu0 0.0
    %2423 = vmatpush1.msra.mxu0 %v855
    %2424 = vmatprep.subr.mxu0 0.0
    %2425 = vmatpush1.msra.mxu0 0.0
    %2426 = vmatprep.subr.mxu0 0.0
    %2427 = vmatpush1.msra.mxu0 0.0
    %2428 = vmatprep.subr.mxu0 0.0
    %2429 = vmatpush1.msra.mxu0 0.0
    %2430 = vmatprep.subr.mxu0 0.0
    %2431 = vmatpush1.msra.mxu0 0.0
    %2432 = vmatprep.subr.mxu0 0.0
    %2433 = vmatpush1.msra.mxu0 0.0
    %2434 = vmatprep.subr.mxu0 0.0
    %2435 = vmatpush1.msra.mxu0 0.0
    %2436 = vmatprep.subr.mxu0 0.0
    %2437 = vmatpush1.msra.mxu0 0.0
    %2438 = vmatprep.subr.mxu0 0.0
    %2439 = vmatpush1.msra.mxu0 0.0
    %2440 = vmatprep.subr.mxu0 0.0
    %2441 = vmatpush1.msra.mxu0 0.0
    %2442 = vmatprep.subr.mxu0 0.0
    %2443 = vmatpush1.msra.mxu0 0.0
    %2444 = vmatprep.subr.mxu0 0.0
    %2445 = vmatpush1.msra.mxu0 0.0
    %2446 = vmatprep.subr.mxu0 0.0
    %2447 = vmatpush1.msra.mxu0 0.0
    %2448 = vmatprep.subr.mxu0 0.0
    %2449 = vmatpush1.msra.mxu0 0.0
    %2450 = vmatprep.subr.mxu0 0.0
    %2451 = vmatpush1.msra.mxu0 0.0
    %2452 = vmatprep.subr.mxu0 0.0
    %2453 = vmatpush1.msra.mxu0 0.0
    %2454 = vmatprep.subr.mxu0 0.0
    %2455 = vmatpush1.msra.mxu0 0.0
    %2456 = vmatprep.subr.mxu0 0.0
    %2457 = vmatpush1.msra.mxu0 0.0
    %2458 = vmatprep.subr.mxu0 0.0
    %2459 = vmatpush1.msra.mxu0 0.0
    %2460 = vmatprep.subr.mxu0 0.0
    %2461 = vmatpush1.msra.mxu0 0.0
    %2462 = vmatprep.subr.mxu0 0.0
    %2463 = vmatpush1.msra.mxu0 0.0
    %2464 = vmatprep.subr.mxu0 0.0
    %2465 = vmatpush1.msra.mxu0 0.0
    %2466 = vmatprep.subr.mxu0 0.0
    %2467 = vmatpush1.msra.mxu0 0.0
    %2468 = vmatprep.subr.mxu0 0.0
    %2469 = vmatpush1.msra.mxu0 0.0
    %2470 = vmatprep.subr.mxu0 0.0
    %2471 = vmatpush1.msra.mxu0 0.0
    %2472 = vmatprep.subr.mxu0 0.0
    %2473 = vmatpush1.msra.mxu0 0.0
    %2474 = vmatprep.subr.mxu0 0.0
    %2475 = vmatpush1.msra.mxu0 0.0
    %2476 = vmatprep.subr.mxu0 0.0
    %2477 = vmatpush1.msra.mxu0 0.0
    %2478 = vmatprep.mubr.f32.mxu0 0.0
    %2479 = vmatmul.mubr.f32.gmra.mrb[0].mxu0 %v2412
    %v2480 = vpop.f32.mrb[0].mxu0
    %v2481 = vadd.f32 %v120, %v2480
    %v2482 = vpop.f32.mrb[0].mxu0
    %2483 = vdwg.mxu0
    %v2484 = vxor.u32 %v2481, 2147483648
    %v2485 = vmul.f32 %v2484, 1.442695
    %v2486 = vpow.pop %v2485
    %v2487 = vadd.f32 %v2486, 1.0
    %v2488 = vrcp.pop %v2487
    %v2489 = vmul.f32 1.0, %v2488
    %v2490 = vtanh.pop %v2481
    %v2491 = vmul.f32 %v2489, %v2112
    %2493 = vrot.lane.b32.xlu0 %v2490, 64
    %v2494 = vpop.permute.xlu0 %2493
    %v2496 = vmul.f32 %v2489, %v2494
    %2498 = vrot.lane.b32.xlu0 %v2496, 32
    %v2499 = vpop.permute.xlu0 %2498
    %v2501 = vadd.f32 %v2491, %v2499
    %v2502 = vtanh.pop %v2501
    %2504 = vrot.lane.b32.xlu0 %v2502, 64
    %v2505 = vpop.permute.xlu0 %2504
    %v2507 = vmul.f32 %v2489, %v2505
    %v2510 = vunpack.c.l.s4 1966171168
    %v2511 = vunpack.c.0.s8 %v2510
    %v2512 = vlaneseq
    %v2513 = vshrl.u32 %v2512, 7
    %v2514 = vsub.s32 %v2511, %v2513
    %v2515 = vrot.slane %v2507, %v2514
    %v2516 = vcombine.high %v2515, %v2515
    %v2518 = vunpack.c.l.s4 1966171168
    %v2519 = vunpack.c.0.s8 %v2518
    %v2520 = vlaneseq
    %v2521 = vshrl.u32 %v2520, 7
    %v2522 = vsub.s32 %v2519, %v2521
    %v2523 = vrot.slane %v2515, %v2522
    %v2525 = vunpack.c.l.s4 1966171168
    %v2526 = vunpack.c.0.s8 %v2525
    %v2527 = vlaneseq
    %v2528 = vshrl.u32 %v2527, 7
    %v2529 = vsub.s32 %v2526, %v2528
    %v2530 = vrot.slane %v2516, %v2529
    %v2531 = vlaneseq
    %v2532 = vshrl.u32 %v2531, 7
    %v2533 = vsub.s32 0, %v2532
    %v2534 = vrot.slane %v2523, %v2533
    %v2535 = vlaneseq
    %v2536 = vshrl.u32 %v2535, 7
    %v2537 = vsub.s32 0, %v2536
    %v2538 = vrot.slane %v2530, %v2537
    %2539 = vrot.lane.b32.xlu0 %v2534, 32
    %v2540 = vpop.permute.xlu0 %2539
    %2541 = vrot.lane.b32.xlu0 %v2538, 32
    %v2542 = vpop.permute.xlu0 %2541
    %2545 = vst.msk [vmem:[#allocation13 + $0x4] sm:$0x1] %vm988, %v2540
    %2546 = vst.msk [vmem:[#allocation13 + $0xc] sm:$0x1] %vm988, %v2542
    %2548 = vrot.lane.b32.xlu0 %v2501, 96
    %v2549 = vpop.permute.xlu0 %2548
    %v2550 = vsel %vm554, %v2549, 0
    %2552 = vmatprep.subr.mxu0 0.0
    %2553 = vmatpush1.xpose.msra.mxu0 %v559
    %2554 = vmatprep.subr.mxu0 0.0
    %2555 = vmatpush1.xpose.msra.mxu0 0.0
    %2556 = vmatprep.subr.mxu0 0.0
    %2557 = vmatpush1.xpose.msra.mxu0 0.0
    %2558 = vmatprep.subr.mxu0 0.0
    %2559 = vmatpush1.xpose.msra.mxu0 0.0
    %2560 = vmatprep.subr.mxu0 0.0
    %2561 = vmatpush1.xpose.msra.mxu0 0.0
    %2562 = vmatprep.subr.mxu0 0.0
    %2563 = vmatpush1.xpose.msra.mxu0 0.0
    %2564 = vmatprep.subr.mxu0 0.0
    %2565 = vmatpush1.xpose.msra.mxu0 0.0
    %2566 = vmatprep.subr.mxu0 0.0
    %2567 = vmatpush1.xpose.msra.mxu0 0.0
    %2568 = vmatprep.subr.mxu0 0.0
    %2569 = vmatpush1.xpose.msra.mxu0 0.0
    %2570 = vmatprep.subr.mxu0 0.0
    %2571 = vmatpush1.xpose.msra.mxu0 0.0
    %2572 = vmatprep.subr.mxu0 0.0
    %2573 = vmatpush1.xpose.msra.mxu0 0.0
    %2574 = vmatprep.subr.mxu0 0.0
    %2575 = vmatpush1.xpose.msra.mxu0 0.0
    %2576 = vmatprep.subr.mxu0 0.0
    %2577 = vmatpush1.xpose.msra.mxu0 0.0
    %2578 = vmatprep.subr.mxu0 0.0
    %2579 = vmatpush1.xpose.msra.mxu0 0.0
    %2580 = vmatprep.subr.mxu0 0.0
    %2581 = vmatpush1.xpose.msra.mxu0 0.0
    %2582 = vmatprep.subr.mxu0 0.0
    %2583 = vmatpush1.xpose.msra.mxu0 0.0
    %2584 = vmatprep.subr.mxu0 0.0
    %2585 = vmatpush1.xpose.msra.mxu0 0.0
    %2586 = vmatprep.subr.mxu0 0.0
    %2587 = vmatpush1.xpose.msra.mxu0 0.0
    %2588 = vmatprep.subr.mxu0 0.0
    %2589 = vmatpush1.xpose.msra.mxu0 0.0
    %2590 = vmatprep.subr.mxu0 0.0
    %2591 = vmatpush1.xpose.msra.mxu0 0.0
    %2592 = vmatprep.subr.mxu0 0.0
    %2593 = vmatpush1.xpose.msra.mxu0 0.0
    %2594 = vmatprep.subr.mxu0 0.0
    %2595 = vmatpush1.xpose.msra.mxu0 0.0
    %2596 = vmatprep.subr.mxu0 0.0
    %2597 = vmatpush1.xpose.msra.mxu0 0.0
    %2598 = vmatprep.subr.mxu0 0.0
    %2599 = vmatpush1.xpose.msra.mxu0 0.0
    %2600 = vmatprep.subr.mxu0 0.0
    %2601 = vmatpush1.xpose.msra.mxu0 0.0
    %2602 = vmatprep.subr.mxu0 0.0
    %2603 = vmatpush1.xpose.msra.mxu0 0.0
    %2604 = vmatprep.subr.mxu0 0.0
    %2605 = vmatpush1.xpose.msra.mxu0 0.0
    %2606 = vmatprep.subr.mxu0 0.0
    %2607 = vmatpush1.xpose.msra.mxu0 0.0
    %2608 = vmatprep.subr.mxu0 0.0
    %2609 = vmatpush1.xpose.msra.mxu0 0.0
    %2610 = vmatprep.subr.mxu0 0.0
    %2611 = vmatpush1.xpose.msra.mxu0 0.0
    %2612 = vmatprep.subr.mxu0 0.0
    %2613 = vmatpush1.xpose.msra.mxu0 0.0
    %2614 = vmatprep.subr.mxu0 0.0
    %2615 = vmatpush1.xpose.msra.mxu0 0.0
    %2616 = vmatprep.mubr.f32.mxu0 0.0
    %2617 = vmatmul.mubr.f32.gmra.mrb[0].mxu0 %v2550
    %v2618 = vpop.f32.mrb[0].mxu0
    %v2619 = vadd.f32 0.0, %v2618
    %v2620 = vpop.f32.mrb[0].mxu0
    %2621 = vdwg.mxu0
    %2622 = vrot.lane.b32.xlu0 %v2507, 32
    %v2623 = vpop.permute.xlu0 %2622
    %v2624 = vsel %vm554, %v2623, 0
    %2626 = vmatprep.subr.mxu0 0.0
    %2627 = vmatpush1.xpose.msra.mxu0 %v632
    %2628 = vmatprep.subr.mxu0 0.0
    %2629 = vmatpush1.xpose.msra.mxu0 0.0
    %2630 = vmatprep.subr.mxu0 0.0
    %2631 = vmatpush1.xpose.msra.mxu0 0.0
    %2632 = vmatprep.subr.mxu0 0.0
    %2633 = vmatpush1.xpose.msra.mxu0 0.0
    %2634 = vmatprep.subr.mxu0 0.0
    %2635 = vmatpush1.xpose.msra.mxu0 0.0
    %2636 = vmatprep.subr.mxu0 0.0
    %2637 = vmatpush1.xpose.msra.mxu0 0.0
    %2638 = vmatprep.subr.mxu0 0.0
    %2639 = vmatpush1.xpose.msra.mxu0 0.0
    %2640 = vmatprep.subr.mxu0 0.0
    %2641 = vmatpush1.xpose.msra.mxu0 0.0
    %2642 = vmatprep.subr.mxu0 0.0
    %2643 = vmatpush1.xpose.msra.mxu0 0.0
    %2644 = vmatprep.subr.mxu0 0.0
    %2645 = vmatpush1.xpose.msra.mxu0 0.0
    %2646 = vmatprep.subr.mxu0 0.0
    %2647 = vmatpush1.xpose.msra.mxu0 0.0
    %2648 = vmatprep.subr.mxu0 0.0
    %2649 = vmatpush1.xpose.msra.mxu0 0.0
    %2650 = vmatprep.subr.mxu0 0.0
    %2651 = vmatpush1.xpose.msra.mxu0 0.0
    %2652 = vmatprep.subr.mxu0 0.0
    %2653 = vmatpush1.xpose.msra.mxu0 0.0
    %2654 = vmatprep.subr.mxu0 0.0
    %2655 = vmatpush1.xpose.msra.mxu0 0.0
    %2656 = vmatprep.subr.mxu0 0.0
    %2657 = vmatpush1.xpose.msra.mxu0 0.0
    %2658 = vmatprep.subr.mxu0 0.0
    %2659 = vmatpush1.xpose.msra.mxu0 0.0
    %2660 = vmatprep.subr.mxu0 0.0
    %2661 = vmatpush1.xpose.msra.mxu0 0.0
    %2662 = vmatprep.subr.mxu0 0.0
    %2663 = vmatpush1.xpose.msra.mxu0 0.0
    %2664 = vmatprep.subr.mxu0 0.0
    %2665 = vmatpush1.xpose.msra.mxu0 0.0
    %2666 = vmatprep.subr.mxu0 0.0
    %2667 = vmatpush1.xpose.msra.mxu0 0.0
    %2668 = vmatprep.subr.mxu0 0.0
    %2669 = vmatpush1.xpose.msra.mxu0 0.0
    %2670 = vmatprep.subr.mxu0 0.0
    %2671 = vmatpush1.xpose.msra.mxu0 0.0
    %2672 = vmatprep.subr.mxu0 0.0
    %2673 = vmatpush1.xpose.msra.mxu0 0.0
    %2674 = vmatprep.subr.mxu0 0.0
    %2675 = vmatpush1.xpose.msra.mxu0 0.0
    %2676 = vmatprep.subr.mxu0 0.0
    %2677 = vmatpush1.xpose.msra.mxu0 0.0
    %2678 = vmatprep.subr.mxu0 0.0
    %2679 = vmatpush1.xpose.msra.mxu0 0.0
    %2680 = vmatprep.subr.mxu0 0.0
    %2681 = vmatpush1.xpose.msra.mxu0 0.0
    %2682 = vmatprep.subr.mxu0 0.0
    %2683 = vmatpush1.xpose.msra.mxu0 0.0
    %2684 = vmatprep.subr.mxu0 0.0
    %2685 = vmatpush1.xpose.msra.mxu0 0.0
    %2686 = vmatprep.subr.mxu0 0.0
    %2687 = vmatpush1.xpose.msra.mxu0 0.0
    %2688 = vmatprep.subr.mxu0 0.0
    %2689 = vmatpush1.xpose.msra.mxu0 0.0
    %2690 = vmatprep.mubr.f32.mxu0 0.0
    %2691 = vmatmul.mubr.f32.gmra.mrb[0].mxu0 %v2624
    %v2692 = vpop.f32.mrb[0].mxu0
    %v2693 = vadd.f32 %v2619, %v2692
    %v2694 = vpop.f32.mrb[0].mxu0
    %2695 = vdwg.mxu0
    %v2696 = vadd.f32 %v2693, %v113
    %s2697 = sld [smem:[#allocation12]]
    %2699 = vset.pattern.permute.xlu0 0
    %2700 = vperm.xlu0 %2699, %v2696
    %v2701 = vpop.permute.xlu0 %2700
    %v2703 = vadd.f32 %v2701, %v715
    %v2704 = vtanh.pop %v2703
    %v2705 = vstv %s2697
    %v2706 = vmul.f32 %v2705, %v2704
    %v2707 = vadd.f32 %v2706, 0.0
    %s2708 = sld [smem:[#allocation12 + $0x1]]
    %2709 = vset.pattern.permute.xlu0 1
    %2710 = vperm.xlu0 %2709, %v2696
    %v2711 = vpop.permute.xlu0 %2710
    %v2713 = vadd.f32 %v2711, %v730
    %v2714 = vtanh.pop %v2713
    %v2715 = vstv %s2708
    %v2716 = vmul.f32 %v2715, %v2714
    %v2717 = vadd.f32 %v2707, %v2716
    %s2718 = sld [smem:[#allocation12 + $0x2]]
    %2719 = vset.pattern.permute.xlu0 2
    %2720 = vperm.xlu0 %2719, %v2696
    %v2721 = vpop.permute.xlu0 %2720
    %v2723 = vadd.f32 %v2721, %v745
    %v2724 = vtanh.pop %v2723
    %v2725 = vstv %s2718
    %v2726 = vmul.f32 %v2725, %v2724
    %v2727 = vadd.f32 %v2717, %v2726
    %s2728 = sld [smem:[#allocation12 + $0x3]]
    %2729 = vset.pattern.permute.xlu0 3
    %2730 = vperm.xlu0 %2729, %v2696
    %v2731 = vpop.permute.xlu0 %2730
    %v2733 = vadd.f32 %v2731, %v760
    %v2734 = vtanh.pop %v2733
    %v2735 = vstv %s2728
    %v2736 = vmul.f32 %v2735, %v2734
    %v2737 = vadd.f32 %v2727, %v2736
    %s2738 = sld [smem:[#allocation12 + $0x4]]
    %2739 = vset.pattern.permute.xlu0 4
    %2740 = vperm.xlu0 %2739, %v2696
    %v2741 = vpop.permute.xlu0 %2740
    %v2743 = vadd.f32 %v2741, %v775
    %v2744 = vtanh.pop %v2743
    %v2745 = vstv %s2738
    %v2746 = vmul.f32 %v2745, %v2744
    %v2747 = vadd.f32 %v2737, %v2746
    %s2748 = sld [smem:[#allocation12 + $0x5]]
    %2749 = vset.pattern.permute.xlu0 5
    %2750 = vperm.xlu0 %2749, %v2696
    %v2751 = vpop.permute.xlu0 %2750
    %v2753 = vadd.f32 %v2751, %v790
    %v2754 = vtanh.pop %v2753
    %v2755 = vstv %s2748
    %v2756 = vmul.f32 %v2755, %v2754
    %v2757 = vadd.f32 %v2747, %v2756
    %s2758 = sld [smem:[#allocation12 + $0x6]]
    %2759 = vset.pattern.permute.xlu0 6
    %2760 = vperm.xlu0 %2759, %v2696
    %v2761 = vpop.permute.xlu0 %2760
    %v2763 = vadd.f32 %v2761, %v805
    %v2764 = vtanh.pop %v2763
    %v2765 = vstv %s2758
    %v2766 = vmul.f32 %v2765, %v2764
    %v2767 = vadd.f32 %v2757, %v2766
    %s2768 = sld [smem:[#allocation12 + $0x7]]
    %2769 = vset.pattern.permute.xlu0 7
    %2770 = vperm.xlu0 %2769, %v2696
    %v2771 = vpop.permute.xlu0 %2770
    %v2773 = vadd.f32 %v2771, %v820
    %v2774 = vtanh.pop %v2773
    %v2775 = vstv %s2768
    %v2776 = vmul.f32 %v2775, %v2774
    %v2777 = vadd.f32 %v2767, %v2776
    %v2778 = vadd.f32 %v2777, %v827
    %v2779 = vsel %vm829, %v2778, -inf
    %2780 = vmax.xlane.f32.xlu0 %v2779
    %v2781 = vpop.xlane.xlu0 %2780
    %v2782 = vsub.f32 %v2778, %v2781
    %v2783 = vmul.f32 %v2782, 1.442695
    %v2784 = vpow.pop %v2783
    %v2785 = vsel %vm829, %v2784, 0.0
    %2786 = vadd.xlane.f32.xlu0 %v2785
    %v2787 = vpop.xlane.xlu0 %2786
    %v2788 = vrcp.pop %v2787
    %v2789 = vmul.f32 %v2784, %v2788
    %v2792 = vrot.slane %v133, 7
    %v2793 = vsel %vm714, %v2792, %v132
    %v2795 = vmul.f32 %v2789, %v2793
    %2796 = vrot.lane.b32.xlu0 %v2507, 36
    %v2797 = vpop.permute.xlu0 %2796
    %v2799 = vsel %vm847, %v2795, %v2797
    %v2801 = vsel %vm849, %v2799, 0
    %2803 = vmatprep.subr.mxu0 0.0
    %2804 = vmatpush1.msra.mxu0 %v102
    %2805 = vmatprep.subr.mxu0 0.0
    %2806 = vmatpush1.msra.mxu0 %v103
    %2807 = vmatprep.subr.mxu0 0.0
    %2808 = vmatpush1.msra.mxu0 %v104
    %2809 = vmatprep.subr.mxu0 0.0
    %2810 = vmatpush1.msra.mxu0 %v105
    %2811 = vmatprep.subr.mxu0 0.0
    %2812 = vmatpush1.msra.mxu0 %v855
    %2813 = vmatprep.subr.mxu0 0.0
    %2814 = vmatpush1.msra.mxu0 0.0
    %2815 = vmatprep.subr.mxu0 0.0
    %2816 = vmatpush1.msra.mxu0 0.0
    %2817 = vmatprep.subr.mxu0 0.0
    %2818 = vmatpush1.msra.mxu0 0.0
    %2819 = vmatprep.subr.mxu0 0.0
    %2820 = vmatpush1.msra.mxu0 0.0
    %2821 = vmatprep.subr.mxu0 0.0
    %2822 = vmatpush1.msra.mxu0 0.0
    %2823 = vmatprep.subr.mxu0 0.0
    %2824 = vmatpush1.msra.mxu0 0.0
    %2825 = vmatprep.subr.mxu0 0.0
    %2826 = vmatpush1.msra.mxu0 0.0
    %2827 = vmatprep.subr.mxu0 0.0
    %2828 = vmatpush1.msra.mxu0 0.0
    %2829 = vmatprep.subr.mxu0 0.0
    %2830 = vmatpush1.msra.mxu0 0.0
    %2831 = vmatprep.subr.mxu0 0.0
    %2832 = vmatpush1.msra.mxu0 0.0
    %2833 = vmatprep.subr.mxu0 0.0
    %2834 = vmatpush1.msra.mxu0 0.0
    %2835 = vmatprep.subr.mxu0 0.0
    %2836 = vmatpush1.msra.mxu0 0.0
    %2837 = vmatprep.subr.mxu0 0.0
    %2838 = vmatpush1.msra.mxu0 0.0
    %2839 = vmatprep.subr.mxu0 0.0
    %2840 = vmatpush1.msra.mxu0 0.0
    %2841 = vmatprep.subr.mxu0 0.0
    %2842 = vmatpush1.msra.mxu0 0.0
    %2843 = vmatprep.subr.mxu0 0.0
    %2844 = vmatpush1.msra.mxu0 0.0
    %2845 = vmatprep.subr.mxu0 0.0
    %2846 = vmatpush1.msra.mxu0 0.0
    %2847 = vmatprep.subr.mxu0 0.0
    %2848 = vmatpush1.msra.mxu0 0.0
    %2849 = vmatprep.subr.mxu0 0.0
    %2850 = vmatpush1.msra.mxu0 0.0
    %2851 = vmatprep.subr.mxu0 0.0
    %2852 = vmatpush1.msra.mxu0 0.0
    %2853 = vmatprep.subr.mxu0 0.0
    %2854 = vmatpush1.msra.mxu0 0.0
    %2855 = vmatprep.subr.mxu0 0.0
    %2856 = vmatpush1.msra.mxu0 0.0
    %2857 = vmatprep.subr.mxu0 0.0
    %2858 = vmatpush1.msra.mxu0 0.0
    %2859 = vmatprep.subr.mxu0 0.0
    %2860 = vmatpush1.msra.mxu0 0.0
    %2861 = vmatprep.subr.mxu0 0.0
    %2862 = vmatpush1.msra.mxu0 0.0
    %2863 = vmatprep.subr.mxu0 0.0
    %2864 = vmatpush1.msra.mxu0 0.0
    %2865 = vmatprep.subr.mxu0 0.0
    %2866 = vmatpush1.msra.mxu0 0.0
    %2867 = vmatprep.mubr.f32.mxu0 0.0
    %2868 = vmatmul.mubr.f32.gmra.mrb[0].mxu0 %v2801
    %v2869 = vpop.f32.mrb[0].mxu0
    %v2870 = vadd.f32 %v120, %v2869
    %v2871 = vpop.f32.mrb[0].mxu0
    %2872 = vdwg.mxu0
    %v2873 = vxor.u32 %v2870, 2147483648
    %v2874 = vmul.f32 %v2873, 1.442695
    %v2875 = vpow.pop %v2874
    %v2876 = vadd.f32 %v2875, 1.0
    %v2877 = vrcp.pop %v2876
    %v2878 = vmul.f32 1.0, %v2877
    %v2879 = vtanh.pop %v2870
    %v2880 = vmul.f32 %v2878, %v2501
    %2882 = vrot.lane.b32.xlu0 %v2879, 64
    %v2883 = vpop.permute.xlu0 %2882
    %v2885 = vmul.f32 %v2878, %v2883
    %2887 = vrot.lane.b32.xlu0 %v2885, 32
    %v2888 = vpop.permute.xlu0 %2887
    %v2890 = vadd.f32 %v2880, %v2888
    %v2891 = vtanh.pop %v2890
    %2893 = vrot.lane.b32.xlu0 %v2891, 64
    %v2894 = vpop.permute.xlu0 %2893
    %v2896 = vmul.f32 %v2878, %v2894
    %v2899 = vunpack.c.l.s4 1966171168
    %v2900 = vunpack.c.0.s8 %v2899
    %v2901 = vlaneseq
    %v2902 = vshrl.u32 %v2901, 7
    %v2903 = vsub.s32 %v2900, %v2902
    %v2904 = vrot.slane %v2896, %v2903
    %v2905 = vcombine.high %v2904, %v2904
    %v2907 = vunpack.c.l.s4 1966171168
    %v2908 = vunpack.c.0.s8 %v2907
    %v2909 = vlaneseq
    %v2910 = vshrl.u32 %v2909, 7
    %v2911 = vsub.s32 %v2908, %v2910
    %v2912 = vrot.slane %v2904, %v2911
    %v2914 = vunpack.c.l.s4 1966171168
    %v2915 = vunpack.c.0.s8 %v2914
    %v2916 = vlaneseq
    %v2917 = vshrl.u32 %v2916, 7
    %v2918 = vsub.s32 %v2915, %v2917
    %v2919 = vrot.slane %v2905, %v2918
    %v2920 = vlaneseq
    %v2921 = vshrl.u32 %v2920, 7
    %v2922 = vsub.s32 0, %v2921
    %v2923 = vrot.slane %v2912, %v2922
    %v2924 = vlaneseq
    %v2925 = vshrl.u32 %v2924, 7
    %v2926 = vsub.s32 0, %v2925
    %v2927 = vrot.slane %v2919, %v2926
    %2928 = vrot.lane.b32.xlu0 %v2923, 32
    %v2929 = vpop.permute.xlu0 %2928
    %2930 = vrot.lane.b32.xlu0 %v2927, 32
    %v2931 = vpop.permute.xlu0 %2930
    %2934 = vst.msk [vmem:[#allocation13 + $0x5] sm:$0x1] %vm988, %v2929
    %2935 = vst.msk [vmem:[#allocation13 + $0xd] sm:$0x1] %vm988, %v2931
    %2937 = vrot.lane.b32.xlu0 %v2890, 96
    %v2938 = vpop.permute.xlu0 %2937
    %v2939 = vsel %vm554, %v2938, 0
    %2941 = vmatprep.subr.mxu0 0.0
    %2942 = vmatpush1.xpose.msra.mxu0 %v559
    %2943 = vmatprep.subr.mxu0 0.0
    %2944 = vmatpush1.xpose.msra.mxu0 0.0
    %2945 = vmatprep.subr.mxu0 0.0
    %2946 = vmatpush1.xpose.msra.mxu0 0.0
    %2947 = vmatprep.subr.mxu0 0.0
    %2948 = vmatpush1.xpose.msra.mxu0 0.0
    %2949 = vmatprep.subr.mxu0 0.0
    %2950 = vmatpush1.xpose.msra.mxu0 0.0
    %2951 = vmatprep.subr.mxu0 0.0
    %2952 = vmatpush1.xpose.msra.mxu0 0.0
    %2953 = vmatprep.subr.mxu0 0.0
    %2954 = vmatpush1.xpose.msra.mxu0 0.0
    %2955 = vmatprep.subr.mxu0 0.0
    %2956 = vmatpush1.xpose.msra.mxu0 0.0
    %2957 = vmatprep.subr.mxu0 0.0
    %2958 = vmatpush1.xpose.msra.mxu0 0.0
    %2959 = vmatprep.subr.mxu0 0.0
    %2960 = vmatpush1.xpose.msra.mxu0 0.0
    %2961 = vmatprep.subr.mxu0 0.0
    %2962 = vmatpush1.xpose.msra.mxu0 0.0
    %2963 = vmatprep.subr.mxu0 0.0
    %2964 = vmatpush1.xpose.msra.mxu0 0.0
    %2965 = vmatprep.subr.mxu0 0.0
    %2966 = vmatpush1.xpose.msra.mxu0 0.0
    %2967 = vmatprep.subr.mxu0 0.0
    %2968 = vmatpush1.xpose.msra.mxu0 0.0
    %2969 = vmatprep.subr.mxu0 0.0
    %2970 = vmatpush1.xpose.msra.mxu0 0.0
    %2971 = vmatprep.subr.mxu0 0.0
    %2972 = vmatpush1.xpose.msra.mxu0 0.0
    %2973 = vmatprep.subr.mxu0 0.0
    %2974 = vmatpush1.xpose.msra.mxu0 0.0
    %2975 = vmatprep.subr.mxu0 0.0
    %2976 = vmatpush1.xpose.msra.mxu0 0.0
    %2977 = vmatprep.subr.mxu0 0.0
    %2978 = vmatpush1.xpose.msra.mxu0 0.0
    %2979 = vmatprep.subr.mxu0 0.0
    %2980 = vmatpush1.xpose.msra.mxu0 0.0
    %2981 = vmatprep.subr.mxu0 0.0
    %2982 = vmatpush1.xpose.msra.mxu0 0.0
    %2983 = vmatprep.subr.mxu0 0.0
    %2984 = vmatpush1.xpose.msra.mxu0 0.0
    %2985 = vmatprep.subr.mxu0 0.0
    %2986 = vmatpush1.xpose.msra.mxu0 0.0
    %2987 = vmatprep.subr.mxu0 0.0
    %2988 = vmatpush1.xpose.msra.mxu0 0.0
    %2989 = vmatprep.subr.mxu0 0.0
    %2990 = vmatpush1.xpose.msra.mxu0 0.0
    %2991 = vmatprep.subr.mxu0 0.0
    %2992 = vmatpush1.xpose.msra.mxu0 0.0
    %2993 = vmatprep.subr.mxu0 0.0
    %2994 = vmatpush1.xpose.msra.mxu0 0.0
    %2995 = vmatprep.subr.mxu0 0.0
    %2996 = vmatpush1.xpose.msra.mxu0 0.0
    %2997 = vmatprep.subr.mxu0 0.0
    %2998 = vmatpush1.xpose.msra.mxu0 0.0
    %2999 = vmatprep.subr.mxu0 0.0
    %3000 = vmatpush1.xpose.msra.mxu0 0.0
    %3001 = vmatprep.subr.mxu0 0.0
    %3002 = vmatpush1.xpose.msra.mxu0 0.0
    %3003 = vmatprep.subr.mxu0 0.0
    %3004 = vmatpush1.xpose.msra.mxu0 0.0
    %3005 = vmatprep.mubr.f32.mxu0 0.0
    %3006 = vmatmul.mubr.f32.gmra.mrb[0].mxu0 %v2939
    %v3007 = vpop.f32.mrb[0].mxu0
    %v3008 = vadd.f32 0.0, %v3007
    %v3009 = vpop.f32.mrb[0].mxu0
    %3010 = vdwg.mxu0
    %3011 = vrot.lane.b32.xlu0 %v2896, 32
    %v3012 = vpop.permute.xlu0 %3011
    %v3013 = vsel %vm554, %v3012, 0
    %3015 = vmatprep.subr.mxu0 0.0
    %3016 = vmatpush1.xpose.msra.mxu0 %v632
    %3017 = vmatprep.subr.mxu0 0.0
    %3018 = vmatpush1.xpose.msra.mxu0 0.0
    %3019 = vmatprep.subr.mxu0 0.0
    %3020 = vmatpush1.xpose.msra.mxu0 0.0
    %3021 = vmatprep.subr.mxu0 0.0
    %3022 = vmatpush1.xpose.msra.mxu0 0.0
    %3023 = vmatprep.subr.mxu0 0.0
    %3024 = vmatpush1.xpose.msra.mxu0 0.0
    %3025 = vmatprep.subr.mxu0 0.0
    %3026 = vmatpush1.xpose.msra.mxu0 0.0
    %3027 = vmatprep.subr.mxu0 0.0
    %3028 = vmatpush1.xpose.msra.mxu0 0.0
    %3029 = vmatprep.subr.mxu0 0.0
    %3030 = vmatpush1.xpose.msra.mxu0 0.0
    %3031 = vmatprep.subr.mxu0 0.0
    %3032 = vmatpush1.xpose.msra.mxu0 0.0
    %3033 = vmatprep.subr.mxu0 0.0
    %3034 = vmatpush1.xpose.msra.mxu0 0.0
    %3035 = vmatprep.subr.mxu0 0.0
    %3036 = vmatpush1.xpose.msra.mxu0 0.0
    %3037 = vmatprep.subr.mxu0 0.0
    %3038 = vmatpush1.xpose.msra.mxu0 0.0
    %3039 = vmatprep.subr.mxu0 0.0
    %3040 = vmatpush1.xpose.msra.mxu0 0.0
    %3041 = vmatprep.subr.mxu0 0.0
    %3042 = vmatpush1.xpose.msra.mxu0 0.0
    %3043 = vmatprep.subr.mxu0 0.0
    %3044 = vmatpush1.xpose.msra.mxu0 0.0
    %3045 = vmatprep.subr.mxu0 0.0
    %3046 = vmatpush1.xpose.msra.mxu0 0.0
    %3047 = vmatprep.subr.mxu0 0.0
    %3048 = vmatpush1.xpose.msra.mxu0 0.0
    %3049 = vmatprep.subr.mxu0 0.0
    %3050 = vmatpush1.xpose.msra.mxu0 0.0
    %3051 = vmatprep.subr.mxu0 0.0
    %3052 = vmatpush1.xpose.msra.mxu0 0.0
    %3053 = vmatprep.subr.mxu0 0.0
    %3054 = vmatpush1.xpose.msra.mxu0 0.0
    %3055 = vmatprep.subr.mxu0 0.0
    %3056 = vmatpush1.xpose.msra.mxu0 0.0
    %3057 = vmatprep.subr.mxu0 0.0
    %3058 = vmatpush1.xpose.msra.mxu0 0.0
    %3059 = vmatprep.subr.mxu0 0.0
    %3060 = vmatpush1.xpose.msra.mxu0 0.0
    %3061 = vmatprep.subr.mxu0 0.0
    %3062 = vmatpush1.xpose.msra.mxu0 0.0
    %3063 = vmatprep.subr.mxu0 0.0
    %3064 = vmatpush1.xpose.msra.mxu0 0.0
    %3065 = vmatprep.subr.mxu0 0.0
    %3066 = vmatpush1.xpose.msra.mxu0 0.0
    %3067 = vmatprep.subr.mxu0 0.0
    %3068 = vmatpush1.xpose.msra.mxu0 0.0
    %3069 = vmatprep.subr.mxu0 0.0
    %3070 = vmatpush1.xpose.msra.mxu0 0.0
    %3071 = vmatprep.subr.mxu0 0.0
    %3072 = vmatpush1.xpose.msra.mxu0 0.0
    %3073 = vmatprep.subr.mxu0 0.0
    %3074 = vmatpush1.xpose.msra.mxu0 0.0
    %3075 = vmatprep.subr.mxu0 0.0
    %3076 = vmatpush1.xpose.msra.mxu0 0.0
    %3077 = vmatprep.subr.mxu0 0.0
    %3078 = vmatpush1.xpose.msra.mxu0 0.0
    %3079 = vmatprep.mubr.f32.mxu0 0.0
    %3080 = vmatmul.mubr.f32.gmra.mrb[0].mxu0 %v3013
    %v3081 = vpop.f32.mrb[0].mxu0
    %v3082 = vadd.f32 %v3008, %v3081
    %v3083 = vpop.f32.mrb[0].mxu0
    %3084 = vdwg.mxu0
    %v3085 = vadd.f32 %v3082, %v113
    %s3086 = sld [smem:[#allocation12]]
    %3088 = vset.pattern.permute.xlu0 0
    %3089 = vperm.xlu0 %3088, %v3085
    %v3090 = vpop.permute.xlu0 %3089
    %v3092 = vadd.f32 %v3090, %v715
    %v3093 = vtanh.pop %v3092
    %v3094 = vstv %s3086
    %v3095 = vmul.f32 %v3094, %v3093
    %v3096 = vadd.f32 %v3095, 0.0
    %s3097 = sld [smem:[#allocation12 + $0x1]]
    %3098 = vset.pattern.permute.xlu0 1
    %3099 = vperm.xlu0 %3098, %v3085
    %v3100 = vpop.permute.xlu0 %3099
    %v3102 = vadd.f32 %v3100, %v730
    %v3103 = vtanh.pop %v3102
    %v3104 = vstv %s3097
    %v3105 = vmul.f32 %v3104, %v3103
    %v3106 = vadd.f32 %v3096, %v3105
    %s3107 = sld [smem:[#allocation12 + $0x2]]
    %3108 = vset.pattern.permute.xlu0 2
    %3109 = vperm.xlu0 %3108, %v3085
    %v3110 = vpop.permute.xlu0 %3109
    %v3112 = vadd.f32 %v3110, %v745
    %v3113 = vtanh.pop %v3112
    %v3114 = vstv %s3107
    %v3115 = vmul.f32 %v3114, %v3113
    %v3116 = vadd.f32 %v3106, %v3115
    %s3117 = sld [smem:[#allocation12 + $0x3]]
    %3118 = vset.pattern.permute.xlu0 3
    %3119 = vperm.xlu0 %3118, %v3085
    %v3120 = vpop.permute.xlu0 %3119
    %v3122 = vadd.f32 %v3120, %v760
    %v3123 = vtanh.pop %v3122
    %v3124 = vstv %s3117
    %v3125 = vmul.f32 %v3124, %v3123
    %v3126 = vadd.f32 %v3116, %v3125
    %s3127 = sld [smem:[#allocation12 + $0x4]]
    %3128 = vset.pattern.permute.xlu0 4
    %3129 = vperm.xlu0 %3128, %v3085
    %v3130 = vpop.permute.xlu0 %3129
    %v3132 = vadd.f32 %v3130, %v775
    %v3133 = vtanh.pop %v3132
    %v3134 = vstv %s3127
    %v3135 = vmul.f32 %v3134, %v3133
    %v3136 = vadd.f32 %v3126, %v3135
    %s3137 = sld [smem:[#allocation12 + $0x5]]
    %3138 = vset.pattern.permute.xlu0 5
    %3139 = vperm.xlu0 %3138, %v3085
    %v3140 = vpop.permute.xlu0 %3139
    %v3142 = vadd.f32 %v3140, %v790
    %v3143 = vtanh.pop %v3142
    %v3144 = vstv %s3137
    %v3145 = vmul.f32 %v3144, %v3143
    %v3146 = vadd.f32 %v3136, %v3145
    %s3147 = sld [smem:[#allocation12 + $0x6]]
    %3148 = vset.pattern.permute.xlu0 6
    %3149 = vperm.xlu0 %3148, %v3085
    %v3150 = vpop.permute.xlu0 %3149
    %v3152 = vadd.f32 %v3150, %v805
    %v3153 = vtanh.pop %v3152
    %v3154 = vstv %s3147
    %v3155 = vmul.f32 %v3154, %v3153
    %v3156 = vadd.f32 %v3146, %v3155
    %s3157 = sld [smem:[#allocation12 + $0x7]]
    %3158 = vset.pattern.permute.xlu0 7
    %3159 = vperm.xlu0 %3158, %v3085
    %v3160 = vpop.permute.xlu0 %3159
    %v3162 = vadd.f32 %v3160, %v820
    %v3163 = vtanh.pop %v3162
    %v3164 = vstv %s3157
    %v3165 = vmul.f32 %v3164, %v3163
    %v3166 = vadd.f32 %v3156, %v3165
    %v3167 = vadd.f32 %v3166, %v827
    %v3168 = vsel %vm829, %v3167, -inf
    %3169 = vmax.xlane.f32.xlu0 %v3168
    %v3170 = vpop.xlane.xlu0 %3169
    %v3171 = vsub.f32 %v3167, %v3170
    %v3172 = vmul.f32 %v3171, 1.442695
    %v3173 = vpow.pop %v3172
    %v3174 = vsel %vm829, %v3173, 0.0
    %3175 = vadd.xlane.f32.xlu0 %v3174
    %v3176 = vpop.xlane.xlu0 %3175
    %v3177 = vrcp.pop %v3176
    %v3178 = vmul.f32 %v3173, %v3177
    %v3181 = vrot.slane %v135, 7
    %v3182 = vsel %vm714, %v3181, %v134
    %v3184 = vmul.f32 %v3178, %v3182
    %3185 = vrot.lane.b32.xlu0 %v2896, 36
    %v3186 = vpop.permute.xlu0 %3185
    %v3188 = vsel %vm847, %v3184, %v3186
    %v3190 = vsel %vm849, %v3188, 0
    %3192 = vmatprep.subr.mxu0 0.0
    %3193 = vmatpush1.msra.mxu0 %v102
    %3194 = vmatprep.subr.mxu0 0.0
    %3195 = vmatpush1.msra.mxu0 %v103
    %3196 = vmatprep.subr.mxu0 0.0
    %3197 = vmatpush1.msra.mxu0 %v104
    %3198 = vmatprep.subr.mxu0 0.0
    %3199 = vmatpush1.msra.mxu0 %v105
    %3200 = vmatprep.subr.mxu0 0.0
    %3201 = vmatpush1.msra.mxu0 %v855
    %3202 = vmatprep.subr.mxu0 0.0
    %3203 = vmatpush1.msra.mxu0 0.0
    %3204 = vmatprep.subr.mxu0 0.0
    %3205 = vmatpush1.msra.mxu0 0.0
    %3206 = vmatprep.subr.mxu0 0.0
    %3207 = vmatpush1.msra.mxu0 0.0
    %3208 = vmatprep.subr.mxu0 0.0
    %3209 = vmatpush1.msra.mxu0 0.0
    %3210 = vmatprep.subr.mxu0 0.0
    %3211 = vmatpush1.msra.mxu0 0.0
    %3212 = vmatprep.subr.mxu0 0.0
    %3213 = vmatpush1.msra.mxu0 0.0
    %3214 = vmatprep.subr.mxu0 0.0
    %3215 = vmatpush1.msra.mxu0 0.0
    %3216 = vmatprep.subr.mxu0 0.0
    %3217 = vmatpush1.msra.mxu0 0.0
    %3218 = vmatprep.subr.mxu0 0.0
    %3219 = vmatpush1.msra.mxu0 0.0
    %3220 = vmatprep.subr.mxu0 0.0
    %3221 = vmatpush1.msra.mxu0 0.0
    %3222 = vmatprep.subr.mxu0 0.0
    %3223 = vmatpush1.msra.mxu0 0.0
    %3224 = vmatprep.subr.mxu0 0.0
    %3225 = vmatpush1.msra.mxu0 0.0
    %3226 = vmatprep.subr.mxu0 0.0
    %3227 = vmatpush1.msra.mxu0 0.0
    %3228 = vmatprep.subr.mxu0 0.0
    %3229 = vmatpush1.msra.mxu0 0.0
    %3230 = vmatprep.subr.mxu0 0.0
    %3231 = vmatpush1.msra.mxu0 0.0
    %3232 = vmatprep.subr.mxu0 0.0
    %3233 = vmatpush1.msra.mxu0 0.0
    %3234 = vmatprep.subr.mxu0 0.0
    %3235 = vmatpush1.msra.mxu0 0.0
    %3236 = vmatprep.subr.mxu0 0.0
    %3237 = vmatpush1.msra.mxu0 0.0
    %3238 = vmatprep.subr.mxu0 0.0
    %3239 = vmatpush1.msra.mxu0 0.0
    %3240 = vmatprep.subr.mxu0 0.0
    %3241 = vmatpush1.msra.mxu0 0.0
    %3242 = vmatprep.subr.mxu0 0.0
    %3243 = vmatpush1.msra.mxu0 0.0
    %3244 = vmatprep.subr.mxu0 0.0
    %3245 = vmatpush1.msra.mxu0 0.0
    %3246 = vmatprep.subr.mxu0 0.0
    %3247 = vmatpush1.msra.mxu0 0.0
    %3248 = vmatprep.subr.mxu0 0.0
    %3249 = vmatpush1.msra.mxu0 0.0
    %3250 = vmatprep.subr.mxu0 0.0
    %3251 = vmatpush1.msra.mxu0 0.0
    %3252 = vmatprep.subr.mxu0 0.0
    %3253 = vmatpush1.msra.mxu0 0.0
    %3254 = vmatprep.subr.mxu0 0.0
    %3255 = vmatpush1.msra.mxu0 0.0
    %3256 = vmatprep.mubr.f32.mxu0 0.0
    %3257 = vmatmul.mubr.f32.gmra.mrb[0].mxu0 %v3190
    %v3258 = vpop.f32.mrb[0].mxu0
    %v3259 = vadd.f32 %v120, %v3258
    %v3260 = vpop.f32.mrb[0].mxu0
    %3261 = vdwg.mxu0
    %v3262 = vxor.u32 %v3259, 2147483648
    %v3263 = vmul.f32 %v3262, 1.442695
    %v3264 = vpow.pop %v3263
    %v3265 = vadd.f32 %v3264, 1.0
    %v3266 = vrcp.pop %v3265
    %v3267 = vmul.f32 1.0, %v3266
    %v3268 = vtanh.pop %v3259
    %v3269 = vmul.f32 %v3267, %v2890
    %3271 = vrot.lane.b32.xlu0 %v3268, 64
    %v3272 = vpop.permute.xlu0 %3271
    %v3274 = vmul.f32 %v3267, %v3272
    %3276 = vrot.lane.b32.xlu0 %v3274, 32
    %v3277 = vpop.permute.xlu0 %3276
    %v3279 = vadd.f32 %v3269, %v3277
    %v3280 = vtanh.pop %v3279
    %3282 = vrot.lane.b32.xlu0 %v3280, 64
    %v3283 = vpop.permute.xlu0 %3282
    %v3285 = vmul.f32 %v3267, %v3283
    %v3288 = vunpack.c.l.s4 1966171168
    %v3289 = vunpack.c.0.s8 %v3288
    %v3290 = vlaneseq
    %v3291 = vshrl.u32 %v3290, 7
    %v3292 = vsub.s32 %v3289, %v3291
    %v3293 = vrot.slane %v3285, %v3292
    %v3294 = vcombine.high %v3293, %v3293
    %v3296 = vunpack.c.l.s4 1966171168
    %v3297 = vunpack.c.0.s8 %v3296
    %v3298 = vlaneseq
    %v3299 = vshrl.u32 %v3298, 7
    %v3300 = vsub.s32 %v3297, %v3299
    %v3301 = vrot.slane %v3293, %v3300
    %v3303 = vunpack.c.l.s4 1966171168
    %v3304 = vunpack.c.0.s8 %v3303
    %v3305 = vlaneseq
    %v3306 = vshrl.u32 %v3305, 7
    %v3307 = vsub.s32 %v3304, %v3306
    %v3308 = vrot.slane %v3294, %v3307
    %v3309 = vlaneseq
    %v3310 = vshrl.u32 %v3309, 7
    %v3311 = vsub.s32 0, %v3310
    %v3312 = vrot.slane %v3301, %v3311
    %v3313 = vlaneseq
    %v3314 = vshrl.u32 %v3313, 7
    %v3315 = vsub.s32 0, %v3314
    %v3316 = vrot.slane %v3308, %v3315
    %3317 = vrot.lane.b32.xlu0 %v3312, 32
    %v3318 = vpop.permute.xlu0 %3317
    %3319 = vrot.lane.b32.xlu0 %v3316, 32
    %v3320 = vpop.permute.xlu0 %3319
    %3323 = vst.msk [vmem:[#allocation13 + $0x6] sm:$0x1] %vm988, %v3318
    %3324 = vst.msk [vmem:[#allocation13 + $0xe] sm:$0x1] %vm988, %v3320
    %3326 = vrot.lane.b32.xlu0 %v3279, 96
    %v3327 = vpop.permute.xlu0 %3326
    %v3328 = vsel %vm554, %v3327, 0
    %3330 = vmatprep.subr.mxu0 0.0
    %3331 = vmatpush1.xpose.msra.mxu0 %v559
    %3332 = vmatprep.subr.mxu0 0.0
    %3333 = vmatpush1.xpose.msra.mxu0 0.0
    %3334 = vmatprep.subr.mxu0 0.0
    %3335 = vmatpush1.xpose.msra.mxu0 0.0
    %3336 = vmatprep.subr.mxu0 0.0
    %3337 = vmatpush1.xpose.msra.mxu0 0.0
    %3338 = vmatprep.subr.mxu0 0.0
    %3339 = vmatpush1.xpose.msra.mxu0 0.0
    %3340 = vmatprep.subr.mxu0 0.0
    %3341 = vmatpush1.xpose.msra.mxu0 0.0
    %3342 = vmatprep.subr.mxu0 0.0
    %3343 = vmatpush1.xpose.msra.mxu0 0.0
    %3344 = vmatprep.subr.mxu0 0.0
    %3345 = vmatpush1.xpose.msra.mxu0 0.0
    %3346 = vmatprep.subr.mxu0 0.0
    %3347 = vmatpush1.xpose.msra.mxu0 0.0
    %3348 = vmatprep.subr.mxu0 0.0
    %3349 = vmatpush1.xpose.msra.mxu0 0.0
    %3350 = vmatprep.subr.mxu0 0.0
    %3351 = vmatpush1.xpose.msra.mxu0 0.0
    %3352 = vmatprep.subr.mxu0 0.0
    %3353 = vmatpush1.xpose.msra.mxu0 0.0
    %3354 = vmatprep.subr.mxu0 0.0
    %3355 = vmatpush1.xpose.msra.mxu0 0.0
    %3356 = vmatprep.subr.mxu0 0.0
    %3357 = vmatpush1.xpose.msra.mxu0 0.0
    %3358 = vmatprep.subr.mxu0 0.0
    %3359 = vmatpush1.xpose.msra.mxu0 0.0
    %3360 = vmatprep.subr.mxu0 0.0
    %3361 = vmatpush1.xpose.msra.mxu0 0.0
    %3362 = vmatprep.subr.mxu0 0.0
    %3363 = vmatpush1.xpose.msra.mxu0 0.0
    %3364 = vmatprep.subr.mxu0 0.0
    %3365 = vmatpush1.xpose.msra.mxu0 0.0
    %3366 = vmatprep.subr.mxu0 0.0
    %3367 = vmatpush1.xpose.msra.mxu0 0.0
    %3368 = vmatprep.subr.mxu0 0.0
    %3369 = vmatpush1.xpose.msra.mxu0 0.0
    %3370 = vmatprep.subr.mxu0 0.0
    %3371 = vmatpush1.xpose.msra.mxu0 0.0
    %3372 = vmatprep.subr.mxu0 0.0
    %3373 = vmatpush1.xpose.msra.mxu0 0.0
    %3374 = vmatprep.subr.mxu0 0.0
    %3375 = vmatpush1.xpose.msra.mxu0 0.0
    %3376 = vmatprep.subr.mxu0 0.0
    %3377 = vmatpush1.xpose.msra.mxu0 0.0
    %3378 = vmatprep.subr.mxu0 0.0
    %3379 = vmatpush1.xpose.msra.mxu0 0.0
    %3380 = vmatprep.subr.mxu0 0.0
    %3381 = vmatpush1.xpose.msra.mxu0 0.0
    %3382 = vmatprep.subr.mxu0 0.0
    %3383 = vmatpush1.xpose.msra.mxu0 0.0
    %3384 = vmatprep.subr.mxu0 0.0
    %3385 = vmatpush1.xpose.msra.mxu0 0.0
    %3386 = vmatprep.subr.mxu0 0.0
    %3387 = vmatpush1.xpose.msra.mxu0 0.0
    %3388 = vmatprep.subr.mxu0 0.0
    %3389 = vmatpush1.xpose.msra.mxu0 0.0
    %3390 = vmatprep.subr.mxu0 0.0
    %3391 = vmatpush1.xpose.msra.mxu0 0.0
    %3392 = vmatprep.subr.mxu0 0.0
    %3393 = vmatpush1.xpose.msra.mxu0 0.0
    %3394 = vmatprep.mubr.f32.mxu0 0.0
    %3395 = vmatmul.mubr.f32.gmra.mrb[0].mxu0 %v3328
    %v3396 = vpop.f32.mrb[0].mxu0
    %v3397 = vadd.f32 0.0, %v3396
    %v3398 = vpop.f32.mrb[0].mxu0
    %3399 = vdwg.mxu0
    %3400 = vrot.lane.b32.xlu0 %v3285, 32
    %v3401 = vpop.permute.xlu0 %3400
    %v3402 = vsel %vm554, %v3401, 0
    %3404 = vmatprep.subr.mxu0 0.0
    %3405 = vmatpush1.xpose.msra.mxu0 %v632
    %3406 = vmatprep.subr.mxu0 0.0
    %3407 = vmatpush1.xpose.msra.mxu0 0.0
    %3408 = vmatprep.subr.mxu0 0.0
    %3409 = vmatpush1.xpose.msra.mxu0 0.0
    %3410 = vmatprep.subr.mxu0 0.0
    %3411 = vmatpush1.xpose.msra.mxu0 0.0
    %3412 = vmatprep.subr.mxu0 0.0
    %3413 = vmatpush1.xpose.msra.mxu0 0.0
    %3414 = vmatprep.subr.mxu0 0.0
    %3415 = vmatpush1.xpose.msra.mxu0 0.0
    %3416 = vmatprep.subr.mxu0 0.0
    %3417 = vmatpush1.xpose.msra.mxu0 0.0
    %3418 = vmatprep.subr.mxu0 0.0
    %3419 = vmatpush1.xpose.msra.mxu0 0.0
    %3420 = vmatprep.subr.mxu0 0.0
    %3421 = vmatpush1.xpose.msra.mxu0 0.0
    %3422 = vmatprep.subr.mxu0 0.0
    %3423 = vmatpush1.xpose.msra.mxu0 0.0
    %3424 = vmatprep.subr.mxu0 0.0
    %3425 = vmatpush1.xpose.msra.mxu0 0.0
    %3426 = vmatprep.subr.mxu0 0.0
    %3427 = vmatpush1.xpose.msra.mxu0 0.0
    %3428 = vmatprep.subr.mxu0 0.0
    %3429 = vmatpush1.xpose.msra.mxu0 0.0
    %3430 = vmatprep.subr.mxu0 0.0
    %3431 = vmatpush1.xpose.msra.mxu0 0.0
    %3432 = vmatprep.subr.mxu0 0.0
    %3433 = vmatpush1.xpose.msra.mxu0 0.0
    %3434 = vmatprep.subr.mxu0 0.0
    %3435 = vmatpush1.xpose.msra.mxu0 0.0
    %3436 = vmatprep.subr.mxu0 0.0
    %3437 = vmatpush1.xpose.msra.mxu0 0.0
    %3438 = vmatprep.subr.mxu0 0.0
    %3439 = vmatpush1.xpose.msra.mxu0 0.0
    %3440 = vmatprep.subr.mxu0 0.0
    %3441 = vmatpush1.xpose.msra.mxu0 0.0
    %3442 = vmatprep.subr.mxu0 0.0
    %3443 = vmatpush1.xpose.msra.mxu0 0.0
    %3444 = vmatprep.subr.mxu0 0.0
    %3445 = vmatpush1.xpose.msra.mxu0 0.0
    %3446 = vmatprep.subr.mxu0 0.0
    %3447 = vmatpush1.xpose.msra.mxu0 0.0
    %3448 = vmatprep.subr.mxu0 0.0
    %3449 = vmatpush1.xpose.msra.mxu0 0.0
    %3450 = vmatprep.subr.mxu0 0.0
    %3451 = vmatpush1.xpose.msra.mxu0 0.0
    %3452 = vmatprep.subr.mxu0 0.0
    %3453 = vmatpush1.xpose.msra.mxu0 0.0
    %3454 = vmatprep.subr.mxu0 0.0
    %3455 = vmatpush1.xpose.msra.mxu0 0.0
    %3456 = vmatprep.subr.mxu0 0.0
    %3457 = vmatpush1.xpose.msra.mxu0 0.0
    %3458 = vmatprep.subr.mxu0 0.0
    %3459 = vmatpush1.xpose.msra.mxu0 0.0
    %3460 = vmatprep.subr.mxu0 0.0
    %3461 = vmatpush1.xpose.msra.mxu0 0.0
    %3462 = vmatprep.subr.mxu0 0.0
    %3463 = vmatpush1.xpose.msra.mxu0 0.0
    %3464 = vmatprep.subr.mxu0 0.0
    %3465 = vmatpush1.xpose.msra.mxu0 0.0
    %3466 = vmatprep.subr.mxu0 0.0
    %3467 = vmatpush1.xpose.msra.mxu0 0.0
    %3468 = vmatprep.mubr.f32.mxu0 0.0
    %3469 = vmatmul.mubr.f32.gmra.mrb[0].mxu0 %v3402
    %v3470 = vpop.f32.mrb[0].mxu0
    %v3471 = vadd.f32 %v3397, %v3470
    %v3472 = vpop.f32.mrb[0].mxu0
    %3473 = vdwg.mxu0
    %v3474 = vadd.f32 %v3471, %v113
    %s3475 = sld [smem:[#allocation12]]
    %3477 = vset.pattern.permute.xlu0 0
    %3478 = vperm.xlu0 %3477, %v3474
    %v3479 = vpop.permute.xlu0 %3478
    %v3481 = vadd.f32 %v3479, %v715
    %v3482 = vtanh.pop %v3481
    %v3483 = vstv %s3475
    %v3484 = vmul.f32 %v3483, %v3482
    %v3485 = vadd.f32 %v3484, 0.0
    %s3486 = sld [smem:[#allocation12 + $0x1]]
    %3487 = vset.pattern.permute.xlu0 1
    %3488 = vperm.xlu0 %3487, %v3474
    %v3489 = vpop.permute.xlu0 %3488
    %v3491 = vadd.f32 %v3489, %v730
    %v3492 = vtanh.pop %v3491
    %v3493 = vstv %s3486
    %v3494 = vmul.f32 %v3493, %v3492
    %v3495 = vadd.f32 %v3485, %v3494
    %s3496 = sld [smem:[#allocation12 + $0x2]]
    %3497 = vset.pattern.permute.xlu0 2
    %3498 = vperm.xlu0 %3497, %v3474
    %v3499 = vpop.permute.xlu0 %3498
    %v3501 = vadd.f32 %v3499, %v745
    %v3502 = vtanh.pop %v3501
    %v3503 = vstv %s3496
    %v3504 = vmul.f32 %v3503, %v3502
    %v3505 = vadd.f32 %v3495, %v3504
    %s3506 = sld [smem:[#allocation12 + $0x3]]
    %3507 = vset.pattern.permute.xlu0 3
    %3508 = vperm.xlu0 %3507, %v3474
    %v3509 = vpop.permute.xlu0 %3508
    %v3511 = vadd.f32 %v3509, %v760
    %v3512 = vtanh.pop %v3511
    %v3513 = vstv %s3506
    %v3514 = vmul.f32 %v3513, %v3512
    %v3515 = vadd.f32 %v3505, %v3514
    %s3516 = sld [smem:[#allocation12 + $0x4]]
    %3517 = vset.pattern.permute.xlu0 4
    %3518 = vperm.xlu0 %3517, %v3474
    %v3519 = vpop.permute.xlu0 %3518
    %v3521 = vadd.f32 %v3519, %v775
    %v3522 = vtanh.pop %v3521
    %v3523 = vstv %s3516
    %v3524 = vmul.f32 %v3523, %v3522
    %v3525 = vadd.f32 %v3515, %v3524
    %s3526 = sld [smem:[#allocation12 + $0x5]]
    %3527 = vset.pattern.permute.xlu0 5
    %3528 = vperm.xlu0 %3527, %v3474
    %v3529 = vpop.permute.xlu0 %3528
    %v3531 = vadd.f32 %v3529, %v790
    %v3532 = vtanh.pop %v3531
    %v3533 = vstv %s3526
    %v3534 = vmul.f32 %v3533, %v3532
    %v3535 = vadd.f32 %v3525, %v3534
    %s3536 = sld [smem:[#allocation12 + $0x6]]
    %3537 = vset.pattern.permute.xlu0 6
    %3538 = vperm.xlu0 %3537, %v3474
    %v3539 = vpop.permute.xlu0 %3538
    %v3541 = vadd.f32 %v3539, %v805
    %v3542 = vtanh.pop %v3541
    %v3543 = vstv %s3536
    %v3544 = vmul.f32 %v3543, %v3542
    %v3545 = vadd.f32 %v3535, %v3544
    %s3546 = sld [smem:[#allocation12 + $0x7]]
    %3547 = vset.pattern.permute.xlu0 7
    %3548 = vperm.xlu0 %3547, %v3474
    %v3549 = vpop.permute.xlu0 %3548
    %v3551 = vadd.f32 %v3549, %v820
    %v3552 = vtanh.pop %v3551
    %v3553 = vstv %s3546
    %v3554 = vmul.f32 %v3553, %v3552
    %v3555 = vadd.f32 %v3545, %v3554
    %v3556 = vadd.f32 %v3555, %v827
    %v3557 = vsel %vm829, %v3556, -inf
    %3558 = vmax.xlane.f32.xlu0 %v3557
    %v3559 = vpop.xlane.xlu0 %3558
    %v3560 = vsub.f32 %v3556, %v3559
    %v3561 = vmul.f32 %v3560, 1.442695
    %v3562 = vpow.pop %v3561
    %v3563 = vsel %vm829, %v3562, 0.0
    %3564 = vadd.xlane.f32.xlu0 %v3563
    %v3565 = vpop.xlane.xlu0 %3564
    %v3566 = vrcp.pop %v3565
    %v3567 = vmul.f32 %v3562, %v3566
    %v3570 = vrot.slane %v137, 7
    %v3571 = vsel %vm714, %v3570, %v136
    %v3573 = vmul.f32 %v3567, %v3571
    %3574 = vrot.lane.b32.xlu0 %v3285, 36
    %v3575 = vpop.permute.xlu0 %3574
    %v3577 = vsel %vm847, %v3573, %v3575
    %v3579 = vsel %vm849, %v3577, 0
    %3581 = vmatprep.subr.mxu0 0.0
    %3582 = vmatpush1.msra.mxu0 %v102
    %3583 = vmatprep.subr.mxu0 0.0
    %3584 = vmatpush1.msra.mxu0 %v103
    %3585 = vmatprep.subr.mxu0 0.0
    %3586 = vmatpush1.msra.mxu0 %v104
    %3587 = vmatprep.subr.mxu0 0.0
    %3588 = vmatpush1.msra.mxu0 %v105
    %3589 = vmatprep.subr.mxu0 0.0
    %3590 = vmatpush1.msra.mxu0 %v855
    %3591 = vmatprep.subr.mxu0 0.0
    %3592 = vmatpush1.msra.mxu0 0.0
    %3593 = vmatprep.subr.mxu0 0.0
    %3594 = vmatpush1.msra.mxu0 0.0
    %3595 = vmatprep.subr.mxu0 0.0
    %3596 = vmatpush1.msra.mxu0 0.0
    %3597 = vmatprep.subr.mxu0 0.0
    %3598 = vmatpush1.msra.mxu0 0.0
    %3599 = vmatprep.subr.mxu0 0.0
    %3600 = vmatpush1.msra.mxu0 0.0
    %3601 = vmatprep.subr.mxu0 0.0
    %3602 = vmatpush1.msra.mxu0 0.0
    %3603 = vmatprep.subr.mxu0 0.0
    %3604 = vmatpush1.msra.mxu0 0.0
    %3605 = vmatprep.subr.mxu0 0.0
    %3606 = vmatpush1.msra.mxu0 0.0
    %3607 = vmatprep.subr.mxu0 0.0
    %3608 = vmatpush1.msra.mxu0 0.0
    %3609 = vmatprep.subr.mxu0 0.0
    %3610 = vmatpush1.msra.mxu0 0.0
    %3611 = vmatprep.subr.mxu0 0.0
    %3612 = vmatpush1.msra.mxu0 0.0
    %3613 = vmatprep.subr.mxu0 0.0
    %3614 = vmatpush1.msra.mxu0 0.0
    %3615 = vmatprep.subr.mxu0 0.0
    %3616 = vmatpush1.msra.mxu0 0.0
    %3617 = vmatprep.subr.mxu0 0.0
    %3618 = vmatpush1.msra.mxu0 0.0
    %3619 = vmatprep.subr.mxu0 0.0
    %3620 = vmatpush1.msra.mxu0 0.0
    %3621 = vmatprep.subr.mxu0 0.0
    %3622 = vmatpush1.msra.mxu0 0.0
    %3623 = vmatprep.subr.mxu0 0.0
    %3624 = vmatpush1.msra.mxu0 0.0
    %3625 = vmatprep.subr.mxu0 0.0
    %3626 = vmatpush1.msra.mxu0 0.0
    %3627 = vmatprep.subr.mxu0 0.0
    %3628 = vmatpush1.msra.mxu0 0.0
    %3629 = vmatprep.subr.mxu0 0.0
    %3630 = vmatpush1.msra.mxu0 0.0
    %3631 = vmatprep.subr.mxu0 0.0
    %3632 = vmatpush1.msra.mxu0 0.0
    %3633 = vmatprep.subr.mxu0 0.0
    %3634 = vmatpush1.msra.mxu0 0.0
    %3635 = vmatprep.subr.mxu0 0.0
    %3636 = vmatpush1.msra.mxu0 0.0
    %3637 = vmatprep.subr.mxu0 0.0
    %3638 = vmatpush1.msra.mxu0 0.0
    %3639 = vmatprep.subr.mxu0 0.0
    %3640 = vmatpush1.msra.mxu0 0.0
    %3641 = vmatprep.subr.mxu0 0.0
    %3642 = vmatpush1.msra.mxu0 0.0
    %3643 = vmatprep.subr.mxu0 0.0
    %3644 = vmatpush1.msra.mxu0 0.0
    %3645 = vmatprep.mubr.f32.mxu0 0.0
    %3646 = vmatmul.mubr.f32.gmra.mrb[0].mxu0 %v3579
    %v3647 = vpop.f32.mrb[0].mxu0
    %v3648 = vadd.f32 %v120, %v3647
    %v3649 = vpop.f32.mrb[0].mxu0
    %3650 = vdwg.mxu0
    %v3651 = vxor.u32 %v3648, 2147483648
    %v3652 = vmul.f32 %v3651, 1.442695
    %v3653 = vpow.pop %v3652
    %v3654 = vadd.f32 %v3653, 1.0
    %v3655 = vrcp.pop %v3654
    %v3656 = vmul.f32 1.0, %v3655
    %v3657 = vtanh.pop %v3648
    %v3658 = vmul.f32 %v3656, %v3279
    %3660 = vrot.lane.b32.xlu0 %v3657, 64
    %v3661 = vpop.permute.xlu0 %3660
    %v3663 = vmul.f32 %v3656, %v3661
    %3665 = vrot.lane.b32.xlu0 %v3663, 32
    %v3666 = vpop.permute.xlu0 %3665
    %v3668 = vadd.f32 %v3658, %v3666
    %v3669 = vtanh.pop %v3668
    %3671 = vrot.lane.b32.xlu0 %v3669, 64
    %v3672 = vpop.permute.xlu0 %3671
    %v3674 = vmul.f32 %v3656, %v3672
    %v3677 = vunpack.c.l.s4 1966171168
    %v3678 = vunpack.c.0.s8 %v3677
    %v3679 = vlaneseq
    %v3680 = vshrl.u32 %v3679, 7
    %v3681 = vsub.s32 %v3678, %v3680
    %v3682 = vrot.slane %v3674, %v3681
    %v3683 = vcombine.high %v3682, %v3682
    %v3685 = vunpack.c.l.s4 1966171168
    %v3686 = vunpack.c.0.s8 %v3685
    %v3687 = vlaneseq
    %v3688 = vshrl.u32 %v3687, 7
    %v3689 = vsub.s32 %v3686, %v3688
    %v3690 = vrot.slane %v3682, %v3689
    %v3692 = vunpack.c.l.s4 1966171168
    %v3693 = vunpack.c.0.s8 %v3692
    %v3694 = vlaneseq
    %v3695 = vshrl.u32 %v3694, 7
    %v3696 = vsub.s32 %v3693, %v3695
    %v3697 = vrot.slane %v3683, %v3696
    %v3698 = vlaneseq
    %v3699 = vshrl.u32 %v3698, 7
    %v3700 = vsub.s32 0, %v3699
    %v3701 = vrot.slane %v3690, %v3700
    %v3702 = vlaneseq
    %v3703 = vshrl.u32 %v3702, 7
    %v3704 = vsub.s32 0, %v3703
    %v3705 = vrot.slane %v3697, %v3704
    %3706 = vrot.lane.b32.xlu0 %v3701, 32
    %v3707 = vpop.permute.xlu0 %3706
    %3708 = vrot.lane.b32.xlu0 %v3705, 32
    %v3709 = vpop.permute.xlu0 %3708
    %3712 = vst.msk [vmem:[#allocation13 + $0x7] sm:$0x1] %vm988, %v3707
    %3713 = vst.msk [vmem:[#allocation13 + $0xf] sm:$0x1] %vm988, %v3709
    %3714 = vst.msk [vmem:[#allocation14] sm:$0x3] %vm829, %v3567
    // Predicated region
    $region62: #{tpu_custom_call.1} parent=1 // pred_check
      _
    $region63: #{tpu_custom_call.1} parent=1 // pred_check_branch
      %3716 = sbr.rel (0) target = $region65
    $region64: #{tpu_custom_call.1} parent=1 // pred_region
      %s3718 = ssub.s32 256, 256
      %3719 = vsyncadd [#allocation5], %s3718
      %s3720 = sshll.u32 [#allocation13], 4
      %s3721 = int_to_ptr.vmem [resolvable:$true] %s3720
      %3726 = dma.vmem_to_hbm [thread:$0]  %s3721, 256, %s10, [#allocation5], 128, 128, 8
    $region65: #{tpu_custom_call.1} parent=1 // pred_fallthru
      _
    // Predicated region
    $region66: #{tpu_custom_call.1} parent=1 // pred_check
      _
    $region67: #{tpu_custom_call.1} parent=1 // pred_check_branch
      %3728 = sbr.rel (0) target = $region69
    $region68: #{tpu_custom_call.1} parent=1 // pred_region
      %s3730 = ssub.s32 32, 32
      %3731 = vsyncadd [#allocation15], %s3730
      %s3733 = sshll.u32 [#allocation14], 4
      %s3734 = int_to_ptr.vmem [resolvable:$true] %s3733
      %3736 = dma.vmem_to_hbm [thread:$0]  %s3734, 32, %s11, [#allocation15]
    $region69: #{tpu_custom_call.1} parent=1 // pred_fallthru
      _
    // Predicated region
    $region70: #{tpu_custom_call.1} parent=1 // pred_check
      _
    $region71: #{tpu_custom_call.1} parent=1 // pred_check_branch
      %3738 = sbr.rel (0) target = $region73
    $region72: #{tpu_custom_call.1} parent=1 // pred_region
      %3739 = dma.done [#allocation5], 256
    $region73: #{tpu_custom_call.1} parent=1 // pred_fallthru
      _
    // Predicated region
    $region74: #{tpu_custom_call.1} parent=1 // pred_check
      _
    $region75: #{tpu_custom_call.1} parent=1 // pred_check_branch
      %3741 = sbr.rel (0) target = $region77
    $region76: #{tpu_custom_call.1} parent=1 // pred_region
      %3742 = dma.done [#allocation15], 32
    $region77: #{tpu_custom_call.1} parent=1 // pred_fallthru
      _
    %3743 = vsyncpa [#allocation4], 1
    %3744 = vsyncpa [#allocation8], 1
    %3745 = vsyncpa [#allocation5], 1
    %3746 = vsyncpa [#allocation15], 1
    %3747 = vsyncpa [#allocation6], 1
    %3748 = vsyncpa [#allocation11], 1

</llo_original>
